<compile_context>
chip_gen: v7x
topology: tpu7x:2x2x1
jax: 0.10.0
libtpu: 0.0.40
codegen_flags: <defaults>
</compile_context>

<pallas_src>
import jax
import jax.numpy as jnp
from jax import lax
from jax.experimental import pallas as pl
from jax.experimental.pallas import tpu as pltpu

_SQRT2 = 1.4142135623730951


def _erf(x):
    # Abramowitz & Stegun 7.1.26 rational approximation, |err| < 1.5e-7 (~f32 eps).
    a1, a2, a3, a4, a5 = 0.254829592, -0.284496736, 1.421413741, -1.453152027, 1.061405429
    p = 0.3275911
    ax = jnp.abs(x)
    d = 1.0 + p * ax
    t = pl.reciprocal(d, approx=True)       # EUP slot (otherwise idle on this path)
    t = t * (2.0 - d * t)                   # one Newton step -> ~f32 accuracy
    poly = ((((a5 * t + a4) * t + a3) * t + a2) * t + a1) * t
    y = 1.0 - poly * jnp.exp(-ax * ax)
    return jnp.where(x >= 0, y, -y)


def _gelu_exact(x):
    return 0.5 * x * (1.0 + _erf(x / _SQRT2))


def _drfd_kernel(xt_ref, w1_ref, w2_ref, wcut_ref, wfh_ref, wfm_ref, wfc_ref,
                 vech_ref, vecc_ref, out_ref, hpad):
    # hpad slot = half*4 + phase; row 0 / col 0 are the borders the stride-2 conv reads.
    tHo = hpad.shape[1] - 1
    Wo = hpad.shape[2] - 1
    C = hpad.shape[3]
    j = pl.program_id(1)                    # row-tile index inside the image

    def vh(idx, half):                      # (1, C); half 0 = even torch chans, 1 = odd
        r = idx * 2 + half
        return vech_ref[r:r + 1, :]

    def vc(idx):                            # (1, 2C), torch channel order
        return vecc_ref[idx:idx + 1, :]

    def w1(half, k):
        r = half * 9 + k
        return w1_ref[r:r + 1, :]

    def w2(half, k):
        r = half * 9 + k
        return w2_ref[r:r + 1, :]

    # Hoisted bias broadcasts (JAX does not CSE broadcast_in_dim).
    b1_full = [jnp.zeros((tHo, Wo, C), jnp.float32) + vh(0, h) for h in range(2)]
    b2_full = [jnp.zeros((tHo, Wo, C), jnp.float32) + vh(1, h) for h in range(2)]

    # Left zero border (col 0): only the phases read by the kx==0 taps
    # (column-parity 1) ever see it, so only those get zeroed (no full memset).
    zcol = jnp.zeros((tHo + 1, 1, C), jnp.float32)
    for half in range(2):
        for ph in (1, 3):
            hpad[half * 4 + ph, :, 0:1, :] = zcol

    # ---- self.conv: depthwise 3x3, stride 1, pad 1, evaluated per output phase
    # (a, b) = (row parity, col parity) so every stride-2 consumer below uses only
    # static slices.  Each group has 1 input channel and 2 output channels; half 0
    # and half 1 use the de-interleaved filters (even / odd torch channels).
    # MaxPool2d(2,2) == elementwise max over the 4 phases -> folded in as a running max.
    m_acc = [None, None]
    for a in range(2):
        for b in range(2):
            acc = [b1_full[0], b1_full[1]]
            for ky in range(3):
                s = a + ky
                for kx in range(3):
                    t = b + kx
                    k = ky * 3 + kx
                    patch = xt_ref[0, (s % 2) * 2 + (t % 2),
                                   s // 2 + 1: s // 2 + 1 + tHo,
                                   t // 2: t // 2 + Wo, :]
                    for half in range(2):
                        acc[half] = acc[half] + patch * w1(half, k)
            for half in range(2):
                hpad[half * 4 + a * 2 + b, 1:tHo + 1, 1:Wo + 1, :] = acc[half]
                m_acc[half] = acc[half] if m_acc[half] is None \
                    else jnp.maximum(m_acc[half], acc[half])

    # ---- Top halo row of the row-parity-1 phases: h at image row 2*j*tHo - 1,
    # read by the ky==0 tap of the stride-2 conv at the first output row of this
    # tile.  For the first tile it is the conv_h zero padding.
    @pl.when(j == 0)
    def _():
        zrow = jnp.zeros((1, Wo, C), jnp.float32)
        for half in range(2):
            for b in range(2):
                hpad[half * 4 + 2 + b, 0:1, 1:Wo + 1, :] = zrow

    @pl.when(j > 0)
    def _():
        for b in range(2):
            acc = [b1_full[0][0:1], b1_full[1][0:1]]          # (1, Wo, C) bias rows
            for ky in range(3):
                s = 1 + ky
                for kx in range(3):
                    t = b + kx
                    k = ky * 3 + kx
                    patch = xt_ref[0, (s % 2) * 2 + (t % 2),
                                   s // 2: s // 2 + 1,
                                   t // 2: t // 2 + Wo, :]
                    for half in range(2):
                        acc[half] = acc[half] + patch * w1(half, k)
            for half in range(2):
                hpad[half * 4 + 2 + b, 0:1, 1:Wo + 1, :] = acc[half]

    # ---- m branch: folded MaxPool result -> BN -> bf16 staging for the fusion matmul.
    m_b = []
    for half in range(2):
        m = m_acc[half] * vh(4, half) + vh(5, half)
        m_b.append(m.reshape(tHo * Wo, C).astype(jnp.bfloat16))

    # ---- h branch: depthwise 3x3 stride-2 pad-1 conv on h, exact GELU, BN.
    # Tap ky reads h rows 2y'+ky-1: ky=0 -> row-parity 1 at y'-1 (border / halo),
    # ky=1 -> parity 0 at y', ky=2 -> parity 1 at y'.  Columns analogous.
    phase_of = (1, 0, 1)
    h_b = []
    for half in range(2):
        hc = b2_full[half]
        for ky in range(3):
            rs = slice(0, tHo) if ky == 0 else slice(1, tHo + 1)
            for kx in range(3):
                cs = slice(0, Wo) if kx == 0 else slice(1, Wo + 1)
                ph = phase_of[ky] * 2 + phase_of[kx]
                hc = hc + hpad[half * 4 + ph, rs, cs, :] * w2(half, ky * 3 + kx)
        hc = _gelu_exact(hc)
        hc = hc * vh(2, half) + vh(3, half)
        h_b.append(hc.reshape(tHo * Wo, C).astype(jnp.bfloat16))

    # ---- Cut branch: the space-to-depth channels [x0, x1, x2, x3] are interior
    # slices of the phase tile already resident in VMEM; the 1x1 conv is four small
    # matmuls (bf16 operands, f32 accumulation on the MXU), then BN.
    x_ph = (
        xt_ref[0, 3, 1:tHo + 1, 0:Wo, :],          # x0 = x[0::2, 0::2]
        xt_ref[0, 1, 2:tHo + 2, 0:Wo, :],          # x1 = x[1::2, 0::2]
        xt_ref[0, 2, 1:tHo + 1, 1:Wo + 1, :],      # x2 = x[0::2, 1::2]
        xt_ref[0, 0, 2:tHo + 2, 1:Wo + 1, :],      # x3 = x[1::2, 1::2]
    )
    xc = jnp.dot(x_ph[0].reshape(tHo * Wo, C).astype(jnp.bfloat16), wcut_ref[0],
                 preferred_element_type=jnp.float32)
    for p in range(1, 4):
        xc = xc + jnp.dot(x_ph[p].reshape(tHo * Wo, C).astype(jnp.bfloat16), wcut_ref[p],
                          preferred_element_type=jnp.float32)
    xc = xc + vc(0)
    xc = xc * vc(1) + vc(2)

    # ---- fusion 1x1 conv over concat([h, cut, m]); the weight rows were pre-split
    # and channel-permuted in the wrapper so no lane concatenation is needed here.
    fuse = jnp.dot(xc.astype(jnp.bfloat16), wfc_ref[...], preferred_element_type=jnp.float32)
    for half in range(2):
        fuse = fuse + jnp.dot(h_b[half], wfh_ref[half], preferred_element_type=jnp.float32)
        fuse = fuse + jnp.dot(m_b[half], wfm_ref[half], preferred_element_type=jnp.float32)
    out_ref[0] = fuse + vc(3)


def _fold_bn(gamma, beta, mean, var, eps=1e-5):
    scale = gamma / jnp.sqrt(var + eps)
    shift = beta - mean * scale
    return scale, shift


def _pick_row_tile(Ho, target=16):
    # Largest divisor of Ho that is <= target and leaves >= 2 row tiles when possible.
    upper = max(1, min(target, Ho // 2 if Ho >= 2 else 1))
    for t in range(upper, 0, -1):
        if Ho % t == 0:
            return t
    return 1


def init_params(dim, key):
    C, C2 = dim, 2 * dim
    keys = jax.random.split(key, 16)

    def nrm(k, shape, s=0.2):
        return s * jax.random.normal(k, shape, dtype=jnp.float32)

    p = {}
    p["w_conv"] = nrm(keys[0], (C2, 1, 3, 3))        # depthwise, groups=C
    p["b_conv"] = nrm(keys[1], (C2,), 0.1)
    p["w_convh"] = nrm(keys[2], (C2, 1, 3, 3))       # depthwise, groups=2C, stride 2
    p["b_convh"] = nrm(keys[3], (C2,), 0.1)
    p["w_cut"] = nrm(keys[4], (C2, 4 * C, 1, 1))     # Cut.conv_fusion
    p["b_cut"] = nrm(keys[5], (C2,), 0.1)
    p["w_fuse"] = nrm(keys[6], (C2, 3 * C2, 1, 1))   # DRFD.fusion
    p["b_fuse"] = nrm(keys[7], (C2,), 0.1)
    for name, k0 in (("cut", 8), ("h", 10), ("m", 12)):
        p[f"bn_{name}_gamma"] = 1.0 + 0.1 * jax.random.normal(keys[k0], (C2,), jnp.float32)
        p[f"bn_{name}_beta"] = 0.1 * jax.random.normal(keys[k0 + 1], (C2,), jnp.float32)
        p[f"bn_{name}_mean"] = 0.05 * jax.random.normal(jax.random.fold_in(keys[k0], 1), (C2,), jnp.float32)
        p[f"bn_{name}_var"] = 1.0 + 0.2 * jax.random.uniform(jax.random.fold_in(keys[k0], 2), (C2,), jnp.float32)
    return p


def patch_merging_forward(x_nchw, params, *, row_tile=None):
    B, C, H, W = x_nchw.shape
    assert H % 2 == 0 and W % 2 == 0, "H and W must be even"
    C2 = 2 * C
    Ho, Wo = H // 2, W // 2
    tHo = row_tile if row_tile is not None else _pick_row_tile(Ho)
    assert Ho % tHo == 0
    nT = Ho // tHo

    x = jnp.transpose(x_nchw, (0, 2, 3, 1)).astype(jnp.float32)            # NHWC
    xp = jnp.pad(x, ((0, 0), (1, 1), (1, 1), (0, 0)))                      # conv pad=1
    # Phase (space-to-depth) decomposition of the padded input:
    # P[b, 2a+c, i, k, :] = xp[b, 2i+a, 2k+c, :]  ->  (B, 4, Ho+1, Wo+1, C)
    P = jnp.stack([xp[:, a::2, c::2, :] for a in (0, 1) for c in (0, 1)], axis=1)
    # One zero phase-row on top so each row tile carries its own stride-2 halo row.
    P = jnp.pad(P, ((0, 0), (0, 0), (1, 0), (0, 0), (0, 0)))
    # Overlapping row windows: tile j holds phase rows [j*tHo - 1, j*tHo + tHo].
    # (Materialized in the wrapper; duplicates only 2 rows per window.)
    xt = jnp.concatenate(
        [P[:, None, :, jj * tHo: jj * tHo + tHo + 2] for jj in range(nT)], axis=1)
    xt = xt.reshape(B * nT, 4, tHo + 2, Wo + 1, C)

    # ---- weights reshaped / de-interleaved for the kernel.
    def deinterleave_cols(w9x2c):        # (9, 2C) -> (18, C), rows = half*9 + tap
        return jnp.concatenate([w9x2c[:, 0::2], w9x2c[:, 1::2]], axis=0)

    w1k = deinterleave_cols(jnp.transpose(params["w_conv"][:, 0], (1, 2, 0)).reshape(9, C2))
    w2k = deinterleave_cols(jnp.transpose(params["w_convh"][:, 0], (1, 2, 0)).reshape(9, C2))

    wcut = jnp.transpose(params["w_cut"][:, :, 0, 0], (1, 0))              # (4C, 2C)
    wcut = wcut.reshape(4, C, C2).astype(jnp.bfloat16)                     # chunk p = x_p rows

    wf = jnp.transpose(params["w_fuse"][:, :, 0, 0], (1, 0))               # (6C, 2C)
    wfh_t, wfc_t, wfm_t = wf[0:C2], wf[C2:2 * C2], wf[2 * C2:3 * C2]
    wfh = jnp.stack([wfh_t[0::2], wfh_t[1::2]], axis=0).astype(jnp.bfloat16)   # (2, C, 2C)
    wfm = jnp.stack([wfm_t[0::2], wfm_t[1::2]], axis=0).astype(jnp.bfloat16)
    wfc = wfc_t.astype(jnp.bfloat16)                                       # (2C, 2C)

    # BatchNorms folded to scale/shift (inference / running-stats mode).
    # TODO(synk): train-mode BatchNorm (batch statistics) not implemented; eval-mode running stats used.
    cut_sc, cut_sh = _fold_bn(params["bn_cut_gamma"], params["bn_cut_beta"],
                              params["bn_cut_mean"], params["bn_cut_var"])
    h_sc, h_sh = _fold_bn(params["bn_h_gamma"], params["bn_h_beta"],
                          params["bn_h_mean"], params["bn_h_var"])
    m_sc, m_sh = _fold_bn(params["bn_m_gamma"], params["bn_m_beta"],
                          params["bn_m_mean"], params["bn_m_var"])

    def halves(v):                        # (2C,) -> (2, C): [even torch chans, odd]
        return jnp.stack([v[0::2], v[1::2]], axis=0)

    vech = jnp.stack([halves(params["b_conv"]), halves(params["b_convh"]),
                      halves(h_sc), halves(h_sh),
                      halves(m_sc), halves(m_sh)], axis=0).reshape(12, C)
    vecc = jnp.stack([params["b_cut"], cut_sc, cut_sh, params["b_fuse"]], axis=0)  # (4, 2C)

    # Explicit scoped-VMEM budget: pipelined blocks + scratch + weights + headroom.
    xt_blk = 4 * (tHo + 2) * (Wo + 1) * C * 4
    out_blk = tHo * Wo * C2 * 4
    scratch_b = 8 * (tHo + 1) * (Wo + 1) * C * 4
    w_b = (2 * 18 * C + 12 * C + 4 * C2) * 4 + (8 * C * C2 + C2 * C2) * 2
    vmem_limit = int(min(max(3 * (xt_blk + out_blk) + scratch_b + 2 * w_b + (16 << 20),
                             16 << 20), 96 << 20))

    out = pl.pallas_call(
        _drfd_kernel,
        out_shape=jax.ShapeDtypeStruct((B * nT, tHo * Wo, C2), jnp.float32),
        grid_spec=pltpu.PrefetchScalarGridSpec(
            num_scalar_prefetch=0,
            grid=(B, nT),
            in_specs=[
                pl.BlockSpec((1, 4, tHo + 2, Wo + 1, C),
                             lambda b, jj: (b * nT + jj, 0, 0, 0, 0)),
                pl.BlockSpec((18, C), lambda b, jj: (0, 0)),
                pl.BlockSpec((18, C), lambda b, jj: (0, 0)),
                pl.BlockSpec((4, C, C2), lambda b, jj: (0, 0, 0)),
                pl.BlockSpec((2, C, C2), lambda b, jj: (0, 0, 0)),
                pl.BlockSpec((2, C, C2), lambda b, jj: (0, 0, 0)),
                pl.BlockSpec((C2, C2), lambda b, jj: (0, 0)),
                pl.BlockSpec((12, C), lambda b, jj: (0, 0)),
                pl.BlockSpec((4, C2), lambda b, jj: (0, 0)),
            ],
            out_specs=pl.BlockSpec((1, tHo * Wo, C2), lambda b, jj: (b * nT + jj, 0, 0)),
            scratch_shapes=[pltpu.VMEM((8, tHo + 1, Wo + 1, C), jnp.float32)],
        ),
        compiler_params=pltpu.CompilerParams(
            dimension_semantics=("parallel", "parallel"),
            vmem_limit_bytes=vmem_limit),
    )(xt, w1k, w2k, wcut, wfh, wfm, wfc, vech, vecc)

    out = out.reshape(B, Ho, Wo, C2)
    return jnp.transpose(out, (0, 3, 1, 2))                                # NCHW


def _reference(x_nchw, params):
    """Pure-JAX (XLA, f32) reference of the same forward, for a correctness check."""
    x = jnp.transpose(x_nchw, (0, 2, 3, 1)).astype(jnp.float32)
    B, H, W, C = x.shape
    C2 = 2 * C
    dn = ('NHWC', 'HWIO', 'NHWC')

    w1 = jnp.transpose(params["w_conv"], (2, 3, 1, 0))
    h = lax.conv_general_dilated(x, w1, (1, 1), ((1, 1), (1, 1)),
                                 feature_group_count=C, dimension_numbers=dn)
    h = h + params["b_conv"]
    m = h

    xc = jnp.concatenate([x[:, 0::2, 0::2, :], x[:, 1::2, 0::2, :],
                          x[:, 0::2, 1::2, :], x[:, 1::2, 1::2, :]], axis=-1)
    wcut = jnp.transpose(params["w_cut"], (2, 3, 1, 0))
    xc = lax.conv_general_dilated(xc, wcut, (1, 1), 'VALID', dimension_numbers=dn)
    xc = xc + params["b_cut"]
    sc, sh = _fold_bn(params["bn_cut_gamma"], params["bn_cut_beta"],
                      params["bn_cut_mean"], params["bn_cut_var"])
    xc = xc * sc + sh

    w2 = jnp.transpose(params["w_convh"], (2, 3, 1, 0))
    hh = lax.conv_general_dilated(h, w2, (2, 2), ((1, 1), (1, 1)),
                                  feature_group_count=C2, dimension_numbers=dn)
    hh = hh + params["b_convh"]
    hh = jax.nn.gelu(hh, approximate=False)
    sc, sh = _fold_bn(params["bn_h_gamma"], params["bn_h_beta"],
                      params["bn_h_mean"], params["bn_h_var"])
    hh = hh * sc + sh

    m = lax.reduce_window(m, jnp.array(-jnp.inf, dtype=m.dtype), lax.max,
                          (1, 2, 2, 1), (1, 2, 2, 1), 'VALID')
    sc, sh = _fold_bn(params["bn_m_gamma"], params["bn_m_beta"],
                      params["bn_m_mean"], params["bn_m_var"])
    m = m * sc + sh

    cat = jnp.concatenate([hh, xc, m], axis=-1)
    wfull = jnp.transpose(params["w_fuse"], (2, 3, 1, 0))
    out = lax.conv_general_dilated(cat, wfull, (1, 1), 'VALID', dimension_numbers=dn)
    out = out + params["b_fuse"]
    return jnp.transpose(out, (0, 3, 1, 2))


if __name__ == "__main__":
    key = jax.random.PRNGKey(0)
    kx, kp = jax.random.split(key)
    B, dim, H, W = 2, 4, 16, 16
    x = jax.random.normal(kx, (B, dim, H, W), dtype=jnp.float32)
    params = init_params(dim, kp)

    out = patch_merging_forward(x, params)
    out = jax.block_until_ready(out)
    assert out.shape == (B, 2 * dim, H // 2, W // 2)

    ref = _reference(x, params)
    # Tolerance covers the intentional bf16 rounding of the 1x1-conv matmul operands
    # (f32 accumulation on the MXU); structural errors would be O(0.5-3).
    if not jnp.allclose(out, ref, atol=6e-2, rtol=6e-2):
        max_err = float(jnp.max(jnp.abs(out - ref)))
        raise AssertionError(
            f"Pallas kernel output does not match JAX reference (max |err|={max_err:.4f})")
    print("KERNEL_OK")
</pallas_src>

<mosaic_0001>
module attributes {stable_mosaic.version = 11 : i64} {
  func.func @_drfd_kernel(%arg0: i32, %arg1: i32, %arg2: memref<1x4x6x9x4xf32, #tpu.memory_space<vmem>>, %arg3: memref<18x4xf32, #tpu.memory_space<vmem>>, %arg4: memref<18x4xf32, #tpu.memory_space<vmem>>, %arg5: memref<4x4x8xbf16, #tpu.memory_space<vmem>>, %arg6: memref<2x4x8xbf16, #tpu.memory_space<vmem>>, %arg7: memref<2x4x8xbf16, #tpu.memory_space<vmem>>, %arg8: memref<8x8xbf16, #tpu.memory_space<vmem>>, %arg9: memref<12x4xf32, #tpu.memory_space<vmem>>, %arg10: memref<4x8xf32, #tpu.memory_space<vmem>>, %arg11: memref<1x32x8xf32, #tpu.memory_space<vmem>>, %arg12: memref<8x5x9x4xf32, #tpu.memory_space<vmem>>) attributes {dimension_semantics = [#tpu.dimension_semantics<parallel>, #tpu.dimension_semantics<parallel>], iteration_bounds = array<i64: 2, 2>, scalar_prefetch = 0 : i64, scratch_operands = 1 : i64, tpu.core_type = #tpu.core_type<tc>, window_params = [{transform_indices = @transform_0, window_bounds = array<i64: 1, 4, 6, 9, 4>}, {pipeline_mode = #tpu.pipeline_mode<synchronous>, transform_indices = @transform_1, window_bounds = array<i64: 18, 4>}, {pipeline_mode = #tpu.pipeline_mode<synchronous>, transform_indices = @transform_2, window_bounds = array<i64: 18, 4>}, {pipeline_mode = #tpu.pipeline_mode<synchronous>, transform_indices = @transform_3, window_bounds = array<i64: 4, 4, 8>}, {pipeline_mode = #tpu.pipeline_mode<synchronous>, transform_indices = @transform_4, window_bounds = array<i64: 2, 4, 8>}, {pipeline_mode = #tpu.pipeline_mode<synchronous>, transform_indices = @transform_5, window_bounds = array<i64: 2, 4, 8>}, {pipeline_mode = #tpu.pipeline_mode<synchronous>, transform_indices = @transform_6, window_bounds = array<i64: 8, 8>}, {pipeline_mode = #tpu.pipeline_mode<synchronous>, transform_indices = @transform_7, window_bounds = array<i64: 12, 4>}, {pipeline_mode = #tpu.pipeline_mode<synchronous>, transform_indices = @transform_8, window_bounds = array<i64: 4, 8>}, {transform_indices = @transform_9, window_bounds = array<i64: 1, 32, 8>}]} {
    %cst = arith.constant 0.000000e+00 : f32
    %0 = vector.broadcast %cst : f32 to vector<4x8x4xf32>
    %c0 = arith.constant 0 : index
    %c0_0 = arith.constant 0 : index
    %1 = vector.load %arg9[%c0, %c0_0] : memref<12x4xf32, #tpu.memory_space<vmem>>, vector<1x4xf32>
    %2 = vector.shape_cast %1 : vector<1x4xf32> to vector<1x1x4xf32>
    %3 = vector.broadcast %2 : vector<1x1x4xf32> to vector<4x8x4xf32>
    %4 = arith.addf %0, %3 : vector<4x8x4xf32>
    %cst_1 = arith.constant 0.000000e+00 : f32
    %5 = vector.broadcast %cst_1 : f32 to vector<4x8x4xf32>
    %c1 = arith.constant 1 : index
    %c0_2 = arith.constant 0 : index
    %6 = vector.load %arg9[%c1, %c0_2] : memref<12x4xf32, #tpu.memory_space<vmem>>, vector<1x4xf32>
    %7 = vector.shape_cast %6 : vector<1x4xf32> to vector<1x1x4xf32>
    %8 = vector.broadcast %7 : vector<1x1x4xf32> to vector<4x8x4xf32>
    %9 = arith.addf %5, %8 : vector<4x8x4xf32>
    %cst_3 = arith.constant 0.000000e+00 : f32
    %10 = vector.broadcast %cst_3 : f32 to vector<4x8x4xf32>
    %c2 = arith.constant 2 : index
    %c0_4 = arith.constant 0 : index
    %11 = vector.load %arg9[%c2, %c0_4] : memref<12x4xf32, #tpu.memory_space<vmem>>, vector<1x4xf32>
    %12 = vector.shape_cast %11 : vector<1x4xf32> to vector<1x1x4xf32>
    %13 = vector.broadcast %12 : vector<1x1x4xf32> to vector<4x8x4xf32>
    %14 = arith.addf %10, %13 : vector<4x8x4xf32>
    %cst_5 = arith.constant 0.000000e+00 : f32
    %15 = vector.broadcast %cst_5 : f32 to vector<4x8x4xf32>
    %c3 = arith.constant 3 : index
    %c0_6 = arith.constant 0 : index
    %16 = vector.load %arg9[%c3, %c0_6] : memref<12x4xf32, #tpu.memory_space<vmem>>, vector<1x4xf32>
    %17 = vector.shape_cast %16 : vector<1x4xf32> to vector<1x1x4xf32>
    %18 = vector.broadcast %17 : vector<1x1x4xf32> to vector<4x8x4xf32>
    %19 = arith.addf %15, %18 : vector<4x8x4xf32>
    %cst_7 = arith.constant 0.000000e+00 : f32
    %20 = vector.broadcast %cst_7 : f32 to vector<5x1x4xf32>
    %c1_8 = arith.constant 1 : index
    %c0_9 = arith.constant 0 : index
    %c0_10 = arith.constant 0 : index
    %c0_11 = arith.constant 0 : index
    %21 = vector.load %arg12[%c1_8, %c0_9, %c0_10, %c0_11] : memref<8x5x9x4xf32, #tpu.memory_space<vmem>>, vector<1x5x1x4xf32>
    %22 = vector.shape_cast %21 : vector<1x5x1x4xf32> to vector<5x1x4xf32>
    %23 = vector.shape_cast %20 : vector<5x1x4xf32> to vector<1x5x1x4xf32>
    tpu.vector_store %arg12[%c1_8, %c0_9, %c0_10, %c0_11], %23 {strides = array<i32>} : memref<8x5x9x4xf32, #tpu.memory_space<vmem>>, vector<1x5x1x4xf32>,
    %c3_12 = arith.constant 3 : index
    %c0_13 = arith.constant 0 : index
    %c0_14 = arith.constant 0 : index
    %c0_15 = arith.constant 0 : index
    %24 = vector.load %arg12[%c3_12, %c0_13, %c0_14, %c0_15] : memref<8x5x9x4xf32, #tpu.memory_space<vmem>>, vector<1x5x1x4xf32>
    %25 = vector.shape_cast %24 : vector<1x5x1x4xf32> to vector<5x1x4xf32>
    %26 = vector.shape_cast %20 : vector<5x1x4xf32> to vector<1x5x1x4xf32>
    tpu.vector_store %arg12[%c3_12, %c0_13, %c0_14, %c0_15], %26 {strides = array<i32>} : memref<8x5x9x4xf32, #tpu.memory_space<vmem>>, vector<1x5x1x4xf32>,
    %c5 = arith.constant 5 : index
    %c0_16 = arith.constant 0 : index
    %c0_17 = arith.constant 0 : index
    %c0_18 = arith.constant 0 : index
    %27 = vector.load %arg12[%c5, %c0_16, %c0_17, %c0_18] : memref<8x5x9x4xf32, #tpu.memory_space<vmem>>, vector<1x5x1x4xf32>
    %28 = vector.shape_cast %27 : vector<1x5x1x4xf32> to vector<5x1x4xf32>
    %29 = vector.shape_cast %20 : vector<5x1x4xf32> to vector<1x5x1x4xf32>
    tpu.vector_store %arg12[%c5, %c0_16, %c0_17, %c0_18], %29 {strides = array<i32>} : memref<8x5x9x4xf32, #tpu.memory_space<vmem>>, vector<1x5x1x4xf32>,
    %c7 = arith.constant 7 : index
    %c0_19 = arith.constant 0 : index
    %c0_20 = arith.constant 0 : index
    %c0_21 = arith.constant 0 : index
    %30 = vector.load %arg12[%c7, %c0_19, %c0_20, %c0_21] : memref<8x5x9x4xf32, #tpu.memory_space<vmem>>, vector<1x5x1x4xf32>
    %31 = vector.shape_cast %30 : vector<1x5x1x4xf32> to vector<5x1x4xf32>
    %32 = vector.shape_cast %20 : vector<5x1x4xf32> to vector<1x5x1x4xf32>
    tpu.vector_store %arg12[%c7, %c0_19, %c0_20, %c0_21], %32 {strides = array<i32>} : memref<8x5x9x4xf32, #tpu.memory_space<vmem>>, vector<1x5x1x4xf32>,
    %c0_22 = arith.constant 0 : index
    %c0_23 = arith.constant 0 : index
    %c1_24 = arith.constant 1 : index
    %c0_25 = arith.constant 0 : index
    %c0_26 = arith.constant 0 : index
    %33 = vector.load %arg2[%c0_22, %c0_23, %c1_24, %c0_25, %c0_26] : memref<1x4x6x9x4xf32, #tpu.memory_space<vmem>>, vector<1x1x4x8x4xf32>
    %34 = vector.shape_cast %33 : vector<1x1x4x8x4xf32> to vector<4x8x4xf32>
    %c0_27 = arith.constant 0 : index
    %c0_28 = arith.constant 0 : index
    %35 = vector.load %arg3[%c0_27, %c0_28] : memref<18x4xf32, #tpu.memory_space<vmem>>, vector<1x4xf32>
    %36 = vector.shape_cast %35 : vector<1x4xf32> to vector<1x1x4xf32>
    %37 = vector.broadcast %36 : vector<1x1x4xf32> to vector<4x8x4xf32>
    %38 = arith.mulf %34, %37 : vector<4x8x4xf32>
    %39 = arith.addf %4, %38 : vector<4x8x4xf32>
    %c9 = arith.constant 9 : index
    %c0_29 = arith.constant 0 : index
    %40 = vector.load %arg3[%c9, %c0_29] : memref<18x4xf32, #tpu.memory_space<vmem>>, vector<1x4xf32>
    %41 = vector.shape_cast %40 : vector<1x4xf32> to vector<1x1x4xf32>
    %42 = vector.broadcast %41 : vector<1x1x4xf32> to vector<4x8x4xf32>
    %43 = arith.mulf %34, %42 : vector<4x8x4xf32>
    %44 = arith.addf %9, %43 : vector<4x8x4xf32>
    %c0_30 = arith.constant 0 : index
    %c1_31 = arith.constant 1 : index
    %c1_32 = arith.constant 1 : index
    %c0_33 = arith.constant 0 : index
    %c0_34 = arith.constant 0 : index
    %45 = vector.load %arg2[%c0_30, %c1_31, %c1_32, %c0_33, %c0_34] : memref<1x4x6x9x4xf32, #tpu.memory_space<vmem>>, vector<1x1x4x8x4xf32>
    %46 = vector.shape_cast %45 : vector<1x1x4x8x4xf32> to vector<4x8x4xf32>
    %c1_35 = arith.constant 1 : index
    %c0_36 = arith.constant 0 : index
    %47 = vector.load %arg3[%c1_35, %c0_36] : memref<18x4xf32, #tpu.memory_space<vmem>>, vector<1x4xf32>
    %48 = vector.shape_cast %47 : vector<1x4xf32> to vector<1x1x4xf32>
    %49 = vector.broadcast %48 : vector<1x1x4xf32> to vector<4x8x4xf32>
    %50 = arith.mulf %46, %49 : vector<4x8x4xf32>
    %51 = arith.addf %39, %50 : vector<4x8x4xf32>
    %c10 = arith.constant 10 : index
    %c0_37 = arith.constant 0 : index
    %52 = vector.load %arg3[%c10, %c0_37] : memref<18x4xf32, #tpu.memory_space<vmem>>, vector<1x4xf32>
    %53 = vector.shape_cast %52 : vector<1x4xf32> to vector<1x1x4xf32>
    %54 = vector.broadcast %53 : vector<1x1x4xf32> to vector<4x8x4xf32>
    %55 = arith.mulf %46, %54 : vector<4x8x4xf32>
    %56 = arith.addf %44, %55 : vector<4x8x4xf32>
    %c0_38 = arith.constant 0 : index
    %c0_39 = arith.constant 0 : index
    %c1_40 = arith.constant 1 : index
    %c1_41 = arith.constant 1 : index
    %c0_42 = arith.constant 0 : index
    %57 = vector.load %arg2[%c0_38, %c0_39, %c1_40, %c1_41, %c0_42] : memref<1x4x6x9x4xf32, #tpu.memory_space<vmem>>, vector<1x1x4x8x4xf32>
    %58 = vector.shape_cast %57 : vector<1x1x4x8x4xf32> to vector<4x8x4xf32>
    %c2_43 = arith.constant 2 : index
    %c0_44 = arith.constant 0 : index
    %59 = vector.load %arg3[%c2_43, %c0_44] : memref<18x4xf32, #tpu.memory_space<vmem>>, vector<1x4xf32>
    %60 = vector.shape_cast %59 : vector<1x4xf32> to vector<1x1x4xf32>
    %61 = vector.broadcast %60 : vector<1x1x4xf32> to vector<4x8x4xf32>
    %62 = arith.mulf %58, %61 : vector<4x8x4xf32>
    %63 = arith.addf %51, %62 : vector<4x8x4xf32>
    %c11 = arith.constant 11 : index
    %c0_45 = arith.constant 0 : index
    %64 = vector.load %arg3[%c11, %c0_45] : memref<18x4xf32, #tpu.memory_space<vmem>>, vector<1x4xf32>
    %65 = vector.shape_cast %64 : vector<1x4xf32> to vector<1x1x4xf32>
    %66 = vector.broadcast %65 : vector<1x1x4xf32> to vector<4x8x4xf32>
    %67 = arith.mulf %58, %66 : vector<4x8x4xf32>
    %68 = arith.addf %56, %67 : vector<4x8x4xf32>
    %c0_46 = arith.constant 0 : index
    %c2_47 = arith.constant 2 : index
    %c1_48 = arith.constant 1 : index
    %c0_49 = arith.constant 0 : index
    %c0_50 = arith.constant 0 : index
    %69 = vector.load %arg2[%c0_46, %c2_47, %c1_48, %c0_49, %c0_50] : memref<1x4x6x9x4xf32, #tpu.memory_space<vmem>>, vector<1x1x4x8x4xf32>
    %70 = vector.shape_cast %69 : vector<1x1x4x8x4xf32> to vector<4x8x4xf32>
    %c3_51 = arith.constant 3 : index
    %c0_52 = arith.constant 0 : index
    %71 = vector.load %arg3[%c3_51, %c0_52] : memref<18x4xf32, #tpu.memory_space<vmem>>, vector<1x4xf32>
    %72 = vector.shape_cast %71 : vector<1x4xf32> to vector<1x1x4xf32>
    %73 = vector.broadcast %72 : vector<1x1x4xf32> to vector<4x8x4xf32>
    %74 = arith.mulf %70, %73 : vector<4x8x4xf32>
    %75 = arith.addf %63, %74 : vector<4x8x4xf32>
    %c12 = arith.constant 12 : index
    %c0_53 = arith.constant 0 : index
    %76 = vector.load %arg3[%c12, %c0_53] : memref<18x4xf32, #tpu.memory_space<vmem>>, vector<1x4xf32>
    %77 = vector.shape_cast %76 : vector<1x4xf32> to vector<1x1x4xf32>
    %78 = vector.broadcast %77 : vector<1x1x4xf32> to vector<4x8x4xf32>
    %79 = arith.mulf %70, %78 : vector<4x8x4xf32>
    %80 = arith.addf %68, %79 : vector<4x8x4xf32>
    %c0_54 = arith.constant 0 : index
    %c3_55 = arith.constant 3 : index
    %c1_56 = arith.constant 1 : index
    %c0_57 = arith.constant 0 : index
    %c0_58 = arith.constant 0 : index
    %81 = vector.load %arg2[%c0_54, %c3_55, %c1_56, %c0_57, %c0_58] : memref<1x4x6x9x4xf32, #tpu.memory_space<vmem>>, vector<1x1x4x8x4xf32>
    %82 = vector.shape_cast %81 : vector<1x1x4x8x4xf32> to vector<4x8x4xf32>
    %c4 = arith.constant 4 : index
    %c0_59 = arith.constant 0 : index
    %83 = vector.load %arg3[%c4, %c0_59] : memref<18x4xf32, #tpu.memory_space<vmem>>, vector<1x4xf32>
    %84 = vector.shape_cast %83 : vector<1x4xf32> to vector<1x1x4xf32>
    %85 = vector.broadcast %84 : vector<1x1x4xf32> to vector<4x8x4xf32>
    %86 = arith.mulf %82, %85 : vector<4x8x4xf32>
    %87 = arith.addf %75, %86 : vector<4x8x4xf32>
    %c13 = arith.constant 13 : index
    %c0_60 = arith.constant 0 : index
    %88 = vector.load %arg3[%c13, %c0_60] : memref<18x4xf32, #tpu.memory_space<vmem>>, vector<1x4xf32>
    %89 = vector.shape_cast %88 : vector<1x4xf32> to vector<1x1x4xf32>
    %90 = vector.broadcast %89 : vector<1x1x4xf32> to vector<4x8x4xf32>
    %91 = arith.mulf %82, %90 : vector<4x8x4xf32>
    %92 = arith.addf %80, %91 : vector<4x8x4xf32>
    %c0_61 = arith.constant 0 : index
    %c2_62 = arith.constant 2 : index
    %c1_63 = arith.constant 1 : index
    %c1_64 = arith.constant 1 : index
    %c0_65 = arith.constant 0 : index
    %93 = vector.load %arg2[%c0_61, %c2_62, %c1_63, %c1_64, %c0_65] : memref<1x4x6x9x4xf32, #tpu.memory_space<vmem>>, vector<1x1x4x8x4xf32>
    %94 = vector.shape_cast %93 : vector<1x1x4x8x4xf32> to vector<4x8x4xf32>
    %c5_66 = arith.constant 5 : index
    %c0_67 = arith.constant 0 : index
    %95 = vector.load %arg3[%c5_66, %c0_67] : memref<18x4xf32, #tpu.memory_space<vmem>>, vector<1x4xf32>
    %96 = vector.shape_cast %95 : vector<1x4xf32> to vector<1x1x4xf32>
    %97 = vector.broadcast %96 : vector<1x1x4xf32> to vector<4x8x4xf32>
    %98 = arith.mulf %94, %97 : vector<4x8x4xf32>
    %99 = arith.addf %87, %98 : vector<4x8x4xf32>
    %c14 = arith.constant 14 : index
    %c0_68 = arith.constant 0 : index
    %100 = vector.load %arg3[%c14, %c0_68] : memref<18x4xf32, #tpu.memory_space<vmem>>, vector<1x4xf32>
    %101 = vector.shape_cast %100 : vector<1x4xf32> to vector<1x1x4xf32>
    %102 = vector.broadcast %101 : vector<1x1x4xf32> to vector<4x8x4xf32>
    %103 = arith.mulf %94, %102 : vector<4x8x4xf32>
    %104 = arith.addf %92, %103 : vector<4x8x4xf32>
    %c0_69 = arith.constant 0 : index
    %c0_70 = arith.constant 0 : index
    %c2_71 = arith.constant 2 : index
    %c0_72 = arith.constant 0 : index
    %c0_73 = arith.constant 0 : index
    %105 = vector.load %arg2[%c0_69, %c0_70, %c2_71, %c0_72, %c0_73] : memref<1x4x6x9x4xf32, #tpu.memory_space<vmem>>, vector<1x1x4x8x4xf32>
    %106 = vector.shape_cast %105 : vector<1x1x4x8x4xf32> to vector<4x8x4xf32>
    %c6 = arith.constant 6 : index
    %c0_74 = arith.constant 0 : index
    %107 = vector.load %arg3[%c6, %c0_74] : memref<18x4xf32, #tpu.memory_space<vmem>>, vector<1x4xf32>
    %108 = vector.shape_cast %107 : vector<1x4xf32> to vector<1x1x4xf32>
    %109 = vector.broadcast %108 : vector<1x1x4xf32> to vector<4x8x4xf32>
    %110 = arith.mulf %106, %109 : vector<4x8x4xf32>
    %111 = arith.addf %99, %110 : vector<4x8x4xf32>
    %c15 = arith.constant 15 : index
    %c0_75 = arith.constant 0 : index
    %112 = vector.load %arg3[%c15, %c0_75] : memref<18x4xf32, #tpu.memory_space<vmem>>, vector<1x4xf32>
    %113 = vector.shape_cast %112 : vector<1x4xf32> to vector<1x1x4xf32>
    %114 = vector.broadcast %113 : vector<1x1x4xf32> to vector<4x8x4xf32>
    %115 = arith.mulf %106, %114 : vector<4x8x4xf32>
    %116 = arith.addf %104, %115 : vector<4x8x4xf32>
    %c0_76 = arith.constant 0 : index
    %c1_77 = arith.constant 1 : index
    %c2_78 = arith.constant 2 : index
    %c0_79 = arith.constant 0 : index
    %c0_80 = arith.constant 0 : index
    %117 = vector.load %arg2[%c0_76, %c1_77, %c2_78, %c0_79, %c0_80] : memref<1x4x6x9x4xf32, #tpu.memory_space<vmem>>, vector<1x1x4x8x4xf32>
    %118 = vector.shape_cast %117 : vector<1x1x4x8x4xf32> to vector<4x8x4xf32>
    %c7_81 = arith.constant 7 : index
    %c0_82 = arith.constant 0 : index
    %119 = vector.load %arg3[%c7_81, %c0_82] : memref<18x4xf32, #tpu.memory_space<vmem>>, vector<1x4xf32>
    %120 = vector.shape_cast %119 : vector<1x4xf32> to vector<1x1x4xf32>
    %121 = vector.broadcast %120 : vector<1x1x4xf32> to vector<4x8x4xf32>
    %122 = arith.mulf %118, %121 : vector<4x8x4xf32>
    %123 = arith.addf %111, %122 : vector<4x8x4xf32>
    %c16 = arith.constant 16 : index
    %c0_83 = arith.constant 0 : index
    %124 = vector.load %arg3[%c16, %c0_83] : memref<18x4xf32, #tpu.memory_space<vmem>>, vector<1x4xf32>
    %125 = vector.shape_cast %124 : vector<1x4xf32> to vector<1x1x4xf32>
    %126 = vector.broadcast %125 : vector<1x1x4xf32> to vector<4x8x4xf32>
    %127 = arith.mulf %118, %126 : vector<4x8x4xf32>
    %128 = arith.addf %116, %127 : vector<4x8x4xf32>
    %c0_84 = arith.constant 0 : index
    %c0_85 = arith.constant 0 : index
    %c2_86 = arith.constant 2 : index
    %c1_87 = arith.constant 1 : index
    %c0_88 = arith.constant 0 : index
    %129 = vector.load %arg2[%c0_84, %c0_85, %c2_86, %c1_87, %c0_88] : memref<1x4x6x9x4xf32, #tpu.memory_space<vmem>>, vector<1x1x4x8x4xf32>
    %130 = vector.shape_cast %129 : vector<1x1x4x8x4xf32> to vector<4x8x4xf32>
    %c8 = arith.constant 8 : index
    %c0_89 = arith.constant 0 : index
    %131 = vector.load %arg3[%c8, %c0_89] : memref<18x4xf32, #tpu.memory_space<vmem>>, vector<1x4xf32>
    %132 = vector.shape_cast %131 : vector<1x4xf32> to vector<1x1x4xf32>
    %133 = vector.broadcast %132 : vector<1x1x4xf32> to vector<4x8x4xf32>
    %134 = arith.mulf %130, %133 : vector<4x8x4xf32>
    %135 = arith.addf %123, %134 : vector<4x8x4xf32>
    %c17 = arith.constant 17 : index
    %c0_90 = arith.constant 0 : index
    %136 = vector.load %arg3[%c17, %c0_90] : memref<18x4xf32, #tpu.memory_space<vmem>>, vector<1x4xf32>
    %137 = vector.shape_cast %136 : vector<1x4xf32> to vector<1x1x4xf32>
    %138 = vector.broadcast %137 : vector<1x1x4xf32> to vector<4x8x4xf32>
    %139 = arith.mulf %130, %138 : vector<4x8x4xf32>
    %140 = arith.addf %128, %139 : vector<4x8x4xf32>
    %c0_91 = arith.constant 0 : index
    %c1_92 = arith.constant 1 : index
    %c1_93 = arith.constant 1 : index
    %c0_94 = arith.constant 0 : index
    %141 = vector.load %arg12[%c0_91, %c1_92, %c1_93, %c0_94] : memref<8x5x9x4xf32, #tpu.memory_space<vmem>>, vector<1x4x8x4xf32>
    %142 = vector.shape_cast %141 : vector<1x4x8x4xf32> to vector<4x8x4xf32>
    %143 = vector.shape_cast %135 : vector<4x8x4xf32> to vector<1x4x8x4xf32>
    tpu.vector_store %arg12[%c0_91, %c1_92, %c1_93, %c0_94], %143 {strides = array<i32>} : memref<8x5x9x4xf32, #tpu.memory_space<vmem>>, vector<1x4x8x4xf32>,
    %c4_95 = arith.constant 4 : index
    %c1_96 = arith.constant 1 : index
    %c1_97 = arith.constant 1 : index
    %c0_98 = arith.constant 0 : index
    %144 = vector.load %arg12[%c4_95, %c1_96, %c1_97, %c0_98] : memref<8x5x9x4xf32, #tpu.memory_space<vmem>>, vector<1x4x8x4xf32>
    %145 = vector.shape_cast %144 : vector<1x4x8x4xf32> to vector<4x8x4xf32>
    %146 = vector.shape_cast %140 : vector<4x8x4xf32> to vector<1x4x8x4xf32>
    tpu.vector_store %arg12[%c4_95, %c1_96, %c1_97, %c0_98], %146 {strides = array<i32>} : memref<8x5x9x4xf32, #tpu.memory_space<vmem>>, vector<1x4x8x4xf32>,
    %c0_99 = arith.constant 0 : index
    %c1_100 = arith.constant 1 : index
    %c1_101 = arith.constant 1 : index
    %c0_102 = arith.constant 0 : index
    %c0_103 = arith.constant 0 : index
    %147 = vector.load %arg2[%c0_99, %c1_100, %c1_101, %c0_102, %c0_103] : memref<1x4x6x9x4xf32, #tpu.memory_space<vmem>>, vector<1x1x4x8x4xf32>
    %148 = vector.shape_cast %147 : vector<1x1x4x8x4xf32> to vector<4x8x4xf32>
    %c0_104 = arith.constant 0 : index
    %c0_105 = arith.constant 0 : index
    %149 = vector.load %arg3[%c0_104, %c0_105] : memref<18x4xf32, #tpu.memory_space<vmem>>, vector<1x4xf32>
    %150 = vector.shape_cast %149 : vector<1x4xf32> to vector<1x1x4xf32>
    %151 = vector.broadcast %150 : vector<1x1x4xf32> to vector<4x8x4xf32>
    %152 = arith.mulf %148, %151 : vector<4x8x4xf32>
    %153 = arith.addf %4, %152 : vector<4x8x4xf32>
    %c9_106 = arith.constant 9 : index
    %c0_107 = arith.constant 0 : index
    %154 = vector.load %arg3[%c9_106, %c0_107] : memref<18x4xf32, #tpu.memory_space<vmem>>, vector<1x4xf32>
    %155 = vector.shape_cast %154 : vector<1x4xf32> to vector<1x1x4xf32>
    %156 = vector.broadcast %155 : vector<1x1x4xf32> to vector<4x8x4xf32>
    %157 = arith.mulf %148, %156 : vector<4x8x4xf32>
    %158 = arith.addf %9, %157 : vector<4x8x4xf32>
    %c0_108 = arith.constant 0 : index
    %c0_109 = arith.constant 0 : index
    %c1_110 = arith.constant 1 : index
    %c1_111 = arith.constant 1 : index
    %c0_112 = arith.constant 0 : index
    %159 = vector.load %arg2[%c0_108, %c0_109, %c1_110, %c1_111, %c0_112] : memref<1x4x6x9x4xf32, #tpu.memory_space<vmem>>, vector<1x1x4x8x4xf32>
    %160 = vector.shape_cast %159 : vector<1x1x4x8x4xf32> to vector<4x8x4xf32>
    %c1_113 = arith.constant 1 : index
    %c0_114 = arith.constant 0 : index
    %161 = vector.load %arg3[%c1_113, %c0_114] : memref<18x4xf32, #tpu.memory_space<vmem>>, vector<1x4xf32>
    %162 = vector.shape_cast %161 : vector<1x4xf32> to vector<1x1x4xf32>
    %163 = vector.broadcast %162 : vector<1x1x4xf32> to vector<4x8x4xf32>
    %164 = arith.mulf %160, %163 : vector<4x8x4xf32>
    %165 = arith.addf %153, %164 : vector<4x8x4xf32>
    %c10_115 = arith.constant 10 : index
    %c0_116 = arith.constant 0 : index
    %166 = vector.load %arg3[%c10_115, %c0_116] : memref<18x4xf32, #tpu.memory_space<vmem>>, vector<1x4xf32>
    %167 = vector.shape_cast %166 : vector<1x4xf32> to vector<1x1x4xf32>
    %168 = vector.broadcast %167 : vector<1x1x4xf32> to vector<4x8x4xf32>
    %169 = arith.mulf %160, %168 : vector<4x8x4xf32>
    %170 = arith.addf %158, %169 : vector<4x8x4xf32>
    %c0_117 = arith.constant 0 : index
    %c1_118 = arith.constant 1 : index
    %c1_119 = arith.constant 1 : index
    %c1_120 = arith.constant 1 : index
    %c0_121 = arith.constant 0 : index
    %171 = vector.load %arg2[%c0_117, %c1_118, %c1_119, %c1_120, %c0_121] : memref<1x4x6x9x4xf32, #tpu.memory_space<vmem>>, vector<1x1x4x8x4xf32>
    %172 = vector.shape_cast %171 : vector<1x1x4x8x4xf32> to vector<4x8x4xf32>
    %c2_122 = arith.constant 2 : index
    %c0_123 = arith.constant 0 : index
    %173 = vector.load %arg3[%c2_122, %c0_123] : memref<18x4xf32, #tpu.memory_space<vmem>>, vector<1x4xf32>
    %174 = vector.shape_cast %173 : vector<1x4xf32> to vector<1x1x4xf32>
    %175 = vector.broadcast %174 : vector<1x1x4xf32> to vector<4x8x4xf32>
    %176 = arith.mulf %172, %175 : vector<4x8x4xf32>
    %177 = arith.addf %165, %176 : vector<4x8x4xf32>
    %c11_124 = arith.constant 11 : index
    %c0_125 = arith.constant 0 : index
    %178 = vector.load %arg3[%c11_124, %c0_125] : memref<18x4xf32, #tpu.memory_space<vmem>>, vector<1x4xf32>
    %179 = vector.shape_cast %178 : vector<1x4xf32> to vector<1x1x4xf32>
    %180 = vector.broadcast %179 : vector<1x1x4xf32> to vector<4x8x4xf32>
    %181 = arith.mulf %172, %180 : vector<4x8x4xf32>
    %182 = arith.addf %170, %181 : vector<4x8x4xf32>
    %c0_126 = arith.constant 0 : index
    %c3_127 = arith.constant 3 : index
    %c1_128 = arith.constant 1 : index
    %c0_129 = arith.constant 0 : index
    %c0_130 = arith.constant 0 : index
    %183 = vector.load %arg2[%c0_126, %c3_127, %c1_128, %c0_129, %c0_130] : memref<1x4x6x9x4xf32, #tpu.memory_space<vmem>>, vector<1x1x4x8x4xf32>
    %184 = vector.shape_cast %183 : vector<1x1x4x8x4xf32> to vector<4x8x4xf32>
    %c3_131 = arith.constant 3 : index
    %c0_132 = arith.constant 0 : index
    %185 = vector.load %arg3[%c3_131, %c0_132] : memref<18x4xf32, #tpu.memory_space<vmem>>, vector<1x4xf32>
    %186 = vector.shape_cast %185 : vector<1x4xf32> to vector<1x1x4xf32>
    %187 = vector.broadcast %186 : vector<1x1x4xf32> to vector<4x8x4xf32>
    %188 = arith.mulf %184, %187 : vector<4x8x4xf32>
    %189 = arith.addf %177, %188 : vector<4x8x4xf32>
    %c12_133 = arith.constant 12 : index
    %c0_134 = arith.constant 0 : index
    %190 = vector.load %arg3[%c12_133, %c0_134] : memref<18x4xf32, #tpu.memory_space<vmem>>, vector<1x4xf32>
    %191 = vector.shape_cast %190 : vector<1x4xf32> to vector<1x1x4xf32>
    %192 = vector.broadcast %191 : vector<1x1x4xf32> to vector<4x8x4xf32>
    %193 = arith.mulf %184, %192 : vector<4x8x4xf32>
    %194 = arith.addf %182, %193 : vector<4x8x4xf32>
    %c0_135 = arith.constant 0 : index
    %c2_136 = arith.constant 2 : index
    %c1_137 = arith.constant 1 : index
    %c1_138 = arith.constant 1 : index
    %c0_139 = arith.constant 0 : index
    %195 = vector.load %arg2[%c0_135, %c2_136, %c1_137, %c1_138, %c0_139] : memref<1x4x6x9x4xf32, #tpu.memory_space<vmem>>, vector<1x1x4x8x4xf32>
    %196 = vector.shape_cast %195 : vector<1x1x4x8x4xf32> to vector<4x8x4xf32>
    %c4_140 = arith.constant 4 : index
    %c0_141 = arith.constant 0 : index
    %197 = vector.load %arg3[%c4_140, %c0_141] : memref<18x4xf32, #tpu.memory_space<vmem>>, vector<1x4xf32>
    %198 = vector.shape_cast %197 : vector<1x4xf32> to vector<1x1x4xf32>
    %199 = vector.broadcast %198 : vector<1x1x4xf32> to vector<4x8x4xf32>
    %200 = arith.mulf %196, %199 : vector<4x8x4xf32>
    %201 = arith.addf %189, %200 : vector<4x8x4xf32>
    %c13_142 = arith.constant 13 : index
    %c0_143 = arith.constant 0 : index
    %202 = vector.load %arg3[%c13_142, %c0_143] : memref<18x4xf32, #tpu.memory_space<vmem>>, vector<1x4xf32>
    %203 = vector.shape_cast %202 : vector<1x4xf32> to vector<1x1x4xf32>
    %204 = vector.broadcast %203 : vector<1x1x4xf32> to vector<4x8x4xf32>
    %205 = arith.mulf %196, %204 : vector<4x8x4xf32>
    %206 = arith.addf %194, %205 : vector<4x8x4xf32>
    %c0_144 = arith.constant 0 : index
    %c3_145 = arith.constant 3 : index
    %c1_146 = arith.constant 1 : index
    %c1_147 = arith.constant 1 : index
    %c0_148 = arith.constant 0 : index
    %207 = vector.load %arg2[%c0_144, %c3_145, %c1_146, %c1_147, %c0_148] : memref<1x4x6x9x4xf32, #tpu.memory_space<vmem>>, vector<1x1x4x8x4xf32>
    %208 = vector.shape_cast %207 : vector<1x1x4x8x4xf32> to vector<4x8x4xf32>
    %c5_149 = arith.constant 5 : index
    %c0_150 = arith.constant 0 : index
    %209 = vector.load %arg3[%c5_149, %c0_150] : memref<18x4xf32, #tpu.memory_space<vmem>>, vector<1x4xf32>
    %210 = vector.shape_cast %209 : vector<1x4xf32> to vector<1x1x4xf32>
    %211 = vector.broadcast %210 : vector<1x1x4xf32> to vector<4x8x4xf32>
    %212 = arith.mulf %208, %211 : vector<4x8x4xf32>
    %213 = arith.addf %201, %212 : vector<4x8x4xf32>
    %c14_151 = arith.constant 14 : index
    %c0_152 = arith.constant 0 : index
    %214 = vector.load %arg3[%c14_151, %c0_152] : memref<18x4xf32, #tpu.memory_space<vmem>>, vector<1x4xf32>
    %215 = vector.shape_cast %214 : vector<1x4xf32> to vector<1x1x4xf32>
    %216 = vector.broadcast %215 : vector<1x1x4xf32> to vector<4x8x4xf32>
    %217 = arith.mulf %208, %216 : vector<4x8x4xf32>
    %218 = arith.addf %206, %217 : vector<4x8x4xf32>
    %c0_153 = arith.constant 0 : index
    %c1_154 = arith.constant 1 : index
    %c2_155 = arith.constant 2 : index
    %c0_156 = arith.constant 0 : index
    %c0_157 = arith.constant 0 : index
    %219 = vector.load %arg2[%c0_153, %c1_154, %c2_155, %c0_156, %c0_157] : memref<1x4x6x9x4xf32, #tpu.memory_space<vmem>>, vector<1x1x4x8x4xf32>
    %220 = vector.shape_cast %219 : vector<1x1x4x8x4xf32> to vector<4x8x4xf32>
    %c6_158 = arith.constant 6 : index
    %c0_159 = arith.constant 0 : index
    %221 = vector.load %arg3[%c6_158, %c0_159] : memref<18x4xf32, #tpu.memory_space<vmem>>, vector<1x4xf32>
    %222 = vector.shape_cast %221 : vector<1x4xf32> to vector<1x1x4xf32>
    %223 = vector.broadcast %222 : vector<1x1x4xf32> to vector<4x8x4xf32>
    %224 = arith.mulf %220, %223 : vector<4x8x4xf32>
    %225 = arith.addf %213, %224 : vector<4x8x4xf32>
    %c15_160 = arith.constant 15 : index
    %c0_161 = arith.constant 0 : index
    %226 = vector.load %arg3[%c15_160, %c0_161] : memref<18x4xf32, #tpu.memory_space<vmem>>, vector<1x4xf32>
    %227 = vector.shape_cast %226 : vector<1x4xf32> to vector<1x1x4xf32>
    %228 = vector.broadcast %227 : vector<1x1x4xf32> to vector<4x8x4xf32>
    %229 = arith.mulf %220, %228 : vector<4x8x4xf32>
    %230 = arith.addf %218, %229 : vector<4x8x4xf32>
    %c0_162 = arith.constant 0 : index
    %c0_163 = arith.constant 0 : index
    %c2_164 = arith.constant 2 : index
    %c1_165 = arith.constant 1 : index
    %c0_166 = arith.constant 0 : index
    %231 = vector.load %arg2[%c0_162, %c0_163, %c2_164, %c1_165, %c0_166] : memref<1x4x6x9x4xf32, #tpu.memory_space<vmem>>, vector<1x1x4x8x4xf32>
    %232 = vector.shape_cast %231 : vector<1x1x4x8x4xf32> to vector<4x8x4xf32>
    %c7_167 = arith.constant 7 : index
    %c0_168 = arith.constant 0 : index
    %233 = vector.load %arg3[%c7_167, %c0_168] : memref<18x4xf32, #tpu.memory_space<vmem>>, vector<1x4xf32>
    %234 = vector.shape_cast %233 : vector<1x4xf32> to vector<1x1x4xf32>
    %235 = vector.broadcast %234 : vector<1x1x4xf32> to vector<4x8x4xf32>
    %236 = arith.mulf %232, %235 : vector<4x8x4xf32>
    %237 = arith.addf %225, %236 : vector<4x8x4xf32>
    %c16_169 = arith.constant 16 : index
    %c0_170 = arith.constant 0 : index
    %238 = vector.load %arg3[%c16_169, %c0_170] : memref<18x4xf32, #tpu.memory_space<vmem>>, vector<1x4xf32>
    %239 = vector.shape_cast %238 : vector<1x4xf32> to vector<1x1x4xf32>
    %240 = vector.broadcast %239 : vector<1x1x4xf32> to vector<4x8x4xf32>
    %241 = arith.mulf %232, %240 : vector<4x8x4xf32>
    %242 = arith.addf %230, %241 : vector<4x8x4xf32>
    %c0_171 = arith.constant 0 : index
    %c1_172 = arith.constant 1 : index
    %c2_173 = arith.constant 2 : index
    %c1_174 = arith.constant 1 : index
    %c0_175 = arith.constant 0 : index
    %243 = vector.load %arg2[%c0_171, %c1_172, %c2_173, %c1_174, %c0_175] : memref<1x4x6x9x4xf32, #tpu.memory_space<vmem>>, vector<1x1x4x8x4xf32>
    %244 = vector.shape_cast %243 : vector<1x1x4x8x4xf32> to vector<4x8x4xf32>
    %c8_176 = arith.constant 8 : index
    %c0_177 = arith.constant 0 : index
    %245 = vector.load %arg3[%c8_176, %c0_177] : memref<18x4xf32, #tpu.memory_space<vmem>>, vector<1x4xf32>
    %246 = vector.shape_cast %245 : vector<1x4xf32> to vector<1x1x4xf32>
    %247 = vector.broadcast %246 : vector<1x1x4xf32> to vector<4x8x4xf32>
    %248 = arith.mulf %244, %247 : vector<4x8x4xf32>
    %249 = arith.addf %237, %248 : vector<4x8x4xf32>
    %c17_178 = arith.constant 17 : index
    %c0_179 = arith.constant 0 : index
    %250 = vector.load %arg3[%c17_178, %c0_179] : memref<18x4xf32, #tpu.memory_space<vmem>>, vector<1x4xf32>
    %251 = vector.shape_cast %250 : vector<1x4xf32> to vector<1x1x4xf32>
    %252 = vector.broadcast %251 : vector<1x1x4xf32> to vector<4x8x4xf32>
    %253 = arith.mulf %244, %252 : vector<4x8x4xf32>
    %254 = arith.addf %242, %253 : vector<4x8x4xf32>
    %c1_180 = arith.constant 1 : index
    %c1_181 = arith.constant 1 : index
    %c1_182 = arith.constant 1 : index
    %c0_183 = arith.constant 0 : index
    %255 = vector.load %arg12[%c1_180, %c1_181, %c1_182, %c0_183] : memref<8x5x9x4xf32, #tpu.memory_space<vmem>>, vector<1x4x8x4xf32>
    %256 = vector.shape_cast %255 : vector<1x4x8x4xf32> to vector<4x8x4xf32>
    %257 = vector.shape_cast %249 : vector<4x8x4xf32> to vector<1x4x8x4xf32>
    tpu.vector_store %arg12[%c1_180, %c1_181, %c1_182, %c0_183], %257 {strides = array<i32>} : memref<8x5x9x4xf32, #tpu.memory_space<vmem>>, vector<1x4x8x4xf32>,
    %258 = arith.maximumf %135, %249 : vector<4x8x4xf32>
    %c5_184 = arith.constant 5 : index
    %c1_185 = arith.constant 1 : index
    %c1_186 = arith.constant 1 : index
    %c0_187 = arith.constant 0 : index
    %259 = vector.load %arg12[%c5_184, %c1_185, %c1_186, %c0_187] : memref<8x5x9x4xf32, #tpu.memory_space<vmem>>, vector<1x4x8x4xf32>
    %260 = vector.shape_cast %259 : vector<1x4x8x4xf32> to vector<4x8x4xf32>
    %261 = vector.shape_cast %254 : vector<4x8x4xf32> to vector<1x4x8x4xf32>
    tpu.vector_store %arg12[%c5_184, %c1_185, %c1_186, %c0_187], %261 {strides = array<i32>} : memref<8x5x9x4xf32, #tpu.memory_space<vmem>>, vector<1x4x8x4xf32>,
    %262 = arith.maximumf %140, %254 : vector<4x8x4xf32>
    %c0_188 = arith.constant 0 : index
    %c2_189 = arith.constant 2 : index
    %c1_190 = arith.constant 1 : index
    %c0_191 = arith.constant 0 : index
    %c0_192 = arith.constant 0 : index
    %263 = vector.load %arg2[%c0_188, %c2_189, %c1_190, %c0_191, %c0_192] : memref<1x4x6x9x4xf32, #tpu.memory_space<vmem>>, vector<1x1x4x8x4xf32>
    %264 = vector.shape_cast %263 : vector<1x1x4x8x4xf32> to vector<4x8x4xf32>
    %c0_193 = arith.constant 0 : index
    %c0_194 = arith.constant 0 : index
    %265 = vector.load %arg3[%c0_193, %c0_194] : memref<18x4xf32, #tpu.memory_space<vmem>>, vector<1x4xf32>
    %266 = vector.shape_cast %265 : vector<1x4xf32> to vector<1x1x4xf32>
    %267 = vector.broadcast %266 : vector<1x1x4xf32> to vector<4x8x4xf32>
    %268 = arith.mulf %264, %267 : vector<4x8x4xf32>
    %269 = arith.addf %4, %268 : vector<4x8x4xf32>
    %c9_195 = arith.constant 9 : index
    %c0_196 = arith.constant 0 : index
    %270 = vector.load %arg3[%c9_195, %c0_196] : memref<18x4xf32, #tpu.memory_space<vmem>>, vector<1x4xf32>
    %271 = vector.shape_cast %270 : vector<1x4xf32> to vector<1x1x4xf32>
    %272 = vector.broadcast %271 : vector<1x1x4xf32> to vector<4x8x4xf32>
    %273 = arith.mulf %264, %272 : vector<4x8x4xf32>
    %274 = arith.addf %9, %273 : vector<4x8x4xf32>
    %c0_197 = arith.constant 0 : index
    %c3_198 = arith.constant 3 : index
    %c1_199 = arith.constant 1 : index
    %c0_200 = arith.constant 0 : index
    %c0_201 = arith.constant 0 : index
    %275 = vector.load %arg2[%c0_197, %c3_198, %c1_199, %c0_200, %c0_201] : memref<1x4x6x9x4xf32, #tpu.memory_space<vmem>>, vector<1x1x4x8x4xf32>
    %276 = vector.shape_cast %275 : vector<1x1x4x8x4xf32> to vector<4x8x4xf32>
    %c1_202 = arith.constant 1 : index
    %c0_203 = arith.constant 0 : index
    %277 = vector.load %arg3[%c1_202, %c0_203] : memref<18x4xf32, #tpu.memory_space<vmem>>, vector<1x4xf32>
    %278 = vector.shape_cast %277 : vector<1x4xf32> to vector<1x1x4xf32>
    %279 = vector.broadcast %278 : vector<1x1x4xf32> to vector<4x8x4xf32>
    %280 = arith.mulf %276, %279 : vector<4x8x4xf32>
    %281 = arith.addf %269, %280 : vector<4x8x4xf32>
    %c10_204 = arith.constant 10 : index
    %c0_205 = arith.constant 0 : index
    %282 = vector.load %arg3[%c10_204, %c0_205] : memref<18x4xf32, #tpu.memory_space<vmem>>, vector<1x4xf32>
    %283 = vector.shape_cast %282 : vector<1x4xf32> to vector<1x1x4xf32>
    %284 = vector.broadcast %283 : vector<1x1x4xf32> to vector<4x8x4xf32>
    %285 = arith.mulf %276, %284 : vector<4x8x4xf32>
    %286 = arith.addf %274, %285 : vector<4x8x4xf32>
    %c0_206 = arith.constant 0 : index
    %c2_207 = arith.constant 2 : index
    %c1_208 = arith.constant 1 : index
    %c1_209 = arith.constant 1 : index
    %c0_210 = arith.constant 0 : index
    %287 = vector.load %arg2[%c0_206, %c2_207, %c1_208, %c1_209, %c0_210] : memref<1x4x6x9x4xf32, #tpu.memory_space<vmem>>, vector<1x1x4x8x4xf32>
    %288 = vector.shape_cast %287 : vector<1x1x4x8x4xf32> to vector<4x8x4xf32>
    %c2_211 = arith.constant 2 : index
    %c0_212 = arith.constant 0 : index
    %289 = vector.load %arg3[%c2_211, %c0_212] : memref<18x4xf32, #tpu.memory_space<vmem>>, vector<1x4xf32>
    %290 = vector.shape_cast %289 : vector<1x4xf32> to vector<1x1x4xf32>
    %291 = vector.broadcast %290 : vector<1x1x4xf32> to vector<4x8x4xf32>
    %292 = arith.mulf %288, %291 : vector<4x8x4xf32>
    %293 = arith.addf %281, %292 : vector<4x8x4xf32>
    %c11_213 = arith.constant 11 : index
    %c0_214 = arith.constant 0 : index
    %294 = vector.load %arg3[%c11_213, %c0_214] : memref<18x4xf32, #tpu.memory_space<vmem>>, vector<1x4xf32>
    %295 = vector.shape_cast %294 : vector<1x4xf32> to vector<1x1x4xf32>
    %296 = vector.broadcast %295 : vector<1x1x4xf32> to vector<4x8x4xf32>
    %297 = arith.mulf %288, %296 : vector<4x8x4xf32>
    %298 = arith.addf %286, %297 : vector<4x8x4xf32>
    %c0_215 = arith.constant 0 : index
    %c0_216 = arith.constant 0 : index
    %c2_217 = arith.constant 2 : index
    %c0_218 = arith.constant 0 : index
    %c0_219 = arith.constant 0 : index
    %299 = vector.load %arg2[%c0_215, %c0_216, %c2_217, %c0_218, %c0_219] : memref<1x4x6x9x4xf32, #tpu.memory_space<vmem>>, vector<1x1x4x8x4xf32>
    %300 = vector.shape_cast %299 : vector<1x1x4x8x4xf32> to vector<4x8x4xf32>
    %c3_220 = arith.constant 3 : index
    %c0_221 = arith.constant 0 : index
    %301 = vector.load %arg3[%c3_220, %c0_221] : memref<18x4xf32, #tpu.memory_space<vmem>>, vector<1x4xf32>
    %302 = vector.shape_cast %301 : vector<1x4xf32> to vector<1x1x4xf32>
    %303 = vector.broadcast %302 : vector<1x1x4xf32> to vector<4x8x4xf32>
    %304 = arith.mulf %300, %303 : vector<4x8x4xf32>
    %305 = arith.addf %293, %304 : vector<4x8x4xf32>
    %c12_222 = arith.constant 12 : index
    %c0_223 = arith.constant 0 : index
    %306 = vector.load %arg3[%c12_222, %c0_223] : memref<18x4xf32, #tpu.memory_space<vmem>>, vector<1x4xf32>
    %307 = vector.shape_cast %306 : vector<1x4xf32> to vector<1x1x4xf32>
    %308 = vector.broadcast %307 : vector<1x1x4xf32> to vector<4x8x4xf32>
    %309 = arith.mulf %300, %308 : vector<4x8x4xf32>
    %310 = arith.addf %298, %309 : vector<4x8x4xf32>
    %c0_224 = arith.constant 0 : index
    %c1_225 = arith.constant 1 : index
    %c2_226 = arith.constant 2 : index
    %c0_227 = arith.constant 0 : index
    %c0_228 = arith.constant 0 : index
    %311 = vector.load %arg2[%c0_224, %c1_225, %c2_226, %c0_227, %c0_228] : memref<1x4x6x9x4xf32, #tpu.memory_space<vmem>>, vector<1x1x4x8x4xf32>
    %312 = vector.shape_cast %311 : vector<1x1x4x8x4xf32> to vector<4x8x4xf32>
    %c4_229 = arith.constant 4 : index
    %c0_230 = arith.constant 0 : index
    %313 = vector.load %arg3[%c4_229, %c0_230] : memref<18x4xf32, #tpu.memory_space<vmem>>, vector<1x4xf32>
    %314 = vector.shape_cast %313 : vector<1x4xf32> to vector<1x1x4xf32>
    %315 = vector.broadcast %314 : vector<1x1x4xf32> to vector<4x8x4xf32>
    %316 = arith.mulf %312, %315 : vector<4x8x4xf32>
    %317 = arith.addf %305, %316 : vector<4x8x4xf32>
    %c13_231 = arith.constant 13 : index
    %c0_232 = arith.constant 0 : index
    %318 = vector.load %arg3[%c13_231, %c0_232] : memref<18x4xf32, #tpu.memory_space<vmem>>, vector<1x4xf32>
    %319 = vector.shape_cast %318 : vector<1x4xf32> to vector<1x1x4xf32>
    %320 = vector.broadcast %319 : vector<1x1x4xf32> to vector<4x8x4xf32>
    %321 = arith.mulf %312, %320 : vector<4x8x4xf32>
    %322 = arith.addf %310, %321 : vector<4x8x4xf32>
    %c0_233 = arith.constant 0 : index
    %c0_234 = arith.constant 0 : index
    %c2_235 = arith.constant 2 : index
    %c1_236 = arith.constant 1 : index
    %c0_237 = arith.constant 0 : index
    %323 = vector.load %arg2[%c0_233, %c0_234, %c2_235, %c1_236, %c0_237] : memref<1x4x6x9x4xf32, #tpu.memory_space<vmem>>, vector<1x1x4x8x4xf32>
    %324 = vector.shape_cast %323 : vector<1x1x4x8x4xf32> to vector<4x8x4xf32>
    %c5_238 = arith.constant 5 : index
    %c0_239 = arith.constant 0 : index
    %325 = vector.load %arg3[%c5_238, %c0_239] : memref<18x4xf32, #tpu.memory_space<vmem>>, vector<1x4xf32>
    %326 = vector.shape_cast %325 : vector<1x4xf32> to vector<1x1x4xf32>
    %327 = vector.broadcast %326 : vector<1x1x4xf32> to vector<4x8x4xf32>
    %328 = arith.mulf %324, %327 : vector<4x8x4xf32>
    %329 = arith.addf %317, %328 : vector<4x8x4xf32>
    %c14_240 = arith.constant 14 : index
    %c0_241 = arith.constant 0 : index
    %330 = vector.load %arg3[%c14_240, %c0_241] : memref<18x4xf32, #tpu.memory_space<vmem>>, vector<1x4xf32>
    %331 = vector.shape_cast %330 : vector<1x4xf32> to vector<1x1x4xf32>
    %332 = vector.broadcast %331 : vector<1x1x4xf32> to vector<4x8x4xf32>
    %333 = arith.mulf %324, %332 : vector<4x8x4xf32>
    %334 = arith.addf %322, %333 : vector<4x8x4xf32>
    %c0_242 = arith.constant 0 : index
    %c2_243 = arith.constant 2 : index
    %c2_244 = arith.constant 2 : index
    %c0_245 = arith.constant 0 : index
    %c0_246 = arith.constant 0 : index
    %335 = vector.load %arg2[%c0_242, %c2_243, %c2_244, %c0_245, %c0_246] : memref<1x4x6x9x4xf32, #tpu.memory_space<vmem>>, vector<1x1x4x8x4xf32>
    %336 = vector.shape_cast %335 : vector<1x1x4x8x4xf32> to vector<4x8x4xf32>
    %c6_247 = arith.constant 6 : index
    %c0_248 = arith.constant 0 : index
    %337 = vector.load %arg3[%c6_247, %c0_248] : memref<18x4xf32, #tpu.memory_space<vmem>>, vector<1x4xf32>
    %338 = vector.shape_cast %337 : vector<1x4xf32> to vector<1x1x4xf32>
    %339 = vector.broadcast %338 : vector<1x1x4xf32> to vector<4x8x4xf32>
    %340 = arith.mulf %336, %339 : vector<4x8x4xf32>
    %341 = arith.addf %329, %340 : vector<4x8x4xf32>
    %c15_249 = arith.constant 15 : index
    %c0_250 = arith.constant 0 : index
    %342 = vector.load %arg3[%c15_249, %c0_250] : memref<18x4xf32, #tpu.memory_space<vmem>>, vector<1x4xf32>
    %343 = vector.shape_cast %342 : vector<1x4xf32> to vector<1x1x4xf32>
    %344 = vector.broadcast %343 : vector<1x1x4xf32> to vector<4x8x4xf32>
    %345 = arith.mulf %336, %344 : vector<4x8x4xf32>
    %346 = arith.addf %334, %345 : vector<4x8x4xf32>
    %c0_251 = arith.constant 0 : index
    %c3_252 = arith.constant 3 : index
    %c2_253 = arith.constant 2 : index
    %c0_254 = arith.constant 0 : index
    %c0_255 = arith.constant 0 : index
    %347 = vector.load %arg2[%c0_251, %c3_252, %c2_253, %c0_254, %c0_255] : memref<1x4x6x9x4xf32, #tpu.memory_space<vmem>>, vector<1x1x4x8x4xf32>
    %348 = vector.shape_cast %347 : vector<1x1x4x8x4xf32> to vector<4x8x4xf32>
    %c7_256 = arith.constant 7 : index
    %c0_257 = arith.constant 0 : index
    %349 = vector.load %arg3[%c7_256, %c0_257] : memref<18x4xf32, #tpu.memory_space<vmem>>, vector<1x4xf32>
    %350 = vector.shape_cast %349 : vector<1x4xf32> to vector<1x1x4xf32>
    %351 = vector.broadcast %350 : vector<1x1x4xf32> to vector<4x8x4xf32>
    %352 = arith.mulf %348, %351 : vector<4x8x4xf32>
    %353 = arith.addf %341, %352 : vector<4x8x4xf32>
    %c16_258 = arith.constant 16 : index
    %c0_259 = arith.constant 0 : index
    %354 = vector.load %arg3[%c16_258, %c0_259] : memref<18x4xf32, #tpu.memory_space<vmem>>, vector<1x4xf32>
    %355 = vector.shape_cast %354 : vector<1x4xf32> to vector<1x1x4xf32>
    %356 = vector.broadcast %355 : vector<1x1x4xf32> to vector<4x8x4xf32>
    %357 = arith.mulf %348, %356 : vector<4x8x4xf32>
    %358 = arith.addf %346, %357 : vector<4x8x4xf32>
    %c0_260 = arith.constant 0 : index
    %c2_261 = arith.constant 2 : index
    %c2_262 = arith.constant 2 : index
    %c1_263 = arith.constant 1 : index
    %c0_264 = arith.constant 0 : index
    %359 = vector.load %arg2[%c0_260, %c2_261, %c2_262, %c1_263, %c0_264] : memref<1x4x6x9x4xf32, #tpu.memory_space<vmem>>, vector<1x1x4x8x4xf32>
    %360 = vector.shape_cast %359 : vector<1x1x4x8x4xf32> to vector<4x8x4xf32>
    %c8_265 = arith.constant 8 : index
    %c0_266 = arith.constant 0 : index
    %361 = vector.load %arg3[%c8_265, %c0_266] : memref<18x4xf32, #tpu.memory_space<vmem>>, vector<1x4xf32>
    %362 = vector.shape_cast %361 : vector<1x4xf32> to vector<1x1x4xf32>
    %363 = vector.broadcast %362 : vector<1x1x4xf32> to vector<4x8x4xf32>
    %364 = arith.mulf %360, %363 : vector<4x8x4xf32>
    %365 = arith.addf %353, %364 : vector<4x8x4xf32>
    %c17_267 = arith.constant 17 : index
    %c0_268 = arith.constant 0 : index
    %366 = vector.load %arg3[%c17_267, %c0_268] : memref<18x4xf32, #tpu.memory_space<vmem>>, vector<1x4xf32>
    %367 = vector.shape_cast %366 : vector<1x4xf32> to vector<1x1x4xf32>
    %368 = vector.broadcast %367 : vector<1x1x4xf32> to vector<4x8x4xf32>
    %369 = arith.mulf %360, %368 : vector<4x8x4xf32>
    %370 = arith.addf %358, %369 : vector<4x8x4xf32>
    %c2_269 = arith.constant 2 : index
    %c1_270 = arith.constant 1 : index
    %c1_271 = arith.constant 1 : index
    %c0_272 = arith.constant 0 : index
    %371 = vector.load %arg12[%c2_269, %c1_270, %c1_271, %c0_272] : memref<8x5x9x4xf32, #tpu.memory_space<vmem>>, vector<1x4x8x4xf32>
    %372 = vector.shape_cast %371 : vector<1x4x8x4xf32> to vector<4x8x4xf32>
    %373 = vector.shape_cast %365 : vector<4x8x4xf32> to vector<1x4x8x4xf32>
    tpu.vector_store %arg12[%c2_269, %c1_270, %c1_271, %c0_272], %373 {strides = array<i32>} : memref<8x5x9x4xf32, #tpu.memory_space<vmem>>, vector<1x4x8x4xf32>,
    %374 = arith.maximumf %258, %365 : vector<4x8x4xf32>
    %c6_273 = arith.constant 6 : index
    %c1_274 = arith.constant 1 : index
    %c1_275 = arith.constant 1 : index
    %c0_276 = arith.constant 0 : index
    %375 = vector.load %arg12[%c6_273, %c1_274, %c1_275, %c0_276] : memref<8x5x9x4xf32, #tpu.memory_space<vmem>>, vector<1x4x8x4xf32>
    %376 = vector.shape_cast %375 : vector<1x4x8x4xf32> to vector<4x8x4xf32>
    %377 = vector.shape_cast %370 : vector<4x8x4xf32> to vector<1x4x8x4xf32>
    tpu.vector_store %arg12[%c6_273, %c1_274, %c1_275, %c0_276], %377 {strides = array<i32>} : memref<8x5x9x4xf32, #tpu.memory_space<vmem>>, vector<1x4x8x4xf32>,
    %378 = arith.maximumf %262, %370 : vector<4x8x4xf32>
    %c0_277 = arith.constant 0 : index
    %c3_278 = arith.constant 3 : index
    %c1_279 = arith.constant 1 : index
    %c0_280 = arith.constant 0 : index
    %c0_281 = arith.constant 0 : index
    %379 = vector.load %arg2[%c0_277, %c3_278, %c1_279, %c0_280, %c0_281] : memref<1x4x6x9x4xf32, #tpu.memory_space<vmem>>, vector<1x1x4x8x4xf32>
    %380 = vector.shape_cast %379 : vector<1x1x4x8x4xf32> to vector<4x8x4xf32>
    %c0_282 = arith.constant 0 : index
    %c0_283 = arith.constant 0 : index
    %381 = vector.load %arg3[%c0_282, %c0_283] : memref<18x4xf32, #tpu.memory_space<vmem>>, vector<1x4xf32>
    %382 = vector.shape_cast %381 : vector<1x4xf32> to vector<1x1x4xf32>
    %383 = vector.broadcast %382 : vector<1x1x4xf32> to vector<4x8x4xf32>
    %384 = arith.mulf %380, %383 : vector<4x8x4xf32>
    %385 = arith.addf %4, %384 : vector<4x8x4xf32>
    %c9_284 = arith.constant 9 : index
    %c0_285 = arith.constant 0 : index
    %386 = vector.load %arg3[%c9_284, %c0_285] : memref<18x4xf32, #tpu.memory_space<vmem>>, vector<1x4xf32>
    %387 = vector.shape_cast %386 : vector<1x4xf32> to vector<1x1x4xf32>
    %388 = vector.broadcast %387 : vector<1x1x4xf32> to vector<4x8x4xf32>
    %389 = arith.mulf %380, %388 : vector<4x8x4xf32>
    %390 = arith.addf %9, %389 : vector<4x8x4xf32>
    %c0_286 = arith.constant 0 : index
    %c2_287 = arith.constant 2 : index
    %c1_288 = arith.constant 1 : index
    %c1_289 = arith.constant 1 : index
    %c0_290 = arith.constant 0 : index
    %391 = vector.load %arg2[%c0_286, %c2_287, %c1_288, %c1_289, %c0_290] : memref<1x4x6x9x4xf32, #tpu.memory_space<vmem>>, vector<1x1x4x8x4xf32>
    %392 = vector.shape_cast %391 : vector<1x1x4x8x4xf32> to vector<4x8x4xf32>
    %c1_291 = arith.constant 1 : index
    %c0_292 = arith.constant 0 : index
    %393 = vector.load %arg3[%c1_291, %c0_292] : memref<18x4xf32, #tpu.memory_space<vmem>>, vector<1x4xf32>
    %394 = vector.shape_cast %393 : vector<1x4xf32> to vector<1x1x4xf32>
    %395 = vector.broadcast %394 : vector<1x1x4xf32> to vector<4x8x4xf32>
    %396 = arith.mulf %392, %395 : vector<4x8x4xf32>
    %397 = arith.addf %385, %396 : vector<4x8x4xf32>
    %c10_293 = arith.constant 10 : index
    %c0_294 = arith.constant 0 : index
    %398 = vector.load %arg3[%c10_293, %c0_294] : memref<18x4xf32, #tpu.memory_space<vmem>>, vector<1x4xf32>
    %399 = vector.shape_cast %398 : vector<1x4xf32> to vector<1x1x4xf32>
    %400 = vector.broadcast %399 : vector<1x1x4xf32> to vector<4x8x4xf32>
    %401 = arith.mulf %392, %400 : vector<4x8x4xf32>
    %402 = arith.addf %390, %401 : vector<4x8x4xf32>
    %c0_295 = arith.constant 0 : index
    %c3_296 = arith.constant 3 : index
    %c1_297 = arith.constant 1 : index
    %c1_298 = arith.constant 1 : index
    %c0_299 = arith.constant 0 : index
    %403 = vector.load %arg2[%c0_295, %c3_296, %c1_297, %c1_298, %c0_299] : memref<1x4x6x9x4xf32, #tpu.memory_space<vmem>>, vector<1x1x4x8x4xf32>
    %404 = vector.shape_cast %403 : vector<1x1x4x8x4xf32> to vector<4x8x4xf32>
    %c2_300 = arith.constant 2 : index
    %c0_301 = arith.constant 0 : index
    %405 = vector.load %arg3[%c2_300, %c0_301] : memref<18x4xf32, #tpu.memory_space<vmem>>, vector<1x4xf32>
    %406 = vector.shape_cast %405 : vector<1x4xf32> to vector<1x1x4xf32>
    %407 = vector.broadcast %406 : vector<1x1x4xf32> to vector<4x8x4xf32>
    %408 = arith.mulf %404, %407 : vector<4x8x4xf32>
    %409 = arith.addf %397, %408 : vector<4x8x4xf32>
    %c11_302 = arith.constant 11 : index
    %c0_303 = arith.constant 0 : index
    %410 = vector.load %arg3[%c11_302, %c0_303] : memref<18x4xf32, #tpu.memory_space<vmem>>, vector<1x4xf32>
    %411 = vector.shape_cast %410 : vector<1x4xf32> to vector<1x1x4xf32>
    %412 = vector.broadcast %411 : vector<1x1x4xf32> to vector<4x8x4xf32>
    %413 = arith.mulf %404, %412 : vector<4x8x4xf32>
    %414 = arith.addf %402, %413 : vector<4x8x4xf32>
    %c0_304 = arith.constant 0 : index
    %c1_305 = arith.constant 1 : index
    %c2_306 = arith.constant 2 : index
    %c0_307 = arith.constant 0 : index
    %c0_308 = arith.constant 0 : index
    %415 = vector.load %arg2[%c0_304, %c1_305, %c2_306, %c0_307, %c0_308] : memref<1x4x6x9x4xf32, #tpu.memory_space<vmem>>, vector<1x1x4x8x4xf32>
    %416 = vector.shape_cast %415 : vector<1x1x4x8x4xf32> to vector<4x8x4xf32>
    %c3_309 = arith.constant 3 : index
    %c0_310 = arith.constant 0 : index
    %417 = vector.load %arg3[%c3_309, %c0_310] : memref<18x4xf32, #tpu.memory_space<vmem>>, vector<1x4xf32>
    %418 = vector.shape_cast %417 : vector<1x4xf32> to vector<1x1x4xf32>
    %419 = vector.broadcast %418 : vector<1x1x4xf32> to vector<4x8x4xf32>
    %420 = arith.mulf %416, %419 : vector<4x8x4xf32>
    %421 = arith.addf %409, %420 : vector<4x8x4xf32>
    %c12_311 = arith.constant 12 : index
    %c0_312 = arith.constant 0 : index
    %422 = vector.load %arg3[%c12_311, %c0_312] : memref<18x4xf32, #tpu.memory_space<vmem>>, vector<1x4xf32>
    %423 = vector.shape_cast %422 : vector<1x4xf32> to vector<1x1x4xf32>
    %424 = vector.broadcast %423 : vector<1x1x4xf32> to vector<4x8x4xf32>
    %425 = arith.mulf %416, %424 : vector<4x8x4xf32>
    %426 = arith.addf %414, %425 : vector<4x8x4xf32>
    %c0_313 = arith.constant 0 : index
    %c0_314 = arith.constant 0 : index
    %c2_315 = arith.constant 2 : index
    %c1_316 = arith.constant 1 : index
    %c0_317 = arith.constant 0 : index
    %427 = vector.load %arg2[%c0_313, %c0_314, %c2_315, %c1_316, %c0_317] : memref<1x4x6x9x4xf32, #tpu.memory_space<vmem>>, vector<1x1x4x8x4xf32>
    %428 = vector.shape_cast %427 : vector<1x1x4x8x4xf32> to vector<4x8x4xf32>
    %c4_318 = arith.constant 4 : index
    %c0_319 = arith.constant 0 : index
    %429 = vector.load %arg3[%c4_318, %c0_319] : memref<18x4xf32, #tpu.memory_space<vmem>>, vector<1x4xf32>
    %430 = vector.shape_cast %429 : vector<1x4xf32> to vector<1x1x4xf32>
    %431 = vector.broadcast %430 : vector<1x1x4xf32> to vector<4x8x4xf32>
    %432 = arith.mulf %428, %431 : vector<4x8x4xf32>
    %433 = arith.addf %421, %432 : vector<4x8x4xf32>
    %c13_320 = arith.constant 13 : index
    %c0_321 = arith.constant 0 : index
    %434 = vector.load %arg3[%c13_320, %c0_321] : memref<18x4xf32, #tpu.memory_space<vmem>>, vector<1x4xf32>
    %435 = vector.shape_cast %434 : vector<1x4xf32> to vector<1x1x4xf32>
    %436 = vector.broadcast %435 : vector<1x1x4xf32> to vector<4x8x4xf32>
    %437 = arith.mulf %428, %436 : vector<4x8x4xf32>
    %438 = arith.addf %426, %437 : vector<4x8x4xf32>
    %c0_322 = arith.constant 0 : index
    %c1_323 = arith.constant 1 : index
    %c2_324 = arith.constant 2 : index
    %c1_325 = arith.constant 1 : index
    %c0_326 = arith.constant 0 : index
    %439 = vector.load %arg2[%c0_322, %c1_323, %c2_324, %c1_325, %c0_326] : memref<1x4x6x9x4xf32, #tpu.memory_space<vmem>>, vector<1x1x4x8x4xf32>
    %440 = vector.shape_cast %439 : vector<1x1x4x8x4xf32> to vector<4x8x4xf32>
    %c5_327 = arith.constant 5 : index
    %c0_328 = arith.constant 0 : index
    %441 = vector.load %arg3[%c5_327, %c0_328] : memref<18x4xf32, #tpu.memory_space<vmem>>, vector<1x4xf32>
    %442 = vector.shape_cast %441 : vector<1x4xf32> to vector<1x1x4xf32>
    %443 = vector.broadcast %442 : vector<1x1x4xf32> to vector<4x8x4xf32>
    %444 = arith.mulf %440, %443 : vector<4x8x4xf32>
    %445 = arith.addf %433, %444 : vector<4x8x4xf32>
    %c14_329 = arith.constant 14 : index
    %c0_330 = arith.constant 0 : index
    %446 = vector.load %arg3[%c14_329, %c0_330] : memref<18x4xf32, #tpu.memory_space<vmem>>, vector<1x4xf32>
    %447 = vector.shape_cast %446 : vector<1x4xf32> to vector<1x1x4xf32>
    %448 = vector.broadcast %447 : vector<1x1x4xf32> to vector<4x8x4xf32>
    %449 = arith.mulf %440, %448 : vector<4x8x4xf32>
    %450 = arith.addf %438, %449 : vector<4x8x4xf32>
    %c0_331 = arith.constant 0 : index
    %c3_332 = arith.constant 3 : index
    %c2_333 = arith.constant 2 : index
    %c0_334 = arith.constant 0 : index
    %c0_335 = arith.constant 0 : index
    %451 = vector.load %arg2[%c0_331, %c3_332, %c2_333, %c0_334, %c0_335] : memref<1x4x6x9x4xf32, #tpu.memory_space<vmem>>, vector<1x1x4x8x4xf32>
    %452 = vector.shape_cast %451 : vector<1x1x4x8x4xf32> to vector<4x8x4xf32>
    %c6_336 = arith.constant 6 : index
    %c0_337 = arith.constant 0 : index
    %453 = vector.load %arg3[%c6_336, %c0_337] : memref<18x4xf32, #tpu.memory_space<vmem>>, vector<1x4xf32>
    %454 = vector.shape_cast %453 : vector<1x4xf32> to vector<1x1x4xf32>
    %455 = vector.broadcast %454 : vector<1x1x4xf32> to vector<4x8x4xf32>
    %456 = arith.mulf %452, %455 : vector<4x8x4xf32>
    %457 = arith.addf %445, %456 : vector<4x8x4xf32>
    %c15_338 = arith.constant 15 : index
    %c0_339 = arith.constant 0 : index
    %458 = vector.load %arg3[%c15_338, %c0_339] : memref<18x4xf32, #tpu.memory_space<vmem>>, vector<1x4xf32>
    %459 = vector.shape_cast %458 : vector<1x4xf32> to vector<1x1x4xf32>
    %460 = vector.broadcast %459 : vector<1x1x4xf32> to vector<4x8x4xf32>
    %461 = arith.mulf %452, %460 : vector<4x8x4xf32>
    %462 = arith.addf %450, %461 : vector<4x8x4xf32>
    %c0_340 = arith.constant 0 : index
    %c2_341 = arith.constant 2 : index
    %c2_342 = arith.constant 2 : index
    %c1_343 = arith.constant 1 : index
    %c0_344 = arith.constant 0 : index
    %463 = vector.load %arg2[%c0_340, %c2_341, %c2_342, %c1_343, %c0_344] : memref<1x4x6x9x4xf32, #tpu.memory_space<vmem>>, vector<1x1x4x8x4xf32>
    %464 = vector.shape_cast %463 : vector<1x1x4x8x4xf32> to vector<4x8x4xf32>
    %c7_345 = arith.constant 7 : index
    %c0_346 = arith.constant 0 : index
    %465 = vector.load %arg3[%c7_345, %c0_346] : memref<18x4xf32, #tpu.memory_space<vmem>>, vector<1x4xf32>
    %466 = vector.shape_cast %465 : vector<1x4xf32> to vector<1x1x4xf32>
    %467 = vector.broadcast %466 : vector<1x1x4xf32> to vector<4x8x4xf32>
    %468 = arith.mulf %464, %467 : vector<4x8x4xf32>
    %469 = arith.addf %457, %468 : vector<4x8x4xf32>
    %c16_347 = arith.constant 16 : index
    %c0_348 = arith.constant 0 : index
    %470 = vector.load %arg3[%c16_347, %c0_348] : memref<18x4xf32, #tpu.memory_space<vmem>>, vector<1x4xf32>
    %471 = vector.shape_cast %470 : vector<1x4xf32> to vector<1x1x4xf32>
    %472 = vector.broadcast %471 : vector<1x1x4xf32> to vector<4x8x4xf32>
    %473 = arith.mulf %464, %472 : vector<4x8x4xf32>
    %474 = arith.addf %462, %473 : vector<4x8x4xf32>
    %c0_349 = arith.constant 0 : index
    %c3_350 = arith.constant 3 : index
    %c2_351 = arith.constant 2 : index
    %c1_352 = arith.constant 1 : index
    %c0_353 = arith.constant 0 : index
    %475 = vector.load %arg2[%c0_349, %c3_350, %c2_351, %c1_352, %c0_353] : memref<1x4x6x9x4xf32, #tpu.memory_space<vmem>>, vector<1x1x4x8x4xf32>
    %476 = vector.shape_cast %475 : vector<1x1x4x8x4xf32> to vector<4x8x4xf32>
    %c8_354 = arith.constant 8 : index
    %c0_355 = arith.constant 0 : index
    %477 = vector.load %arg3[%c8_354, %c0_355] : memref<18x4xf32, #tpu.memory_space<vmem>>, vector<1x4xf32>
    %478 = vector.shape_cast %477 : vector<1x4xf32> to vector<1x1x4xf32>
    %479 = vector.broadcast %478 : vector<1x1x4xf32> to vector<4x8x4xf32>
    %480 = arith.mulf %476, %479 : vector<4x8x4xf32>
    %481 = arith.addf %469, %480 : vector<4x8x4xf32>
    %c17_356 = arith.constant 17 : index
    %c0_357 = arith.constant 0 : index
    %482 = vector.load %arg3[%c17_356, %c0_357] : memref<18x4xf32, #tpu.memory_space<vmem>>, vector<1x4xf32>
    %483 = vector.shape_cast %482 : vector<1x4xf32> to vector<1x1x4xf32>
    %484 = vector.broadcast %483 : vector<1x1x4xf32> to vector<4x8x4xf32>
    %485 = arith.mulf %476, %484 : vector<4x8x4xf32>
    %486 = arith.addf %474, %485 : vector<4x8x4xf32>
    %c3_358 = arith.constant 3 : index
    %c1_359 = arith.constant 1 : index
    %c1_360 = arith.constant 1 : index
    %c0_361 = arith.constant 0 : index
    %487 = vector.load %arg12[%c3_358, %c1_359, %c1_360, %c0_361] : memref<8x5x9x4xf32, #tpu.memory_space<vmem>>, vector<1x4x8x4xf32>
    %488 = vector.shape_cast %487 : vector<1x4x8x4xf32> to vector<4x8x4xf32>
    %489 = vector.shape_cast %481 : vector<4x8x4xf32> to vector<1x4x8x4xf32>
    tpu.vector_store %arg12[%c3_358, %c1_359, %c1_360, %c0_361], %489 {strides = array<i32>} : memref<8x5x9x4xf32, #tpu.memory_space<vmem>>, vector<1x4x8x4xf32>,
    %490 = arith.maximumf %374, %481 : vector<4x8x4xf32>
    %c7_362 = arith.constant 7 : index
    %c1_363 = arith.constant 1 : index
    %c1_364 = arith.constant 1 : index
    %c0_365 = arith.constant 0 : index
    %491 = vector.load %arg12[%c7_362, %c1_363, %c1_364, %c0_365] : memref<8x5x9x4xf32, #tpu.memory_space<vmem>>, vector<1x4x8x4xf32>
    %492 = vector.shape_cast %491 : vector<1x4x8x4xf32> to vector<4x8x4xf32>
    %493 = vector.shape_cast %486 : vector<4x8x4xf32> to vector<1x4x8x4xf32>
    tpu.vector_store %arg12[%c7_362, %c1_363, %c1_364, %c0_365], %493 {strides = array<i32>} : memref<8x5x9x4xf32, #tpu.memory_space<vmem>>, vector<1x4x8x4xf32>,
    %494 = arith.maximumf %378, %486 : vector<4x8x4xf32>
    %c0_i32 = arith.constant 0 : i32
    %495 = arith.cmpi eq, %arg1, %c0_i32 : i32
    %496 = arith.extui %495 : i1 to i32
    %c0_i32_366 = arith.constant 0 : i32
    %497 = arith.cmpi ne, %496, %c0_i32_366 : i32
    scf.if %497 {
      %cst_589 = arith.constant 0.000000e+00 : f32
      %818 = vector.broadcast %cst_589 : f32 to vector<1x8x4xf32>
      %c2_590 = arith.constant 2 : index
      %c0_591 = arith.constant 0 : index
      %c1_592 = arith.constant 1 : index
      %c0_593 = arith.constant 0 : index
      %819 = vector.load %arg12[%c2_590, %c0_591, %c1_592, %c0_593] : memref<8x5x9x4xf32, #tpu.memory_space<vmem>>, vector<1x1x8x4xf32>
      %820 = vector.shape_cast %819 : vector<1x1x8x4xf32> to vector<1x8x4xf32>
      %821 = vector.shape_cast %818 : vector<1x8x4xf32> to vector<1x1x8x4xf32>
      tpu.vector_store %arg12[%c2_590, %c0_591, %c1_592, %c0_593], %821 {strides = array<i32>} : memref<8x5x9x4xf32, #tpu.memory_space<vmem>>, vector<1x1x8x4xf32>,
      %c3_594 = arith.constant 3 : index
      %c0_595 = arith.constant 0 : index
      %c1_596 = arith.constant 1 : index
      %c0_597 = arith.constant 0 : index
      %822 = vector.load %arg12[%c3_594, %c0_595, %c1_596, %c0_597] : memref<8x5x9x4xf32, #tpu.memory_space<vmem>>, vector<1x1x8x4xf32>
      %823 = vector.shape_cast %822 : vector<1x1x8x4xf32> to vector<1x8x4xf32>
      %824 = vector.shape_cast %818 : vector<1x8x4xf32> to vector<1x1x8x4xf32>
      tpu.vector_store %arg12[%c3_594, %c0_595, %c1_596, %c0_597], %824 {strides = array<i32>} : memref<8x5x9x4xf32, #tpu.memory_space<vmem>>, vector<1x1x8x4xf32>,
      %c6_598 = arith.constant 6 : index
      %c0_599 = arith.constant 0 : index
      %c1_600 = arith.constant 1 : index
      %c0_601 = arith.constant 0 : index
      %825 = vector.load %arg12[%c6_598, %c0_599, %c1_600, %c0_601] : memref<8x5x9x4xf32, #tpu.memory_space<vmem>>, vector<1x1x8x4xf32>
      %826 = vector.shape_cast %825 : vector<1x1x8x4xf32> to vector<1x8x4xf32>
      %827 = vector.shape_cast %818 : vector<1x8x4xf32> to vector<1x1x8x4xf32>
      tpu.vector_store %arg12[%c6_598, %c0_599, %c1_600, %c0_601], %827 {strides = array<i32>} : memref<8x5x9x4xf32, #tpu.memory_space<vmem>>, vector<1x1x8x4xf32>,
      %c7_602 = arith.constant 7 : index
      %c0_603 = arith.constant 0 : index
      %c1_604 = arith.constant 1 : index
      %c0_605 = arith.constant 0 : index
      %828 = vector.load %arg12[%c7_602, %c0_603, %c1_604, %c0_605] : memref<8x5x9x4xf32, #tpu.memory_space<vmem>>, vector<1x1x8x4xf32>
      %829 = vector.shape_cast %828 : vector<1x1x8x4xf32> to vector<1x8x4xf32>
      %830 = vector.shape_cast %818 : vector<1x8x4xf32> to vector<1x1x8x4xf32>
      tpu.vector_store %arg12[%c7_602, %c0_603, %c1_604, %c0_605], %830 {strides = array<i32>} : memref<8x5x9x4xf32, #tpu.memory_space<vmem>>, vector<1x1x8x4xf32>,
    } else {
    }
    %c0_i32_367 = arith.constant 0 : i32
    %498 = arith.cmpi sgt, %arg1, %c0_i32_367 : i32
    %499 = arith.extui %498 : i1 to i32
    %c0_i32_368 = arith.constant 0 : i32
    %500 = arith.cmpi ne, %499, %c0_i32_368 : i32
    scf.if %500 {
      %818 = vector.extract_strided_slice %4 {offsets = [0, 0, 0], sizes = [1, 8, 4], strides = [1, 1, 1]} : vector<4x8x4xf32> to vector<1x8x4xf32>
      %819 = vector.extract_strided_slice %9 {offsets = [0, 0, 0], sizes = [1, 8, 4], strides = [1, 1, 1]} : vector<4x8x4xf32> to vector<1x8x4xf32>
      %c0_589 = arith.constant 0 : index
      %c2_590 = arith.constant 2 : index
      %c0_591 = arith.constant 0 : index
      %c0_592 = arith.constant 0 : index
      %c0_593 = arith.constant 0 : index
      %820 = vector.load %arg2[%c0_589, %c2_590, %c0_591, %c0_592, %c0_593] : memref<1x4x6x9x4xf32, #tpu.memory_space<vmem>>, vector<1x1x1x8x4xf32>
      %821 = vector.shape_cast %820 : vector<1x1x1x8x4xf32> to vector<1x8x4xf32>
      %c0_594 = arith.constant 0 : index
      %c0_595 = arith.constant 0 : index
      %822 = vector.load %arg3[%c0_594, %c0_595] : memref<18x4xf32, #tpu.memory_space<vmem>>, vector<1x4xf32>
      %823 = vector.shape_cast %822 : vector<1x4xf32> to vector<1x1x4xf32>
      %824 = vector.broadcast %823 : vector<1x1x4xf32> to vector<1x8x4xf32>
      %825 = arith.mulf %821, %824 : vector<1x8x4xf32>
      %826 = arith.addf %818, %825 : vector<1x8x4xf32>
      %c9_596 = arith.constant 9 : index
      %c0_597 = arith.constant 0 : index
      %827 = vector.load %arg3[%c9_596, %c0_597] : memref<18x4xf32, #tpu.memory_space<vmem>>, vector<1x4xf32>
      %828 = vector.shape_cast %827 : vector<1x4xf32> to vector<1x1x4xf32>
      %829 = vector.broadcast %828 : vector<1x1x4xf32> to vector<1x8x4xf32>
      %830 = arith.mulf %821, %829 : vector<1x8x4xf32>
      %831 = arith.addf %819, %830 : vector<1x8x4xf32>
      %c0_598 = arith.constant 0 : index
      %c3_599 = arith.constant 3 : index
      %c0_600 = arith.constant 0 : index
      %c0_601 = arith.constant 0 : index
      %c0_602 = arith.constant 0 : index
      %832 = vector.load %arg2[%c0_598, %c3_599, %c0_600, %c0_601, %c0_602] : memref<1x4x6x9x4xf32, #tpu.memory_space<vmem>>, vector<1x1x1x8x4xf32>
      %833 = vector.shape_cast %832 : vector<1x1x1x8x4xf32> to vector<1x8x4xf32>
      %c1_603 = arith.constant 1 : index
      %c0_604 = arith.constant 0 : index
      %834 = vector.load %arg3[%c1_603, %c0_604] : memref<18x4xf32, #tpu.memory_space<vmem>>, vector<1x4xf32>
      %835 = vector.shape_cast %834 : vector<1x4xf32> to vector<1x1x4xf32>
      %836 = vector.broadcast %835 : vector<1x1x4xf32> to vector<1x8x4xf32>
      %837 = arith.mulf %833, %836 : vector<1x8x4xf32>
      %838 = arith.addf %826, %837 : vector<1x8x4xf32>
      %c10_605 = arith.constant 10 : index
      %c0_606 = arith.constant 0 : index
      %839 = vector.load %arg3[%c10_605, %c0_606] : memref<18x4xf32, #tpu.memory_space<vmem>>, vector<1x4xf32>
      %840 = vector.shape_cast %839 : vector<1x4xf32> to vector<1x1x4xf32>
      %841 = vector.broadcast %840 : vector<1x1x4xf32> to vector<1x8x4xf32>
      %842 = arith.mulf %833, %841 : vector<1x8x4xf32>
      %843 = arith.addf %831, %842 : vector<1x8x4xf32>
      %c0_607 = arith.constant 0 : index
      %c2_608 = arith.constant 2 : index
      %c0_609 = arith.constant 0 : index
      %c1_610 = arith.constant 1 : index
      %c0_611 = arith.constant 0 : index
      %844 = vector.load %arg2[%c0_607, %c2_608, %c0_609, %c1_610, %c0_611] : memref<1x4x6x9x4xf32, #tpu.memory_space<vmem>>, vector<1x1x1x8x4xf32>
      %845 = vector.shape_cast %844 : vector<1x1x1x8x4xf32> to vector<1x8x4xf32>
      %c2_612 = arith.constant 2 : index
      %c0_613 = arith.constant 0 : index
      %846 = vector.load %arg3[%c2_612, %c0_613] : memref<18x4xf32, #tpu.memory_space<vmem>>, vector<1x4xf32>
      %847 = vector.shape_cast %846 : vector<1x4xf32> to vector<1x1x4xf32>
      %848 = vector.broadcast %847 : vector<1x1x4xf32> to vector<1x8x4xf32>
      %849 = arith.mulf %845, %848 : vector<1x8x4xf32>
      %850 = arith.addf %838, %849 : vector<1x8x4xf32>
      %c11_614 = arith.constant 11 : index
      %c0_615 = arith.constant 0 : index
      %851 = vector.load %arg3[%c11_614, %c0_615] : memref<18x4xf32, #tpu.memory_space<vmem>>, vector<1x4xf32>
      %852 = vector.shape_cast %851 : vector<1x4xf32> to vector<1x1x4xf32>
      %853 = vector.broadcast %852 : vector<1x1x4xf32> to vector<1x8x4xf32>
      %854 = arith.mulf %845, %853 : vector<1x8x4xf32>
      %855 = arith.addf %843, %854 : vector<1x8x4xf32>
      %c0_616 = arith.constant 0 : index
      %c0_617 = arith.constant 0 : index
      %c1_618 = arith.constant 1 : index
      %c0_619 = arith.constant 0 : index
      %c0_620 = arith.constant 0 : index
      %856 = vector.load %arg2[%c0_616, %c0_617, %c1_618, %c0_619, %c0_620] : memref<1x4x6x9x4xf32, #tpu.memory_space<vmem>>, vector<1x1x1x8x4xf32>
      %857 = vector.shape_cast %856 : vector<1x1x1x8x4xf32> to vector<1x8x4xf32>
      %c3_621 = arith.constant 3 : index
      %c0_622 = arith.constant 0 : index
      %858 = vector.load %arg3[%c3_621, %c0_622] : memref<18x4xf32, #tpu.memory_space<vmem>>, vector<1x4xf32>
      %859 = vector.shape_cast %858 : vector<1x4xf32> to vector<1x1x4xf32>
      %860 = vector.broadcast %859 : vector<1x1x4xf32> to vector<1x8x4xf32>
      %861 = arith.mulf %857, %860 : vector<1x8x4xf32>
      %862 = arith.addf %850, %861 : vector<1x8x4xf32>
      %c12_623 = arith.constant 12 : index
      %c0_624 = arith.constant 0 : index
      %863 = vector.load %arg3[%c12_623, %c0_624] : memref<18x4xf32, #tpu.memory_space<vmem>>, vector<1x4xf32>
      %864 = vector.shape_cast %863 : vector<1x4xf32> to vector<1x1x4xf32>
      %865 = vector.broadcast %864 : vector<1x1x4xf32> to vector<1x8x4xf32>
      %866 = arith.mulf %857, %865 : vector<1x8x4xf32>
      %867 = arith.addf %855, %866 : vector<1x8x4xf32>
      %c0_625 = arith.constant 0 : index
      %c1_626 = arith.constant 1 : index
      %c1_627 = arith.constant 1 : index
      %c0_628 = arith.constant 0 : index
      %c0_629 = arith.constant 0 : index
      %868 = vector.load %arg2[%c0_625, %c1_626, %c1_627, %c0_628, %c0_629] : memref<1x4x6x9x4xf32, #tpu.memory_space<vmem>>, vector<1x1x1x8x4xf32>
      %869 = vector.shape_cast %868 : vector<1x1x1x8x4xf32> to vector<1x8x4xf32>
      %c4_630 = arith.constant 4 : index
      %c0_631 = arith.constant 0 : index
      %870 = vector.load %arg3[%c4_630, %c0_631] : memref<18x4xf32, #tpu.memory_space<vmem>>, vector<1x4xf32>
      %871 = vector.shape_cast %870 : vector<1x4xf32> to vector<1x1x4xf32>
      %872 = vector.broadcast %871 : vector<1x1x4xf32> to vector<1x8x4xf32>
      %873 = arith.mulf %869, %872 : vector<1x8x4xf32>
      %874 = arith.addf %862, %873 : vector<1x8x4xf32>
      %c13_632 = arith.constant 13 : index
      %c0_633 = arith.constant 0 : index
      %875 = vector.load %arg3[%c13_632, %c0_633] : memref<18x4xf32, #tpu.memory_space<vmem>>, vector<1x4xf32>
      %876 = vector.shape_cast %875 : vector<1x4xf32> to vector<1x1x4xf32>
      %877 = vector.broadcast %876 : vector<1x1x4xf32> to vector<1x8x4xf32>
      %878 = arith.mulf %869, %877 : vector<1x8x4xf32>
      %879 = arith.addf %867, %878 : vector<1x8x4xf32>
      %c0_634 = arith.constant 0 : index
      %c0_635 = arith.constant 0 : index
      %c1_636 = arith.constant 1 : index
      %c1_637 = arith.constant 1 : index
      %c0_638 = arith.constant 0 : index
      %880 = vector.load %arg2[%c0_634, %c0_635, %c1_636, %c1_637, %c0_638] : memref<1x4x6x9x4xf32, #tpu.memory_space<vmem>>, vector<1x1x1x8x4xf32>
      %881 = vector.shape_cast %880 : vector<1x1x1x8x4xf32> to vector<1x8x4xf32>
      %c5_639 = arith.constant 5 : index
      %c0_640 = arith.constant 0 : index
      %882 = vector.load %arg3[%c5_639, %c0_640] : memref<18x4xf32, #tpu.memory_space<vmem>>, vector<1x4xf32>
      %883 = vector.shape_cast %882 : vector<1x4xf32> to vector<1x1x4xf32>
      %884 = vector.broadcast %883 : vector<1x1x4xf32> to vector<1x8x4xf32>
      %885 = arith.mulf %881, %884 : vector<1x8x4xf32>
      %886 = arith.addf %874, %885 : vector<1x8x4xf32>
      %c14_641 = arith.constant 14 : index
      %c0_642 = arith.constant 0 : index
      %887 = vector.load %arg3[%c14_641, %c0_642] : memref<18x4xf32, #tpu.memory_space<vmem>>, vector<1x4xf32>
      %888 = vector.shape_cast %887 : vector<1x4xf32> to vector<1x1x4xf32>
      %889 = vector.broadcast %888 : vector<1x1x4xf32> to vector<1x8x4xf32>
      %890 = arith.mulf %881, %889 : vector<1x8x4xf32>
      %891 = arith.addf %879, %890 : vector<1x8x4xf32>
      %c0_643 = arith.constant 0 : index
      %c2_644 = arith.constant 2 : index
      %c1_645 = arith.constant 1 : index
      %c0_646 = arith.constant 0 : index
      %c0_647 = arith.constant 0 : index
      %892 = vector.load %arg2[%c0_643, %c2_644, %c1_645, %c0_646, %c0_647] : memref<1x4x6x9x4xf32, #tpu.memory_space<vmem>>, vector<1x1x1x8x4xf32>
      %893 = vector.shape_cast %892 : vector<1x1x1x8x4xf32> to vector<1x8x4xf32>
      %c6_648 = arith.constant 6 : index
      %c0_649 = arith.constant 0 : index
      %894 = vector.load %arg3[%c6_648, %c0_649] : memref<18x4xf32, #tpu.memory_space<vmem>>, vector<1x4xf32>
      %895 = vector.shape_cast %894 : vector<1x4xf32> to vector<1x1x4xf32>
      %896 = vector.broadcast %895 : vector<1x1x4xf32> to vector<1x8x4xf32>
      %897 = arith.mulf %893, %896 : vector<1x8x4xf32>
      %898 = arith.addf %886, %897 : vector<1x8x4xf32>
      %c15_650 = arith.constant 15 : index
      %c0_651 = arith.constant 0 : index
      %899 = vector.load %arg3[%c15_650, %c0_651] : memref<18x4xf32, #tpu.memory_space<vmem>>, vector<1x4xf32>
      %900 = vector.shape_cast %899 : vector<1x4xf32> to vector<1x1x4xf32>
      %901 = vector.broadcast %900 : vector<1x1x4xf32> to vector<1x8x4xf32>
      %902 = arith.mulf %893, %901 : vector<1x8x4xf32>
      %903 = arith.addf %891, %902 : vector<1x8x4xf32>
      %c0_652 = arith.constant 0 : index
      %c3_653 = arith.constant 3 : index
      %c1_654 = arith.constant 1 : index
      %c0_655 = arith.constant 0 : index
      %c0_656 = arith.constant 0 : index
      %904 = vector.load %arg2[%c0_652, %c3_653, %c1_654, %c0_655, %c0_656] : memref<1x4x6x9x4xf32, #tpu.memory_space<vmem>>, vector<1x1x1x8x4xf32>
      %905 = vector.shape_cast %904 : vector<1x1x1x8x4xf32> to vector<1x8x4xf32>
      %c7_657 = arith.constant 7 : index
      %c0_658 = arith.constant 0 : index
      %906 = vector.load %arg3[%c7_657, %c0_658] : memref<18x4xf32, #tpu.memory_space<vmem>>, vector<1x4xf32>
      %907 = vector.shape_cast %906 : vector<1x4xf32> to vector<1x1x4xf32>
      %908 = vector.broadcast %907 : vector<1x1x4xf32> to vector<1x8x4xf32>
      %909 = arith.mulf %905, %908 : vector<1x8x4xf32>
      %910 = arith.addf %898, %909 : vector<1x8x4xf32>
      %c16_659 = arith.constant 16 : index
      %c0_660 = arith.constant 0 : index
      %911 = vector.load %arg3[%c16_659, %c0_660] : memref<18x4xf32, #tpu.memory_space<vmem>>, vector<1x4xf32>
      %912 = vector.shape_cast %911 : vector<1x4xf32> to vector<1x1x4xf32>
      %913 = vector.broadcast %912 : vector<1x1x4xf32> to vector<1x8x4xf32>
      %914 = arith.mulf %905, %913 : vector<1x8x4xf32>
      %915 = arith.addf %903, %914 : vector<1x8x4xf32>
      %c0_661 = arith.constant 0 : index
      %c2_662 = arith.constant 2 : index
      %c1_663 = arith.constant 1 : index
      %c1_664 = arith.constant 1 : index
      %c0_665 = arith.constant 0 : index
      %916 = vector.load %arg2[%c0_661, %c2_662, %c1_663, %c1_664, %c0_665] : memref<1x4x6x9x4xf32, #tpu.memory_space<vmem>>, vector<1x1x1x8x4xf32>
      %917 = vector.shape_cast %916 : vector<1x1x1x8x4xf32> to vector<1x8x4xf32>
      %c8_666 = arith.constant 8 : index
      %c0_667 = arith.constant 0 : index
      %918 = vector.load %arg3[%c8_666, %c0_667] : memref<18x4xf32, #tpu.memory_space<vmem>>, vector<1x4xf32>
      %919 = vector.shape_cast %918 : vector<1x4xf32> to vector<1x1x4xf32>
      %920 = vector.broadcast %919 : vector<1x1x4xf32> to vector<1x8x4xf32>
      %921 = arith.mulf %917, %920 : vector<1x8x4xf32>
      %922 = arith.addf %910, %921 : vector<1x8x4xf32>
      %c17_668 = arith.constant 17 : index
      %c0_669 = arith.constant 0 : index
      %923 = vector.load %arg3[%c17_668, %c0_669] : memref<18x4xf32, #tpu.memory_space<vmem>>, vector<1x4xf32>
      %924 = vector.shape_cast %923 : vector<1x4xf32> to vector<1x1x4xf32>
      %925 = vector.broadcast %924 : vector<1x1x4xf32> to vector<1x8x4xf32>
      %926 = arith.mulf %917, %925 : vector<1x8x4xf32>
      %927 = arith.addf %915, %926 : vector<1x8x4xf32>
      %c2_670 = arith.constant 2 : index
      %c0_671 = arith.constant 0 : index
      %c1_672 = arith.constant 1 : index
      %c0_673 = arith.constant 0 : index
      %928 = vector.load %arg12[%c2_670, %c0_671, %c1_672, %c0_673] : memref<8x5x9x4xf32, #tpu.memory_space<vmem>>, vector<1x1x8x4xf32>
      %929 = vector.shape_cast %928 : vector<1x1x8x4xf32> to vector<1x8x4xf32>
      %930 = vector.shape_cast %922 : vector<1x8x4xf32> to vector<1x1x8x4xf32>
      tpu.vector_store %arg12[%c2_670, %c0_671, %c1_672, %c0_673], %930 {strides = array<i32>} : memref<8x5x9x4xf32, #tpu.memory_space<vmem>>, vector<1x1x8x4xf32>,
      %c6_674 = arith.constant 6 : index
      %c0_675 = arith.constant 0 : index
      %c1_676 = arith.constant 1 : index
      %c0_677 = arith.constant 0 : index
      %931 = vector.load %arg12[%c6_674, %c0_675, %c1_676, %c0_677] : memref<8x5x9x4xf32, #tpu.memory_space<vmem>>, vector<1x1x8x4xf32>
      %932 = vector.shape_cast %931 : vector<1x1x8x4xf32> to vector<1x8x4xf32>
      %933 = vector.shape_cast %927 : vector<1x8x4xf32> to vector<1x1x8x4xf32>
      tpu.vector_store %arg12[%c6_674, %c0_675, %c1_676, %c0_677], %933 {strides = array<i32>} : memref<8x5x9x4xf32, #tpu.memory_space<vmem>>, vector<1x1x8x4xf32>,
      %934 = vector.extract_strided_slice %4 {offsets = [0, 0, 0], sizes = [1, 8, 4], strides = [1, 1, 1]} : vector<4x8x4xf32> to vector<1x8x4xf32>
      %935 = vector.extract_strided_slice %9 {offsets = [0, 0, 0], sizes = [1, 8, 4], strides = [1, 1, 1]} : vector<4x8x4xf32> to vector<1x8x4xf32>
      %c0_678 = arith.constant 0 : index
      %c3_679 = arith.constant 3 : index
      %c0_680 = arith.constant 0 : index
      %c0_681 = arith.constant 0 : index
      %c0_682 = arith.constant 0 : index
      %936 = vector.load %arg2[%c0_678, %c3_679, %c0_680, %c0_681, %c0_682] : memref<1x4x6x9x4xf32, #tpu.memory_space<vmem>>, vector<1x1x1x8x4xf32>
      %937 = vector.shape_cast %936 : vector<1x1x1x8x4xf32> to vector<1x8x4xf32>
      %c0_683 = arith.constant 0 : index
      %c0_684 = arith.constant 0 : index
      %938 = vector.load %arg3[%c0_683, %c0_684] : memref<18x4xf32, #tpu.memory_space<vmem>>, vector<1x4xf32>
      %939 = vector.shape_cast %938 : vector<1x4xf32> to vector<1x1x4xf32>
      %940 = vector.broadcast %939 : vector<1x1x4xf32> to vector<1x8x4xf32>
      %941 = arith.mulf %937, %940 : vector<1x8x4xf32>
      %942 = arith.addf %934, %941 : vector<1x8x4xf32>
      %c9_685 = arith.constant 9 : index
      %c0_686 = arith.constant 0 : index
      %943 = vector.load %arg3[%c9_685, %c0_686] : memref<18x4xf32, #tpu.memory_space<vmem>>, vector<1x4xf32>
      %944 = vector.shape_cast %943 : vector<1x4xf32> to vector<1x1x4xf32>
      %945 = vector.broadcast %944 : vector<1x1x4xf32> to vector<1x8x4xf32>
      %946 = arith.mulf %937, %945 : vector<1x8x4xf32>
      %947 = arith.addf %935, %946 : vector<1x8x4xf32>
      %c0_687 = arith.constant 0 : index
      %c2_688 = arith.constant 2 : index
      %c0_689 = arith.constant 0 : index
      %c1_690 = arith.constant 1 : index
      %c0_691 = arith.constant 0 : index
      %948 = vector.load %arg2[%c0_687, %c2_688, %c0_689, %c1_690, %c0_691] : memref<1x4x6x9x4xf32, #tpu.memory_space<vmem>>, vector<1x1x1x8x4xf32>
      %949 = vector.shape_cast %948 : vector<1x1x1x8x4xf32> to vector<1x8x4xf32>
      %c1_692 = arith.constant 1 : index
      %c0_693 = arith.constant 0 : index
      %950 = vector.load %arg3[%c1_692, %c0_693] : memref<18x4xf32, #tpu.memory_space<vmem>>, vector<1x4xf32>
      %951 = vector.shape_cast %950 : vector<1x4xf32> to vector<1x1x4xf32>
      %952 = vector.broadcast %951 : vector<1x1x4xf32> to vector<1x8x4xf32>
      %953 = arith.mulf %949, %952 : vector<1x8x4xf32>
      %954 = arith.addf %942, %953 : vector<1x8x4xf32>
      %c10_694 = arith.constant 10 : index
      %c0_695 = arith.constant 0 : index
      %955 = vector.load %arg3[%c10_694, %c0_695] : memref<18x4xf32, #tpu.memory_space<vmem>>, vector<1x4xf32>
      %956 = vector.shape_cast %955 : vector<1x4xf32> to vector<1x1x4xf32>
      %957 = vector.broadcast %956 : vector<1x1x4xf32> to vector<1x8x4xf32>
      %958 = arith.mulf %949, %957 : vector<1x8x4xf32>
      %959 = arith.addf %947, %958 : vector<1x8x4xf32>
      %c0_696 = arith.constant 0 : index
      %c3_697 = arith.constant 3 : index
      %c0_698 = arith.constant 0 : index
      %c1_699 = arith.constant 1 : index
      %c0_700 = arith.constant 0 : index
      %960 = vector.load %arg2[%c0_696, %c3_697, %c0_698, %c1_699, %c0_700] : memref<1x4x6x9x4xf32, #tpu.memory_space<vmem>>, vector<1x1x1x8x4xf32>
      %961 = vector.shape_cast %960 : vector<1x1x1x8x4xf32> to vector<1x8x4xf32>
      %c2_701 = arith.constant 2 : index
      %c0_702 = arith.constant 0 : index
      %962 = vector.load %arg3[%c2_701, %c0_702] : memref<18x4xf32, #tpu.memory_space<vmem>>, vector<1x4xf32>
      %963 = vector.shape_cast %962 : vector<1x4xf32> to vector<1x1x4xf32>
      %964 = vector.broadcast %963 : vector<1x1x4xf32> to vector<1x8x4xf32>
      %965 = arith.mulf %961, %964 : vector<1x8x4xf32>
      %966 = arith.addf %954, %965 : vector<1x8x4xf32>
      %c11_703 = arith.constant 11 : index
      %c0_704 = arith.constant 0 : index
      %967 = vector.load %arg3[%c11_703, %c0_704] : memref<18x4xf32, #tpu.memory_space<vmem>>, vector<1x4xf32>
      %968 = vector.shape_cast %967 : vector<1x4xf32> to vector<1x1x4xf32>
      %969 = vector.broadcast %968 : vector<1x1x4xf32> to vector<1x8x4xf32>
      %970 = arith.mulf %961, %969 : vector<1x8x4xf32>
      %971 = arith.addf %959, %970 : vector<1x8x4xf32>
      %c0_705 = arith.constant 0 : index
      %c1_706 = arith.constant 1 : index
      %c1_707 = arith.constant 1 : index
      %c0_708 = arith.constant 0 : index
      %c0_709 = arith.constant 0 : index
      %972 = vector.load %arg2[%c0_705, %c1_706, %c1_707, %c0_708, %c0_709] : memref<1x4x6x9x4xf32, #tpu.memory_space<vmem>>, vector<1x1x1x8x4xf32>
      %973 = vector.shape_cast %972 : vector<1x1x1x8x4xf32> to vector<1x8x4xf32>
      %c3_710 = arith.constant 3 : index
      %c0_711 = arith.constant 0 : index
      %974 = vector.load %arg3[%c3_710, %c0_711] : memref<18x4xf32, #tpu.memory_space<vmem>>, vector<1x4xf32>
      %975 = vector.shape_cast %974 : vector<1x4xf32> to vector<1x1x4xf32>
      %976 = vector.broadcast %975 : vector<1x1x4xf32> to vector<1x8x4xf32>
      %977 = arith.mulf %973, %976 : vector<1x8x4xf32>
      %978 = arith.addf %966, %977 : vector<1x8x4xf32>
      %c12_712 = arith.constant 12 : index
      %c0_713 = arith.constant 0 : index
      %979 = vector.load %arg3[%c12_712, %c0_713] : memref<18x4xf32, #tpu.memory_space<vmem>>, vector<1x4xf32>
      %980 = vector.shape_cast %979 : vector<1x4xf32> to vector<1x1x4xf32>
      %981 = vector.broadcast %980 : vector<1x1x4xf32> to vector<1x8x4xf32>
      %982 = arith.mulf %973, %981 : vector<1x8x4xf32>
      %983 = arith.addf %971, %982 : vector<1x8x4xf32>
      %c0_714 = arith.constant 0 : index
      %c0_715 = arith.constant 0 : index
      %c1_716 = arith.constant 1 : index
      %c1_717 = arith.constant 1 : index
      %c0_718 = arith.constant 0 : index
      %984 = vector.load %arg2[%c0_714, %c0_715, %c1_716, %c1_717, %c0_718] : memref<1x4x6x9x4xf32, #tpu.memory_space<vmem>>, vector<1x1x1x8x4xf32>
      %985 = vector.shape_cast %984 : vector<1x1x1x8x4xf32> to vector<1x8x4xf32>
      %c4_719 = arith.constant 4 : index
      %c0_720 = arith.constant 0 : index
      %986 = vector.load %arg3[%c4_719, %c0_720] : memref<18x4xf32, #tpu.memory_space<vmem>>, vector<1x4xf32>
      %987 = vector.shape_cast %986 : vector<1x4xf32> to vector<1x1x4xf32>
      %988 = vector.broadcast %987 : vector<1x1x4xf32> to vector<1x8x4xf32>
      %989 = arith.mulf %985, %988 : vector<1x8x4xf32>
      %990 = arith.addf %978, %989 : vector<1x8x4xf32>
      %c13_721 = arith.constant 13 : index
      %c0_722 = arith.constant 0 : index
      %991 = vector.load %arg3[%c13_721, %c0_722] : memref<18x4xf32, #tpu.memory_space<vmem>>, vector<1x4xf32>
      %992 = vector.shape_cast %991 : vector<1x4xf32> to vector<1x1x4xf32>
      %993 = vector.broadcast %992 : vector<1x1x4xf32> to vector<1x8x4xf32>
      %994 = arith.mulf %985, %993 : vector<1x8x4xf32>
      %995 = arith.addf %983, %994 : vector<1x8x4xf32>
      %c0_723 = arith.constant 0 : index
      %c1_724 = arith.constant 1 : index
      %c1_725 = arith.constant 1 : index
      %c1_726 = arith.constant 1 : index
      %c0_727 = arith.constant 0 : index
      %996 = vector.load %arg2[%c0_723, %c1_724, %c1_725, %c1_726, %c0_727] : memref<1x4x6x9x4xf32, #tpu.memory_space<vmem>>, vector<1x1x1x8x4xf32>
      %997 = vector.shape_cast %996 : vector<1x1x1x8x4xf32> to vector<1x8x4xf32>
      %c5_728 = arith.constant 5 : index
      %c0_729 = arith.constant 0 : index
      %998 = vector.load %arg3[%c5_728, %c0_729] : memref<18x4xf32, #tpu.memory_space<vmem>>, vector<1x4xf32>
      %999 = vector.shape_cast %998 : vector<1x4xf32> to vector<1x1x4xf32>
      %1000 = vector.broadcast %999 : vector<1x1x4xf32> to vector<1x8x4xf32>
      %1001 = arith.mulf %997, %1000 : vector<1x8x4xf32>
      %1002 = arith.addf %990, %1001 : vector<1x8x4xf32>
      %c14_730 = arith.constant 14 : index
      %c0_731 = arith.constant 0 : index
      %1003 = vector.load %arg3[%c14_730, %c0_731] : memref<18x4xf32, #tpu.memory_space<vmem>>, vector<1x4xf32>
      %1004 = vector.shape_cast %1003 : vector<1x4xf32> to vector<1x1x4xf32>
      %1005 = vector.broadcast %1004 : vector<1x1x4xf32> to vector<1x8x4xf32>
      %1006 = arith.mulf %997, %1005 : vector<1x8x4xf32>
      %1007 = arith.addf %995, %1006 : vector<1x8x4xf32>
      %c0_732 = arith.constant 0 : index
      %c3_733 = arith.constant 3 : index
      %c1_734 = arith.constant 1 : index
      %c0_735 = arith.constant 0 : index
      %c0_736 = arith.constant 0 : index
      %1008 = vector.load %arg2[%c0_732, %c3_733, %c1_734, %c0_735, %c0_736] : memref<1x4x6x9x4xf32, #tpu.memory_space<vmem>>, vector<1x1x1x8x4xf32>
      %1009 = vector.shape_cast %1008 : vector<1x1x1x8x4xf32> to vector<1x8x4xf32>
      %c6_737 = arith.constant 6 : index
      %c0_738 = arith.constant 0 : index
      %1010 = vector.load %arg3[%c6_737, %c0_738] : memref<18x4xf32, #tpu.memory_space<vmem>>, vector<1x4xf32>
      %1011 = vector.shape_cast %1010 : vector<1x4xf32> to vector<1x1x4xf32>
      %1012 = vector.broadcast %1011 : vector<1x1x4xf32> to vector<1x8x4xf32>
      %1013 = arith.mulf %1009, %1012 : vector<1x8x4xf32>
      %1014 = arith.addf %1002, %1013 : vector<1x8x4xf32>
      %c15_739 = arith.constant 15 : index
      %c0_740 = arith.constant 0 : index
      %1015 = vector.load %arg3[%c15_739, %c0_740] : memref<18x4xf32, #tpu.memory_space<vmem>>, vector<1x4xf32>
      %1016 = vector.shape_cast %1015 : vector<1x4xf32> to vector<1x1x4xf32>
      %1017 = vector.broadcast %1016 : vector<1x1x4xf32> to vector<1x8x4xf32>
      %1018 = arith.mulf %1009, %1017 : vector<1x8x4xf32>
      %1019 = arith.addf %1007, %1018 : vector<1x8x4xf32>
      %c0_741 = arith.constant 0 : index
      %c2_742 = arith.constant 2 : index
      %c1_743 = arith.constant 1 : index
      %c1_744 = arith.constant 1 : index
      %c0_745 = arith.constant 0 : index
      %1020 = vector.load %arg2[%c0_741, %c2_742, %c1_743, %c1_744, %c0_745] : memref<1x4x6x9x4xf32, #tpu.memory_space<vmem>>, vector<1x1x1x8x4xf32>
      %1021 = vector.shape_cast %1020 : vector<1x1x1x8x4xf32> to vector<1x8x4xf32>
      %c7_746 = arith.constant 7 : index
      %c0_747 = arith.constant 0 : index
      %1022 = vector.load %arg3[%c7_746, %c0_747] : memref<18x4xf32, #tpu.memory_space<vmem>>, vector<1x4xf32>
      %1023 = vector.shape_cast %1022 : vector<1x4xf32> to vector<1x1x4xf32>
      %1024 = vector.broadcast %1023 : vector<1x1x4xf32> to vector<1x8x4xf32>
      %1025 = arith.mulf %1021, %1024 : vector<1x8x4xf32>
      %1026 = arith.addf %1014, %1025 : vector<1x8x4xf32>
      %c16_748 = arith.constant 16 : index
      %c0_749 = arith.constant 0 : index
      %1027 = vector.load %arg3[%c16_748, %c0_749] : memref<18x4xf32, #tpu.memory_space<vmem>>, vector<1x4xf32>
      %1028 = vector.shape_cast %1027 : vector<1x4xf32> to vector<1x1x4xf32>
      %1029 = vector.broadcast %1028 : vector<1x1x4xf32> to vector<1x8x4xf32>
      %1030 = arith.mulf %1021, %1029 : vector<1x8x4xf32>
      %1031 = arith.addf %1019, %1030 : vector<1x8x4xf32>
      %c0_750 = arith.constant 0 : index
      %c3_751 = arith.constant 3 : index
      %c1_752 = arith.constant 1 : index
      %c1_753 = arith.constant 1 : index
      %c0_754 = arith.constant 0 : index
      %1032 = vector.load %arg2[%c0_750, %c3_751, %c1_752, %c1_753, %c0_754] : memref<1x4x6x9x4xf32, #tpu.memory_space<vmem>>, vector<1x1x1x8x4xf32>
      %1033 = vector.shape_cast %1032 : vector<1x1x1x8x4xf32> to vector<1x8x4xf32>
      %c8_755 = arith.constant 8 : index
      %c0_756 = arith.constant 0 : index
      %1034 = vector.load %arg3[%c8_755, %c0_756] : memref<18x4xf32, #tpu.memory_space<vmem>>, vector<1x4xf32>
      %1035 = vector.shape_cast %1034 : vector<1x4xf32> to vector<1x1x4xf32>
      %1036 = vector.broadcast %1035 : vector<1x1x4xf32> to vector<1x8x4xf32>
      %1037 = arith.mulf %1033, %1036 : vector<1x8x4xf32>
      %1038 = arith.addf %1026, %1037 : vector<1x8x4xf32>
      %c17_757 = arith.constant 17 : index
      %c0_758 = arith.constant 0 : index
      %1039 = vector.load %arg3[%c17_757, %c0_758] : memref<18x4xf32, #tpu.memory_space<vmem>>, vector<1x4xf32>
      %1040 = vector.shape_cast %1039 : vector<1x4xf32> to vector<1x1x4xf32>
      %1041 = vector.broadcast %1040 : vector<1x1x4xf32> to vector<1x8x4xf32>
      %1042 = arith.mulf %1033, %1041 : vector<1x8x4xf32>
      %1043 = arith.addf %1031, %1042 : vector<1x8x4xf32>
      %c3_759 = arith.constant 3 : index
      %c0_760 = arith.constant 0 : index
      %c1_761 = arith.constant 1 : index
      %c0_762 = arith.constant 0 : index
      %1044 = vector.load %arg12[%c3_759, %c0_760, %c1_761, %c0_762] : memref<8x5x9x4xf32, #tpu.memory_space<vmem>>, vector<1x1x8x4xf32>
      %1045 = vector.shape_cast %1044 : vector<1x1x8x4xf32> to vector<1x8x4xf32>
      %1046 = vector.shape_cast %1038 : vector<1x8x4xf32> to vector<1x1x8x4xf32>
      tpu.vector_store %arg12[%c3_759, %c0_760, %c1_761, %c0_762], %1046 {strides = array<i32>} : memref<8x5x9x4xf32, #tpu.memory_space<vmem>>, vector<1x1x8x4xf32>,
      %c7_763 = arith.constant 7 : index
      %c0_764 = arith.constant 0 : index
      %c1_765 = arith.constant 1 : index
      %c0_766 = arith.constant 0 : index
      %1047 = vector.load %arg12[%c7_763, %c0_764, %c1_765, %c0_766] : memref<8x5x9x4xf32, #tpu.memory_space<vmem>>, vector<1x1x8x4xf32>
      %1048 = vector.shape_cast %1047 : vector<1x1x8x4xf32> to vector<1x8x4xf32>
      %1049 = vector.shape_cast %1043 : vector<1x8x4xf32> to vector<1x1x8x4xf32>
      tpu.vector_store %arg12[%c7_763, %c0_764, %c1_765, %c0_766], %1049 {strides = array<i32>} : memref<8x5x9x4xf32, #tpu.memory_space<vmem>>, vector<1x1x8x4xf32>,
    } else {
    }
    %c8_369 = arith.constant 8 : index
    %c0_370 = arith.constant 0 : index
    %501 = vector.load %arg9[%c8_369, %c0_370] : memref<12x4xf32, #tpu.memory_space<vmem>>, vector<1x4xf32>
    %502 = vector.shape_cast %501 : vector<1x4xf32> to vector<1x1x4xf32>
    %503 = vector.broadcast %502 : vector<1x1x4xf32> to vector<4x8x4xf32>
    %504 = arith.mulf %490, %503 : vector<4x8x4xf32>
    %c10_371 = arith.constant 10 : index
    %c0_372 = arith.constant 0 : index
    %505 = vector.load %arg9[%c10_371, %c0_372] : memref<12x4xf32, #tpu.memory_space<vmem>>, vector<1x4xf32>
    %506 = vector.shape_cast %505 : vector<1x4xf32> to vector<1x1x4xf32>
    %507 = vector.broadcast %506 : vector<1x1x4xf32> to vector<4x8x4xf32>
    %508 = arith.addf %504, %507 : vector<4x8x4xf32>
    %509 = vector.shape_cast %508 : vector<4x8x4xf32> to vector<32x4xf32>
    %510 = arith.truncf %509 : vector<32x4xf32> to vector<32x4xbf16>
    %c9_373 = arith.constant 9 : index
    %c0_374 = arith.constant 0 : index
    %511 = vector.load %arg9[%c9_373, %c0_374] : memref<12x4xf32, #tpu.memory_space<vmem>>, vector<1x4xf32>
    %512 = vector.shape_cast %511 : vector<1x4xf32> to vector<1x1x4xf32>
    %513 = vector.broadcast %512 : vector<1x1x4xf32> to vector<4x8x4xf32>
    %514 = arith.mulf %494, %513 : vector<4x8x4xf32>
    %c11_375 = arith.constant 11 : index
    %c0_376 = arith.constant 0 : index
    %515 = vector.load %arg9[%c11_375, %c0_376] : memref<12x4xf32, #tpu.memory_space<vmem>>, vector<1x4xf32>
    %516 = vector.shape_cast %515 : vector<1x4xf32> to vector<1x1x4xf32>
    %517 = vector.broadcast %516 : vector<1x1x4xf32> to vector<4x8x4xf32>
    %518 = arith.addf %514, %517 : vector<4x8x4xf32>
    %519 = vector.shape_cast %518 : vector<4x8x4xf32> to vector<32x4xf32>
    %520 = arith.truncf %519 : vector<32x4xf32> to vector<32x4xbf16>
    %c3_377 = arith.constant 3 : index
    %c0_378 = arith.constant 0 : index
    %c0_379 = arith.constant 0 : index
    %c0_380 = arith.constant 0 : index
    %521 = vector.load %arg12[%c3_377, %c0_378, %c0_379, %c0_380] : memref<8x5x9x4xf32, #tpu.memory_space<vmem>>, vector<1x4x8x4xf32>
    %522 = vector.shape_cast %521 : vector<1x4x8x4xf32> to vector<4x8x4xf32>
    %c0_381 = arith.constant 0 : index
    %c0_382 = arith.constant 0 : index
    %523 = vector.load %arg4[%c0_381, %c0_382] : memref<18x4xf32, #tpu.memory_space<vmem>>, vector<1x4xf32>
    %524 = vector.shape_cast %523 : vector<1x4xf32> to vector<1x1x4xf32>
    %525 = vector.broadcast %524 : vector<1x1x4xf32> to vector<4x8x4xf32>
    %526 = arith.mulf %522, %525 : vector<4x8x4xf32>
    %527 = arith.addf %14, %526 : vector<4x8x4xf32>
    %c2_383 = arith.constant 2 : index
    %c0_384 = arith.constant 0 : index
    %c1_385 = arith.constant 1 : index
    %c0_386 = arith.constant 0 : index
    %528 = vector.load %arg12[%c2_383, %c0_384, %c1_385, %c0_386] : memref<8x5x9x4xf32, #tpu.memory_space<vmem>>, vector<1x4x8x4xf32>
    %529 = vector.shape_cast %528 : vector<1x4x8x4xf32> to vector<4x8x4xf32>
    %c1_387 = arith.constant 1 : index
    %c0_388 = arith.constant 0 : index
    %530 = vector.load %arg4[%c1_387, %c0_388] : memref<18x4xf32, #tpu.memory_space<vmem>>, vector<1x4xf32>
    %531 = vector.shape_cast %530 : vector<1x4xf32> to vector<1x1x4xf32>
    %532 = vector.broadcast %531 : vector<1x1x4xf32> to vector<4x8x4xf32>
    %533 = arith.mulf %529, %532 : vector<4x8x4xf32>
    %534 = arith.addf %527, %533 : vector<4x8x4xf32>
    %c3_389 = arith.constant 3 : index
    %c0_390 = arith.constant 0 : index
    %c1_391 = arith.constant 1 : index
    %c0_392 = arith.constant 0 : index
    %535 = vector.load %arg12[%c3_389, %c0_390, %c1_391, %c0_392] : memref<8x5x9x4xf32, #tpu.memory_space<vmem>>, vector<1x4x8x4xf32>
    %536 = vector.shape_cast %535 : vector<1x4x8x4xf32> to vector<4x8x4xf32>
    %c2_393 = arith.constant 2 : index
    %c0_394 = arith.constant 0 : index
    %537 = vector.load %arg4[%c2_393, %c0_394] : memref<18x4xf32, #tpu.memory_space<vmem>>, vector<1x4xf32>
    %538 = vector.shape_cast %537 : vector<1x4xf32> to vector<1x1x4xf32>
    %539 = vector.broadcast %538 : vector<1x1x4xf32> to vector<4x8x4xf32>
    %540 = arith.mulf %536, %539 : vector<4x8x4xf32>
    %541 = arith.addf %534, %540 : vector<4x8x4xf32>
    %c1_395 = arith.constant 1 : index
    %c1_396 = arith.constant 1 : index
    %c0_397 = arith.constant 0 : index
    %c0_398 = arith.constant 0 : index
    %542 = vector.load %arg12[%c1_395, %c1_396, %c0_397, %c0_398] : memref<8x5x9x4xf32, #tpu.memory_space<vmem>>, vector<1x4x8x4xf32>
    %543 = vector.shape_cast %542 : vector<1x4x8x4xf32> to vector<4x8x4xf32>
    %c3_399 = arith.constant 3 : index
    %c0_400 = arith.constant 0 : index
    %544 = vector.load %arg4[%c3_399, %c0_400] : memref<18x4xf32, #tpu.memory_space<vmem>>, vector<1x4xf32>
    %545 = vector.shape_cast %544 : vector<1x4xf32> to vector<1x1x4xf32>
    %546 = vector.broadcast %545 : vector<1x1x4xf32> to vector<4x8x4xf32>
    %547 = arith.mulf %543, %546 : vector<4x8x4xf32>
    %548 = arith.addf %541, %547 : vector<4x8x4xf32>
    %c0_401 = arith.constant 0 : index
    %c1_402 = arith.constant 1 : index
    %c1_403 = arith.constant 1 : index
    %c0_404 = arith.constant 0 : index
    %549 = vector.load %arg12[%c0_401, %c1_402, %c1_403, %c0_404] : memref<8x5x9x4xf32, #tpu.memory_space<vmem>>, vector<1x4x8x4xf32>
    %550 = vector.shape_cast %549 : vector<1x4x8x4xf32> to vector<4x8x4xf32>
    %c4_405 = arith.constant 4 : index
    %c0_406 = arith.constant 0 : index
    %551 = vector.load %arg4[%c4_405, %c0_406] : memref<18x4xf32, #tpu.memory_space<vmem>>, vector<1x4xf32>
    %552 = vector.shape_cast %551 : vector<1x4xf32> to vector<1x1x4xf32>
    %553 = vector.broadcast %552 : vector<1x1x4xf32> to vector<4x8x4xf32>
    %554 = arith.mulf %550, %553 : vector<4x8x4xf32>
    %555 = arith.addf %548, %554 : vector<4x8x4xf32>
    %c1_407 = arith.constant 1 : index
    %c1_408 = arith.constant 1 : index
    %c1_409 = arith.constant 1 : index
    %c0_410 = arith.constant 0 : index
    %556 = vector.load %arg12[%c1_407, %c1_408, %c1_409, %c0_410] : memref<8x5x9x4xf32, #tpu.memory_space<vmem>>, vector<1x4x8x4xf32>
    %557 = vector.shape_cast %556 : vector<1x4x8x4xf32> to vector<4x8x4xf32>
    %c5_411 = arith.constant 5 : index
    %c0_412 = arith.constant 0 : index
    %558 = vector.load %arg4[%c5_411, %c0_412] : memref<18x4xf32, #tpu.memory_space<vmem>>, vector<1x4xf32>
    %559 = vector.shape_cast %558 : vector<1x4xf32> to vector<1x1x4xf32>
    %560 = vector.broadcast %559 : vector<1x1x4xf32> to vector<4x8x4xf32>
    %561 = arith.mulf %557, %560 : vector<4x8x4xf32>
    %562 = arith.addf %555, %561 : vector<4x8x4xf32>
    %c3_413 = arith.constant 3 : index
    %c1_414 = arith.constant 1 : index
    %c0_415 = arith.constant 0 : index
    %c0_416 = arith.constant 0 : index
    %563 = vector.load %arg12[%c3_413, %c1_414, %c0_415, %c0_416] : memref<8x5x9x4xf32, #tpu.memory_space<vmem>>, vector<1x4x8x4xf32>
    %564 = vector.shape_cast %563 : vector<1x4x8x4xf32> to vector<4x8x4xf32>
    %c6_417 = arith.constant 6 : index
    %c0_418 = arith.constant 0 : index
    %565 = vector.load %arg4[%c6_417, %c0_418] : memref<18x4xf32, #tpu.memory_space<vmem>>, vector<1x4xf32>
    %566 = vector.shape_cast %565 : vector<1x4xf32> to vector<1x1x4xf32>
    %567 = vector.broadcast %566 : vector<1x1x4xf32> to vector<4x8x4xf32>
    %568 = arith.mulf %564, %567 : vector<4x8x4xf32>
    %569 = arith.addf %562, %568 : vector<4x8x4xf32>
    %c2_419 = arith.constant 2 : index
    %c1_420 = arith.constant 1 : index
    %c1_421 = arith.constant 1 : index
    %c0_422 = arith.constant 0 : index
    %570 = vector.load %arg12[%c2_419, %c1_420, %c1_421, %c0_422] : memref<8x5x9x4xf32, #tpu.memory_space<vmem>>, vector<1x4x8x4xf32>
    %571 = vector.shape_cast %570 : vector<1x4x8x4xf32> to vector<4x8x4xf32>
    %c7_423 = arith.constant 7 : index
    %c0_424 = arith.constant 0 : index
    %572 = vector.load %arg4[%c7_423, %c0_424] : memref<18x4xf32, #tpu.memory_space<vmem>>, vector<1x4xf32>
    %573 = vector.shape_cast %572 : vector<1x4xf32> to vector<1x1x4xf32>
    %574 = vector.broadcast %573 : vector<1x1x4xf32> to vector<4x8x4xf32>
    %575 = arith.mulf %571, %574 : vector<4x8x4xf32>
    %576 = arith.addf %569, %575 : vector<4x8x4xf32>
    %c3_425 = arith.constant 3 : index
    %c1_426 = arith.constant 1 : index
    %c1_427 = arith.constant 1 : index
    %c0_428 = arith.constant 0 : index
    %577 = vector.load %arg12[%c3_425, %c1_426, %c1_427, %c0_428] : memref<8x5x9x4xf32, #tpu.memory_space<vmem>>, vector<1x4x8x4xf32>
    %578 = vector.shape_cast %577 : vector<1x4x8x4xf32> to vector<4x8x4xf32>
    %c8_429 = arith.constant 8 : index
    %c0_430 = arith.constant 0 : index
    %579 = vector.load %arg4[%c8_429, %c0_430] : memref<18x4xf32, #tpu.memory_space<vmem>>, vector<1x4xf32>
    %580 = vector.shape_cast %579 : vector<1x4xf32> to vector<1x1x4xf32>
    %581 = vector.broadcast %580 : vector<1x1x4xf32> to vector<4x8x4xf32>
    %582 = arith.mulf %578, %581 : vector<4x8x4xf32>
    %583 = arith.addf %576, %582 : vector<4x8x4xf32>
    %cst_431 = arith.constant 5.000000e-01 : f32
    %584 = vector.broadcast %cst_431 : f32 to vector<4x8x4xf32>
    %585 = arith.mulf %584, %583 : vector<4x8x4xf32>
    %cst_432 = arith.constant 1.41421354 : f32
    %586 = vector.broadcast %cst_432 : f32 to vector<4x8x4xf32>
    %587 = arith.divf %583, %586 : vector<4x8x4xf32>
    %588 = math.absf %587 : vector<4x8x4xf32>
    %cst_433 = arith.constant 0.327591091 : f32
    %589 = vector.broadcast %cst_433 : f32 to vector<4x8x4xf32>
    %590 = arith.mulf %589, %588 : vector<4x8x4xf32>
    %cst_434 = arith.constant 1.000000e+00 : f32
    %591 = vector.broadcast %cst_434 : f32 to vector<4x8x4xf32>
    %592 = arith.addf %591, %590 : vector<4x8x4xf32>
    %593 = tpu.reciprocal %592 {approx = true} : vector<4x8x4xf32> -> vector<4x8x4xf32>
    %594 = arith.mulf %592, %593 : vector<4x8x4xf32>
    %cst_435 = arith.constant 2.000000e+00 : f32
    %595 = vector.broadcast %cst_435 : f32 to vector<4x8x4xf32>
    %596 = arith.subf %595, %594 : vector<4x8x4xf32>
    %597 = arith.mulf %593, %596 : vector<4x8x4xf32>
    %cst_436 = arith.constant 1.06140542 : f32
    %598 = vector.broadcast %cst_436 : f32 to vector<4x8x4xf32>
    %599 = arith.mulf %598, %597 : vector<4x8x4xf32>
    %cst_437 = arith.constant -1.45315206 : f32
    %600 = vector.broadcast %cst_437 : f32 to vector<4x8x4xf32>
    %601 = arith.addf %599, %600 : vector<4x8x4xf32>
    %602 = arith.mulf %601, %597 : vector<4x8x4xf32>
    %cst_438 = arith.constant 1.42141378 : f32
    %603 = vector.broadcast %cst_438 : f32 to vector<4x8x4xf32>
    %604 = arith.addf %602, %603 : vector<4x8x4xf32>
    %605 = arith.mulf %604, %597 : vector<4x8x4xf32>
    %cst_439 = arith.constant -0.284496725 : f32
    %606 = vector.broadcast %cst_439 : f32 to vector<4x8x4xf32>
    %607 = arith.addf %605, %606 : vector<4x8x4xf32>
    %608 = arith.mulf %607, %597 : vector<4x8x4xf32>
    %cst_440 = arith.constant 0.254829586 : f32
    %609 = vector.broadcast %cst_440 : f32 to vector<4x8x4xf32>
    %610 = arith.addf %608, %609 : vector<4x8x4xf32>
    %611 = arith.mulf %610, %597 : vector<4x8x4xf32>
    %cst_441 = arith.constant 0.000000e+00 : f32
    %612 = vector.broadcast %cst_441 : f32 to vector<4x8x4xf32>
    %613 = arith.subf %612, %588 : vector<4x8x4xf32>
    %614 = arith.mulf %613, %588 : vector<4x8x4xf32>
    %615 = math.exp %614 : vector<4x8x4xf32>
    %616 = arith.mulf %611, %615 : vector<4x8x4xf32>
    %cst_442 = arith.constant 1.000000e+00 : f32
    %617 = vector.broadcast %cst_442 : f32 to vector<4x8x4xf32>
    %618 = arith.subf %617, %616 : vector<4x8x4xf32>
    %cst_443 = arith.constant 0.000000e+00 : f32
    %619 = vector.broadcast %cst_443 : f32 to vector<4x8x4xf32>
    %620 = arith.cmpf oge, %587, %619 : vector<4x8x4xf32>
    %cst_444 = arith.constant 0.000000e+00 : f32
    %621 = vector.broadcast %cst_444 : f32 to vector<4x8x4xf32>
    %622 = arith.subf %621, %618 : vector<4x8x4xf32>
    %623 = arith.select %620, %618, %622 : vector<4x8x4xi1>, vector<4x8x4xf32>
    %cst_445 = arith.constant 1.000000e+00 : f32
    %624 = vector.broadcast %cst_445 : f32 to vector<4x8x4xf32>
    %625 = arith.addf %624, %623 : vector<4x8x4xf32>
    %626 = arith.mulf %585, %625 : vector<4x8x4xf32>
    %c4_446 = arith.constant 4 : index
    %c0_447 = arith.constant 0 : index
    %627 = vector.load %arg9[%c4_446, %c0_447] : memref<12x4xf32, #tpu.memory_space<vmem>>, vector<1x4xf32>
    %628 = vector.shape_cast %627 : vector<1x4xf32> to vector<1x1x4xf32>
    %629 = vector.broadcast %628 : vector<1x1x4xf32> to vector<4x8x4xf32>
    %630 = arith.mulf %626, %629 : vector<4x8x4xf32>
    %c6_448 = arith.constant 6 : index
    %c0_449 = arith.constant 0 : index
    %631 = vector.load %arg9[%c6_448, %c0_449] : memref<12x4xf32, #tpu.memory_space<vmem>>, vector<1x4xf32>
    %632 = vector.shape_cast %631 : vector<1x4xf32> to vector<1x1x4xf32>
    %633 = vector.broadcast %632 : vector<1x1x4xf32> to vector<4x8x4xf32>
    %634 = arith.addf %630, %633 : vector<4x8x4xf32>
    %635 = vector.shape_cast %634 : vector<4x8x4xf32> to vector<32x4xf32>
    %636 = arith.truncf %635 : vector<32x4xf32> to vector<32x4xbf16>
    %c7_450 = arith.constant 7 : index
    %c0_451 = arith.constant 0 : index
    %c0_452 = arith.constant 0 : index
    %c0_453 = arith.constant 0 : index
    %637 = vector.load %arg12[%c7_450, %c0_451, %c0_452, %c0_453] : memref<8x5x9x4xf32, #tpu.memory_space<vmem>>, vector<1x4x8x4xf32>
    %638 = vector.shape_cast %637 : vector<1x4x8x4xf32> to vector<4x8x4xf32>
    %c9_454 = arith.constant 9 : index
    %c0_455 = arith.constant 0 : index
    %639 = vector.load %arg4[%c9_454, %c0_455] : memref<18x4xf32, #tpu.memory_space<vmem>>, vector<1x4xf32>
    %640 = vector.shape_cast %639 : vector<1x4xf32> to vector<1x1x4xf32>
    %641 = vector.broadcast %640 : vector<1x1x4xf32> to vector<4x8x4xf32>
    %642 = arith.mulf %638, %641 : vector<4x8x4xf32>
    %643 = arith.addf %19, %642 : vector<4x8x4xf32>
    %c6_456 = arith.constant 6 : index
    %c0_457 = arith.constant 0 : index
    %c1_458 = arith.constant 1 : index
    %c0_459 = arith.constant 0 : index
    %644 = vector.load %arg12[%c6_456, %c0_457, %c1_458, %c0_459] : memref<8x5x9x4xf32, #tpu.memory_space<vmem>>, vector<1x4x8x4xf32>
    %645 = vector.shape_cast %644 : vector<1x4x8x4xf32> to vector<4x8x4xf32>
    %c10_460 = arith.constant 10 : index
    %c0_461 = arith.constant 0 : index
    %646 = vector.load %arg4[%c10_460, %c0_461] : memref<18x4xf32, #tpu.memory_space<vmem>>, vector<1x4xf32>
    %647 = vector.shape_cast %646 : vector<1x4xf32> to vector<1x1x4xf32>
    %648 = vector.broadcast %647 : vector<1x1x4xf32> to vector<4x8x4xf32>
    %649 = arith.mulf %645, %648 : vector<4x8x4xf32>
    %650 = arith.addf %643, %649 : vector<4x8x4xf32>
    %c7_462 = arith.constant 7 : index
    %c0_463 = arith.constant 0 : index
    %c1_464 = arith.constant 1 : index
    %c0_465 = arith.constant 0 : index
    %651 = vector.load %arg12[%c7_462, %c0_463, %c1_464, %c0_465] : memref<8x5x9x4xf32, #tpu.memory_space<vmem>>, vector<1x4x8x4xf32>
    %652 = vector.shape_cast %651 : vector<1x4x8x4xf32> to vector<4x8x4xf32>
    %c11_466 = arith.constant 11 : index
    %c0_467 = arith.constant 0 : index
    %653 = vector.load %arg4[%c11_466, %c0_467] : memref<18x4xf32, #tpu.memory_space<vmem>>, vector<1x4xf32>
    %654 = vector.shape_cast %653 : vector<1x4xf32> to vector<1x1x4xf32>
    %655 = vector.broadcast %654 : vector<1x1x4xf32> to vector<4x8x4xf32>
    %656 = arith.mulf %652, %655 : vector<4x8x4xf32>
    %657 = arith.addf %650, %656 : vector<4x8x4xf32>
    %c5_468 = arith.constant 5 : index
    %c1_469 = arith.constant 1 : index
    %c0_470 = arith.constant 0 : index
    %c0_471 = arith.constant 0 : index
    %658 = vector.load %arg12[%c5_468, %c1_469, %c0_470, %c0_471] : memref<8x5x9x4xf32, #tpu.memory_space<vmem>>, vector<1x4x8x4xf32>
    %659 = vector.shape_cast %658 : vector<1x4x8x4xf32> to vector<4x8x4xf32>
    %c12_472 = arith.constant 12 : index
    %c0_473 = arith.constant 0 : index
    %660 = vector.load %arg4[%c12_472, %c0_473] : memref<18x4xf32, #tpu.memory_space<vmem>>, vector<1x4xf32>
    %661 = vector.shape_cast %660 : vector<1x4xf32> to vector<1x1x4xf32>
    %662 = vector.broadcast %661 : vector<1x1x4xf32> to vector<4x8x4xf32>
    %663 = arith.mulf %659, %662 : vector<4x8x4xf32>
    %664 = arith.addf %657, %663 : vector<4x8x4xf32>
    %c4_474 = arith.constant 4 : index
    %c1_475 = arith.constant 1 : index
    %c1_476 = arith.constant 1 : index
    %c0_477 = arith.constant 0 : index
    %665 = vector.load %arg12[%c4_474, %c1_475, %c1_476, %c0_477] : memref<8x5x9x4xf32, #tpu.memory_space<vmem>>, vector<1x4x8x4xf32>
    %666 = vector.shape_cast %665 : vector<1x4x8x4xf32> to vector<4x8x4xf32>
    %c13_478 = arith.constant 13 : index
    %c0_479 = arith.constant 0 : index
    %667 = vector.load %arg4[%c13_478, %c0_479] : memref<18x4xf32, #tpu.memory_space<vmem>>, vector<1x4xf32>
    %668 = vector.shape_cast %667 : vector<1x4xf32> to vector<1x1x4xf32>
    %669 = vector.broadcast %668 : vector<1x1x4xf32> to vector<4x8x4xf32>
    %670 = arith.mulf %666, %669 : vector<4x8x4xf32>
    %671 = arith.addf %664, %670 : vector<4x8x4xf32>
    %c5_480 = arith.constant 5 : index
    %c1_481 = arith.constant 1 : index
    %c1_482 = arith.constant 1 : index
    %c0_483 = arith.constant 0 : index
    %672 = vector.load %arg12[%c5_480, %c1_481, %c1_482, %c0_483] : memref<8x5x9x4xf32, #tpu.memory_space<vmem>>, vector<1x4x8x4xf32>
    %673 = vector.shape_cast %672 : vector<1x4x8x4xf32> to vector<4x8x4xf32>
    %c14_484 = arith.constant 14 : index
    %c0_485 = arith.constant 0 : index
    %674 = vector.load %arg4[%c14_484, %c0_485] : memref<18x4xf32, #tpu.memory_space<vmem>>, vector<1x4xf32>
    %675 = vector.shape_cast %674 : vector<1x4xf32> to vector<1x1x4xf32>
    %676 = vector.broadcast %675 : vector<1x1x4xf32> to vector<4x8x4xf32>
    %677 = arith.mulf %673, %676 : vector<4x8x4xf32>
    %678 = arith.addf %671, %677 : vector<4x8x4xf32>
    %c7_486 = arith.constant 7 : index
    %c1_487 = arith.constant 1 : index
    %c0_488 = arith.constant 0 : index
    %c0_489 = arith.constant 0 : index
    %679 = vector.load %arg12[%c7_486, %c1_487, %c0_488, %c0_489] : memref<8x5x9x4xf32, #tpu.memory_space<vmem>>, vector<1x4x8x4xf32>
    %680 = vector.shape_cast %679 : vector<1x4x8x4xf32> to vector<4x8x4xf32>
    %c15_490 = arith.constant 15 : index
    %c0_491 = arith.constant 0 : index
    %681 = vector.load %arg4[%c15_490, %c0_491] : memref<18x4xf32, #tpu.memory_space<vmem>>, vector<1x4xf32>
    %682 = vector.shape_cast %681 : vector<1x4xf32> to vector<1x1x4xf32>
    %683 = vector.broadcast %682 : vector<1x1x4xf32> to vector<4x8x4xf32>
    %684 = arith.mulf %680, %683 : vector<4x8x4xf32>
    %685 = arith.addf %678, %684 : vector<4x8x4xf32>
    %c6_492 = arith.constant 6 : index
    %c1_493 = arith.constant 1 : index
    %c1_494 = arith.constant 1 : index
    %c0_495 = arith.constant 0 : index
    %686 = vector.load %arg12[%c6_492, %c1_493, %c1_494, %c0_495] : memref<8x5x9x4xf32, #tpu.memory_space<vmem>>, vector<1x4x8x4xf32>
    %687 = vector.shape_cast %686 : vector<1x4x8x4xf32> to vector<4x8x4xf32>
    %c16_496 = arith.constant 16 : index
    %c0_497 = arith.constant 0 : index
    %688 = vector.load %arg4[%c16_496, %c0_497] : memref<18x4xf32, #tpu.memory_space<vmem>>, vector<1x4xf32>
    %689 = vector.shape_cast %688 : vector<1x4xf32> to vector<1x1x4xf32>
    %690 = vector.broadcast %689 : vector<1x1x4xf32> to vector<4x8x4xf32>
    %691 = arith.mulf %687, %690 : vector<4x8x4xf32>
    %692 = arith.addf %685, %691 : vector<4x8x4xf32>
    %c7_498 = arith.constant 7 : index
    %c1_499 = arith.constant 1 : index
    %c1_500 = arith.constant 1 : index
    %c0_501 = arith.constant 0 : index
    %693 = vector.load %arg12[%c7_498, %c1_499, %c1_500, %c0_501] : memref<8x5x9x4xf32, #tpu.memory_space<vmem>>, vector<1x4x8x4xf32>
    %694 = vector.shape_cast %693 : vector<1x4x8x4xf32> to vector<4x8x4xf32>
    %c17_502 = arith.constant 17 : index
    %c0_503 = arith.constant 0 : index
    %695 = vector.load %arg4[%c17_502, %c0_503] : memref<18x4xf32, #tpu.memory_space<vmem>>, vector<1x4xf32>
    %696 = vector.shape_cast %695 : vector<1x4xf32> to vector<1x1x4xf32>
    %697 = vector.broadcast %696 : vector<1x1x4xf32> to vector<4x8x4xf32>
    %698 = arith.mulf %694, %697 : vector<4x8x4xf32>
    %699 = arith.addf %692, %698 : vector<4x8x4xf32>
    %cst_504 = arith.constant 5.000000e-01 : f32
    %700 = vector.broadcast %cst_504 : f32 to vector<4x8x4xf32>
    %701 = arith.mulf %700, %699 : vector<4x8x4xf32>
    %cst_505 = arith.constant 1.41421354 : f32
    %702 = vector.broadcast %cst_505 : f32 to vector<4x8x4xf32>
    %703 = arith.divf %699, %702 : vector<4x8x4xf32>
    %704 = math.absf %703 : vector<4x8x4xf32>
    %cst_506 = arith.constant 0.327591091 : f32
    %705 = vector.broadcast %cst_506 : f32 to vector<4x8x4xf32>
    %706 = arith.mulf %705, %704 : vector<4x8x4xf32>
    %cst_507 = arith.constant 1.000000e+00 : f32
    %707 = vector.broadcast %cst_507 : f32 to vector<4x8x4xf32>
    %708 = arith.addf %707, %706 : vector<4x8x4xf32>
    %709 = tpu.reciprocal %708 {approx = true} : vector<4x8x4xf32> -> vector<4x8x4xf32>
    %710 = arith.mulf %708, %709 : vector<4x8x4xf32>
    %cst_508 = arith.constant 2.000000e+00 : f32
    %711 = vector.broadcast %cst_508 : f32 to vector<4x8x4xf32>
    %712 = arith.subf %711, %710 : vector<4x8x4xf32>
    %713 = arith.mulf %709, %712 : vector<4x8x4xf32>
    %cst_509 = arith.constant 1.06140542 : f32
    %714 = vector.broadcast %cst_509 : f32 to vector<4x8x4xf32>
    %715 = arith.mulf %714, %713 : vector<4x8x4xf32>
    %cst_510 = arith.constant -1.45315206 : f32
    %716 = vector.broadcast %cst_510 : f32 to vector<4x8x4xf32>
    %717 = arith.addf %715, %716 : vector<4x8x4xf32>
    %718 = arith.mulf %717, %713 : vector<4x8x4xf32>
    %cst_511 = arith.constant 1.42141378 : f32
    %719 = vector.broadcast %cst_511 : f32 to vector<4x8x4xf32>
    %720 = arith.addf %718, %719 : vector<4x8x4xf32>
    %721 = arith.mulf %720, %713 : vector<4x8x4xf32>
    %cst_512 = arith.constant -0.284496725 : f32
    %722 = vector.broadcast %cst_512 : f32 to vector<4x8x4xf32>
    %723 = arith.addf %721, %722 : vector<4x8x4xf32>
    %724 = arith.mulf %723, %713 : vector<4x8x4xf32>
    %cst_513 = arith.constant 0.254829586 : f32
    %725 = vector.broadcast %cst_513 : f32 to vector<4x8x4xf32>
    %726 = arith.addf %724, %725 : vector<4x8x4xf32>
    %727 = arith.mulf %726, %713 : vector<4x8x4xf32>
    %cst_514 = arith.constant 0.000000e+00 : f32
    %728 = vector.broadcast %cst_514 : f32 to vector<4x8x4xf32>
    %729 = arith.subf %728, %704 : vector<4x8x4xf32>
    %730 = arith.mulf %729, %704 : vector<4x8x4xf32>
    %731 = math.exp %730 : vector<4x8x4xf32>
    %732 = arith.mulf %727, %731 : vector<4x8x4xf32>
    %cst_515 = arith.constant 1.000000e+00 : f32
    %733 = vector.broadcast %cst_515 : f32 to vector<4x8x4xf32>
    %734 = arith.subf %733, %732 : vector<4x8x4xf32>
    %cst_516 = arith.constant 0.000000e+00 : f32
    %735 = vector.broadcast %cst_516 : f32 to vector<4x8x4xf32>
    %736 = arith.cmpf oge, %703, %735 : vector<4x8x4xf32>
    %cst_517 = arith.constant 0.000000e+00 : f32
    %737 = vector.broadcast %cst_517 : f32 to vector<4x8x4xf32>
    %738 = arith.subf %737, %734 : vector<4x8x4xf32>
    %739 = arith.select %736, %734, %738 : vector<4x8x4xi1>, vector<4x8x4xf32>
    %cst_518 = arith.constant 1.000000e+00 : f32
    %740 = vector.broadcast %cst_518 : f32 to vector<4x8x4xf32>
    %741 = arith.addf %740, %739 : vector<4x8x4xf32>
    %742 = arith.mulf %701, %741 : vector<4x8x4xf32>
    %c5_519 = arith.constant 5 : index
    %c0_520 = arith.constant 0 : index
    %743 = vector.load %arg9[%c5_519, %c0_520] : memref<12x4xf32, #tpu.memory_space<vmem>>, vector<1x4xf32>
    %744 = vector.shape_cast %743 : vector<1x4xf32> to vector<1x1x4xf32>
    %745 = vector.broadcast %744 : vector<1x1x4xf32> to vector<4x8x4xf32>
    %746 = arith.mulf %742, %745 : vector<4x8x4xf32>
    %c7_521 = arith.constant 7 : index
    %c0_522 = arith.constant 0 : index
    %747 = vector.load %arg9[%c7_521, %c0_522] : memref<12x4xf32, #tpu.memory_space<vmem>>, vector<1x4xf32>
    %748 = vector.shape_cast %747 : vector<1x4xf32> to vector<1x1x4xf32>
    %749 = vector.broadcast %748 : vector<1x1x4xf32> to vector<4x8x4xf32>
    %750 = arith.addf %746, %749 : vector<4x8x4xf32>
    %751 = vector.shape_cast %750 : vector<4x8x4xf32> to vector<32x4xf32>
    %752 = arith.truncf %751 : vector<32x4xf32> to vector<32x4xbf16>
    %c0_523 = arith.constant 0 : index
    %c3_524 = arith.constant 3 : index
    %c1_525 = arith.constant 1 : index
    %c0_526 = arith.constant 0 : index
    %c0_527 = arith.constant 0 : index
    %753 = vector.load %arg2[%c0_523, %c3_524, %c1_525, %c0_526, %c0_527] : memref<1x4x6x9x4xf32, #tpu.memory_space<vmem>>, vector<1x1x4x8x4xf32>
    %754 = vector.shape_cast %753 : vector<1x1x4x8x4xf32> to vector<4x8x4xf32>
    %c0_528 = arith.constant 0 : index
    %c1_529 = arith.constant 1 : index
    %c2_530 = arith.constant 2 : index
    %c0_531 = arith.constant 0 : index
    %c0_532 = arith.constant 0 : index
    %755 = vector.load %arg2[%c0_528, %c1_529, %c2_530, %c0_531, %c0_532] : memref<1x4x6x9x4xf32, #tpu.memory_space<vmem>>, vector<1x1x4x8x4xf32>
    %756 = vector.shape_cast %755 : vector<1x1x4x8x4xf32> to vector<4x8x4xf32>
    %c0_533 = arith.constant 0 : index
    %c2_534 = arith.constant 2 : index
    %c1_535 = arith.constant 1 : index
    %c1_536 = arith.constant 1 : index
    %c0_537 = arith.constant 0 : index
    %757 = vector.load %arg2[%c0_533, %c2_534, %c1_535, %c1_536, %c0_537] : memref<1x4x6x9x4xf32, #tpu.memory_space<vmem>>, vector<1x1x4x8x4xf32>
    %758 = vector.shape_cast %757 : vector<1x1x4x8x4xf32> to vector<4x8x4xf32>
    %c0_538 = arith.constant 0 : index
    %c0_539 = arith.constant 0 : index
    %c2_540 = arith.constant 2 : index
    %c1_541 = arith.constant 1 : index
    %c0_542 = arith.constant 0 : index
    %759 = vector.load %arg2[%c0_538, %c0_539, %c2_540, %c1_541, %c0_542] : memref<1x4x6x9x4xf32, #tpu.memory_space<vmem>>, vector<1x1x4x8x4xf32>
    %760 = vector.shape_cast %759 : vector<1x1x4x8x4xf32> to vector<4x8x4xf32>
    %761 = vector.shape_cast %754 : vector<4x8x4xf32> to vector<32x4xf32>
    %762 = arith.truncf %761 : vector<32x4xf32> to vector<32x4xbf16>
    %c0_543 = arith.constant 0 : index
    %c0_544 = arith.constant 0 : index
    %c0_545 = arith.constant 0 : index
    %763 = vector.load %arg5[%c0_543, %c0_544, %c0_545] : memref<4x4x8xbf16, #tpu.memory_space<vmem>>, vector<1x4x8xbf16>
    %764 = vector.shape_cast %763 : vector<1x4x8xbf16> to vector<4x8xbf16>
    %cst_546 = arith.constant dense<0.000000e+00> : vector<32x8xf32>
    %765 = tpu.matmul %762, %764, %cst_546 {dimension_numbers = #tpu.dot_dimension_numbers<[1], [0], [0], [1], [0, 0, 1, 1], [], []>} : vector<32x4xbf16>, vector<4x8xbf16>, vector<32x8xf32> -> vector<32x8xf32>
    %766 = vector.shape_cast %756 : vector<4x8x4xf32> to vector<32x4xf32>
    %767 = arith.truncf %766 : vector<32x4xf32> to vector<32x4xbf16>
    %c1_547 = arith.constant 1 : index
    %c0_548 = arith.constant 0 : index
    %c0_549 = arith.constant 0 : index
    %768 = vector.load %arg5[%c1_547, %c0_548, %c0_549] : memref<4x4x8xbf16, #tpu.memory_space<vmem>>, vector<1x4x8xbf16>
    %769 = vector.shape_cast %768 : vector<1x4x8xbf16> to vector<4x8xbf16>
    %cst_550 = arith.constant dense<0.000000e+00> : vector<32x8xf32>
    %770 = tpu.matmul %767, %769, %cst_550 {dimension_numbers = #tpu.dot_dimension_numbers<[1], [0], [0], [1], [0, 0, 1, 1], [], []>} : vector<32x4xbf16>, vector<4x8xbf16>, vector<32x8xf32> -> vector<32x8xf32>
    %771 = arith.addf %765, %770 : vector<32x8xf32>
    %772 = vector.shape_cast %758 : vector<4x8x4xf32> to vector<32x4xf32>
    %773 = arith.truncf %772 : vector<32x4xf32> to vector<32x4xbf16>
    %c2_551 = arith.constant 2 : index
    %c0_552 = arith.constant 0 : index
    %c0_553 = arith.constant 0 : index
    %774 = vector.load %arg5[%c2_551, %c0_552, %c0_553] : memref<4x4x8xbf16, #tpu.memory_space<vmem>>, vector<1x4x8xbf16>
    %775 = vector.shape_cast %774 : vector<1x4x8xbf16> to vector<4x8xbf16>
    %cst_554 = arith.constant dense<0.000000e+00> : vector<32x8xf32>
    %776 = tpu.matmul %773, %775, %cst_554 {dimension_numbers = #tpu.dot_dimension_numbers<[1], [0], [0], [1], [0, 0, 1, 1], [], []>} : vector<32x4xbf16>, vector<4x8xbf16>, vector<32x8xf32> -> vector<32x8xf32>
    %777 = arith.addf %771, %776 : vector<32x8xf32>
    %778 = vector.shape_cast %760 : vector<4x8x4xf32> to vector<32x4xf32>
    %779 = arith.truncf %778 : vector<32x4xf32> to vector<32x4xbf16>
    %c3_555 = arith.constant 3 : index
    %c0_556 = arith.constant 0 : index
    %c0_557 = arith.constant 0 : index
    %780 = vector.load %arg5[%c3_555, %c0_556, %c0_557] : memref<4x4x8xbf16, #tpu.memory_space<vmem>>, vector<1x4x8xbf16>
    %781 = vector.shape_cast %780 : vector<1x4x8xbf16> to vector<4x8xbf16>
    %cst_558 = arith.constant dense<0.000000e+00> : vector<32x8xf32>
    %782 = tpu.matmul %779, %781, %cst_558 {dimension_numbers = #tpu.dot_dimension_numbers<[1], [0], [0], [1], [0, 0, 1, 1], [], []>} : vector<32x4xbf16>, vector<4x8xbf16>, vector<32x8xf32> -> vector<32x8xf32>
    %783 = arith.addf %777, %782 : vector<32x8xf32>
    %c0_559 = arith.constant 0 : index
    %c0_560 = arith.constant 0 : index
    %784 = vector.load %arg10[%c0_559, %c0_560] : memref<4x8xf32, #tpu.memory_space<vmem>>, vector<1x8xf32>
    %785 = vector.broadcast %784 : vector<1x8xf32> to vector<32x8xf32>
    %786 = arith.addf %783, %785 : vector<32x8xf32>
    %c1_561 = arith.constant 1 : index
    %c0_562 = arith.constant 0 : index
    %787 = vector.load %arg10[%c1_561, %c0_562] : memref<4x8xf32, #tpu.memory_space<vmem>>, vector<1x8xf32>
    %788 = vector.broadcast %787 : vector<1x8xf32> to vector<32x8xf32>
    %789 = arith.mulf %786, %788 : vector<32x8xf32>
    %c2_563 = arith.constant 2 : index
    %c0_564 = arith.constant 0 : index
    %790 = vector.load %arg10[%c2_563, %c0_564] : memref<4x8xf32, #tpu.memory_space<vmem>>, vector<1x8xf32>
    %791 = vector.broadcast %790 : vector<1x8xf32> to vector<32x8xf32>
    %792 = arith.addf %789, %791 : vector<32x8xf32>
    %793 = arith.truncf %792 : vector<32x8xf32> to vector<32x8xbf16>
    %c0_565 = arith.constant 0 : index
    %c0_566 = arith.constant 0 : index
    %794 = vector.load %arg8[%c0_565, %c0_566] : memref<8x8xbf16, #tpu.memory_space<vmem>>, vector<8x8xbf16>
    %cst_567 = arith.constant dense<0.000000e+00> : vector<32x8xf32>
    %795 = tpu.matmul %793, %794, %cst_567 {dimension_numbers = #tpu.dot_dimension_numbers<[1], [0], [0], [1], [0, 0, 1, 1], [], []>} : vector<32x8xbf16>, vector<8x8xbf16>, vector<32x8xf32> -> vector<32x8xf32>
    %c0_568 = arith.constant 0 : index
    %c0_569 = arith.constant 0 : index
    %c0_570 = arith.constant 0 : index
    %796 = vector.load %arg6[%c0_568, %c0_569, %c0_570] : memref<2x4x8xbf16, #tpu.memory_space<vmem>>, vector<1x4x8xbf16>
    %797 = vector.shape_cast %796 : vector<1x4x8xbf16> to vector<4x8xbf16>
    %cst_571 = arith.constant dense<0.000000e+00> : vector<32x8xf32>
    %798 = tpu.matmul %636, %797, %cst_571 {dimension_numbers = #tpu.dot_dimension_numbers<[1], [0], [0], [1], [0, 0, 1, 1], [], []>} : vector<32x4xbf16>, vector<4x8xbf16>, vector<32x8xf32> -> vector<32x8xf32>
    %799 = arith.addf %795, %798 : vector<32x8xf32>
    %c0_572 = arith.constant 0 : index
    %c0_573 = arith.constant 0 : index
    %c0_574 = arith.constant 0 : index
    %800 = vector.load %arg7[%c0_572, %c0_573, %c0_574] : memref<2x4x8xbf16, #tpu.memory_space<vmem>>, vector<1x4x8xbf16>
    %801 = vector.shape_cast %800 : vector<1x4x8xbf16> to vector<4x8xbf16>
    %cst_575 = arith.constant dense<0.000000e+00> : vector<32x8xf32>
    %802 = tpu.matmul %510, %801, %cst_575 {dimension_numbers = #tpu.dot_dimension_numbers<[1], [0], [0], [1], [0, 0, 1, 1], [], []>} : vector<32x4xbf16>, vector<4x8xbf16>, vector<32x8xf32> -> vector<32x8xf32>
    %803 = arith.addf %799, %802 : vector<32x8xf32>
    %c1_576 = arith.constant 1 : index
    %c0_577 = arith.constant 0 : index
    %c0_578 = arith.constant 0 : index
    %804 = vector.load %arg6[%c1_576, %c0_577, %c0_578] : memref<2x4x8xbf16, #tpu.memory_space<vmem>>, vector<1x4x8xbf16>
    %805 = vector.shape_cast %804 : vector<1x4x8xbf16> to vector<4x8xbf16>
    %cst_579 = arith.constant dense<0.000000e+00> : vector<32x8xf32>
    %806 = tpu.matmul %752, %805, %cst_579 {dimension_numbers = #tpu.dot_dimension_numbers<[1], [0], [0], [1], [0, 0, 1, 1], [], []>} : vector<32x4xbf16>, vector<4x8xbf16>, vector<32x8xf32> -> vector<32x8xf32>
    %807 = arith.addf %803, %806 : vector<32x8xf32>
    %c1_580 = arith.constant 1 : index
    %c0_581 = arith.constant 0 : index
    %c0_582 = arith.constant 0 : index
    %808 = vector.load %arg7[%c1_580, %c0_581, %c0_582] : memref<2x4x8xbf16, #tpu.memory_space<vmem>>, vector<1x4x8xbf16>
    %809 = vector.shape_cast %808 : vector<1x4x8xbf16> to vector<4x8xbf16>
    %cst_583 = arith.constant dense<0.000000e+00> : vector<32x8xf32>
    %810 = tpu.matmul %520, %809, %cst_583 {dimension_numbers = #tpu.dot_dimension_numbers<[1], [0], [0], [1], [0, 0, 1, 1], [], []>} : vector<32x4xbf16>, vector<4x8xbf16>, vector<32x8xf32> -> vector<32x8xf32>
    %811 = arith.addf %807, %810 : vector<32x8xf32>
    %c3_584 = arith.constant 3 : index
    %c0_585 = arith.constant 0 : index
    %812 = vector.load %arg10[%c3_584, %c0_585] : memref<4x8xf32, #tpu.memory_space<vmem>>, vector<1x8xf32>
    %813 = vector.broadcast %812 : vector<1x8xf32> to vector<32x8xf32>
    %814 = arith.addf %811, %813 : vector<32x8xf32>
    %c0_586 = arith.constant 0 : index
    %c0_587 = arith.constant 0 : index
    %c0_588 = arith.constant 0 : index
    %815 = vector.load %arg11[%c0_586, %c0_587, %c0_588] : memref<1x32x8xf32, #tpu.memory_space<vmem>>, vector<1x32x8xf32>
    %816 = vector.shape_cast %815 : vector<1x32x8xf32> to vector<32x8xf32>
    %817 = vector.shape_cast %814 : vector<32x8xf32> to vector<1x32x8xf32>
    tpu.vector_store %arg11[%c0_586, %c0_587, %c0_588], %817 {strides = array<i32>} : memref<1x32x8xf32, #tpu.memory_space<vmem>>, vector<1x32x8xf32>,
    return
  }
  func.func @transform_0(%arg0: i32, %arg1: i32) -> (i32, i32, i32, i32, i32) {
    %c2_i32 = arith.constant 2 : i32
    %0 = arith.muli %arg0, %c2_i32 : i32
    %1 = arith.addi %0, %arg1 : i32
    %c0_i32 = arith.constant 0 : i32
    %c0_i32_0 = arith.constant 0 : i32
    %c0_i32_1 = arith.constant 0 : i32
    %c0_i32_2 = arith.constant 0 : i32
    %c0_i32_3 = arith.constant 0 : i32
    return %1, %c0_i32, %c0_i32_0, %c0_i32_1, %c0_i32_2 : i32, i32, i32, i32, i32
  }
  func.func @transform_1(%arg0: i32, %arg1: i32) -> (i32, i32) {
    %c0_i32 = arith.constant 0 : i32
    %c0_i32_0 = arith.constant 0 : i32
    %c0_i32_1 = arith.constant 0 : i32
    return %c0_i32, %c0_i32_0 : i32, i32
  }
  func.func @transform_2(%arg0: i32, %arg1: i32) -> (i32, i32) {
    %c0_i32 = arith.constant 0 : i32
    %c0_i32_0 = arith.constant 0 : i32
    %c0_i32_1 = arith.constant 0 : i32
    return %c0_i32, %c0_i32_0 : i32, i32
  }
  func.func @transform_3(%arg0: i32, %arg1: i32) -> (i32, i32, i32) {
    %c0_i32 = arith.constant 0 : i32
    %c0_i32_0 = arith.constant 0 : i32
    %c0_i32_1 = arith.constant 0 : i32
    %c0_i32_2 = arith.constant 0 : i32
    return %c0_i32, %c0_i32_0, %c0_i32_1 : i32, i32, i32
  }
  func.func @transform_4(%arg0: i32, %arg1: i32) -> (i32, i32, i32) {
    %c0_i32 = arith.constant 0 : i32
    %c0_i32_0 = arith.constant 0 : i32
    %c0_i32_1 = arith.constant 0 : i32
    %c0_i32_2 = arith.constant 0 : i32
    return %c0_i32, %c0_i32_0, %c0_i32_1 : i32, i32, i32
  }
  func.func @transform_5(%arg0: i32, %arg1: i32) -> (i32, i32, i32) {
    %c0_i32 = arith.constant 0 : i32
    %c0_i32_0 = arith.constant 0 : i32
    %c0_i32_1 = arith.constant 0 : i32
    %c0_i32_2 = arith.constant 0 : i32
    return %c0_i32, %c0_i32_0, %c0_i32_1 : i32, i32, i32
  }
  func.func @transform_6(%arg0: i32, %arg1: i32) -> (i32, i32) {
    %c0_i32 = arith.constant 0 : i32
    %c0_i32_0 = arith.constant 0 : i32
    %c0_i32_1 = arith.constant 0 : i32
    return %c0_i32, %c0_i32_0 : i32, i32
  }
  func.func @transform_7(%arg0: i32, %arg1: i32) -> (i32, i32) {
    %c0_i32 = arith.constant 0 : i32
    %c0_i32_0 = arith.constant 0 : i32
    %c0_i32_1 = arith.constant 0 : i32
    return %c0_i32, %c0_i32_0 : i32, i32
  }
  func.func @transform_8(%arg0: i32, %arg1: i32) -> (i32, i32) {
    %c0_i32 = arith.constant 0 : i32
    %c0_i32_0 = arith.constant 0 : i32
    %c0_i32_1 = arith.constant 0 : i32
    return %c0_i32, %c0_i32_0 : i32, i32
  }
  func.func @transform_9(%arg0: i32, %arg1: i32) -> (i32, i32, i32) {
    %c2_i32 = arith.constant 2 : i32
    %0 = arith.muli %arg0, %c2_i32 : i32
    %1 = arith.addi %0, %arg1 : i32
    %c0_i32 = arith.constant 0 : i32
    %c0_i32_0 = arith.constant 0 : i32
    %c0_i32_1 = arith.constant 0 : i32
    return %1, %c0_i32, %c0_i32_0 : i32, i32, i32
  }
}

</mosaic_0001>

<llo_original>
// kernel: tpu_custom_call.1
$region0: #{tpu_custom_call.1}
  #allocation0 [shape = 'u32[]', space=smem, size = 0x4, offset = 0x4, fixed_abs, tag = 'smem constant byte address 0x4 - core index']
  #allocation1 [shape = 'u32[144,128]{1,0:T(1,128)}', space=vmem, size = 0x12000, scoped, tag = 'internal scratch']
  #allocation2 [shape = 'f32[8,5,9,4]{3,2,1,0:T(8,128)}', space=vmem, size = 0x50000, scoped, tag = 'scratch operand']
  %s0 = inlined_call_operand.vmem [shape: f32[4,4,6,9,4], index: 0, kind: input, shape index: {}]
  %s1 = inlined_call_operand.vmem [shape: f32[18,4], index: 1, kind: input, shape index: {}]
  %s2 = inlined_call_operand.vmem [shape: f32[18,4], index: 2, kind: input, shape index: {}]
  %s3 = inlined_call_operand.vmem [shape: bf16[4,4,8], index: 3, kind: input, shape index: {}]
  %s4 = inlined_call_operand.vmem [shape: bf16[2,4,8], index: 4, kind: input, shape index: {}]
  %s5 = inlined_call_operand.vmem [shape: bf16[2,4,8], index: 5, kind: input, shape index: {}]
  %s6 = inlined_call_operand.vmem [shape: bf16[8,8], index: 6, kind: input, shape index: {}]
  %s7 = inlined_call_operand.vmem [shape: f32[12,4], index: 7, kind: input, shape index: {}]
  %s8 = inlined_call_operand.vmem [shape: f32[4,8], index: 8, kind: input, shape index: {}]
  %s9 = inlined_call_operand.vmem [shape: f32[4,32,8], index: 9, kind: output, shape index: {}]
  %s10 = sld [smem:[#allocation0]]
  $region77: #{tpu_custom_call.1} parent=0
    _
  %s12 = ssub.s32 1, %s10
  %s13 = scalar_select 0, %s12, %s10
  loop: start=0, step=1, limit=6
  $region2: #{tpu_custom_call.1} parent=0 // loop_pre_header
    _
  $region3: #{tpu_custom_call.1} parent=0 // loop_header
    %s15 = sphi 0, %s19
    %p16 = scmp.ge.s32.totalorder %s15, 6
    %s22 = sphi 0, %s34
    %s23 = sphi 0, %s30
    %s24 = sphi 0, %s22
    %s25 = sphi 0, %s23
    %s26 = sphi 0, %s24
    %s27 = sphi 0, %s25
    %s41 = sphi 0, %s43
    %s44 = sphi 0, %s41
    %s45 = sphi 0, %s44
    %s61 = sphi 0, %s45
    %s65 = sphi 0, %s65
    %s67 = sphi 0, %s65
    %s68 = sphi 0, %s67
    %s82 = sphi 0, %s68
    %s86 = sphi 0, %s86
    %s88 = sphi 0, %s86
    %s89 = sphi 0, %s88
    %s103 = sphi 0, %s89
    %s107 = sphi 0, %s107
    %s109 = sphi 0, %s107
    %s110 = sphi 0, %s109
    %s124 = sphi 0, %s110
    %s128 = sphi 0, %s128
    %s130 = sphi 0, %s128
    %s131 = sphi 0, %s130
    %s145 = sphi 0, %s131
    %s149 = sphi 0, %s149
    %s151 = sphi 0, %s149
    %s152 = sphi 0, %s151
    %s166 = sphi 0, %s152
    %s170 = sphi 0, %s170
    %s172 = sphi 0, %s170
    %s173 = sphi 0, %s172
    %s187 = sphi 0, %s173
    %s191 = sphi 0, %s191
    %s193 = sphi 0, %s191
    %s194 = sphi 0, %s193
    %s208 = sphi 0, %s194
    %s212 = sphi 0, %s212
    %s214 = sphi 0, %s212
    %s215 = sphi 0, %s214
    %s229 = sphi 0, %s215
    %s239 = sphi 0, %s241
    %s242 = sphi 0, %s239
    %s243 = sphi 0, %s242
    %s259 = sphi 0, %s243
  $region4: #{tpu_custom_call.1} parent=0 // loop_header_branch
    %18 = sbr.rel (%p16) target = $region8
  $region5: #{tpu_custom_call.1} parent=0 // loop_body
    %s20 = ssub.s32 %s15, 1
    %s21 = ssub.s32 %s15, 2
    %s28 = sadd.s32 1, %s23
    %p29 = scmp.ge.s32.totalorder %s28, 2
    %s30 = scalar_select %p29, 0, %s28
    %s31 = sadd.s32 1, %s22
    %s32 = scalar_select %p29, %s31, %s22
    %p33 = scmp.ge.s32.totalorder %s32, 2
    %s34 = scalar_select %p33, 0, %s32
    %s35 = smul.u32 %s22, 2
    %s36 = sadd.s32 %s35, %s23
    %s37 = smul.u32 %s34, 2
    %s38 = sadd.s32 %s37, %s30
    %s39 = ssub.s32 %s36, %s38
    %p40 = scmp.eq.s32.totalorder %s39, 0
    %s42 = sadd.s32 %s41, 1
    %s43 = scalar_select %p40, %s41, %s42
    %p46 = pneg %p40
    %p47 = scmp.eq.s32.totalorder %s15, 3
    %p48 = por %p46, %p47
    %p49 = scmp.ne.s32.totalorder %s41, %s44
    %p50 = scmp.eq.s32.totalorder %s15, 0
    %p51 = por %p49, %p50
    %p52 = scmp.ne.s32.totalorder %s41, %s44
    %p53 = scmp.eq.s32.totalorder %s20, 3
    %p54 = por %p52, %p53
    %p55 = scmp.ne.s32.totalorder %s44, %s45
    %p56 = scmp.eq.s32.totalorder %s20, 0
    %p57 = por %p55, %p56
    %p58 = scmp.ne.s32.totalorder %s44, %s45
    %p59 = scmp.eq.s32.totalorder %s21, 3
    %p60 = por %p58, %p59
    %p62 = scmp.ne.s32.totalorder %s45, %s61
    %p63 = scmp.eq.s32.totalorder %s21, 0
    %p64 = por %p62, %p63
    %s66 = sadd.s32 %s65, 1
    %p69 = scmp.eq.s32.totalorder %s15, 3
    %p70 = scmp.ne.s32.totalorder %s65, %s67
    %p71 = scmp.eq.s32.totalorder %s15, 0
    %p72 = por %p70, %p71
    %p73 = scmp.ne.s32.totalorder %s65, %s67
    %p74 = scmp.eq.s32.totalorder %s20, 3
    %p75 = por %p73, %p74
    %p76 = scmp.ne.s32.totalorder %s67, %s68
    %p77 = scmp.eq.s32.totalorder %s20, 0
    %p78 = por %p76, %p77
    %p79 = scmp.ne.s32.totalorder %s67, %s68
    %p80 = scmp.eq.s32.totalorder %s21, 3
    %p81 = por %p79, %p80
    %p83 = scmp.ne.s32.totalorder %s68, %s82
    %p84 = scmp.eq.s32.totalorder %s21, 0
    %p85 = por %p83, %p84
    %s87 = sadd.s32 %s86, 1
    %p90 = scmp.eq.s32.totalorder %s15, 3
    %p91 = scmp.ne.s32.totalorder %s86, %s88
    %p92 = scmp.eq.s32.totalorder %s15, 0
    %p93 = por %p91, %p92
    %p94 = scmp.ne.s32.totalorder %s86, %s88
    %p95 = scmp.eq.s32.totalorder %s20, 3
    %p96 = por %p94, %p95
    %p97 = scmp.ne.s32.totalorder %s88, %s89
    %p98 = scmp.eq.s32.totalorder %s20, 0
    %p99 = por %p97, %p98
    %p100 = scmp.ne.s32.totalorder %s88, %s89
    %p101 = scmp.eq.s32.totalorder %s21, 3
    %p102 = por %p100, %p101
    %p104 = scmp.ne.s32.totalorder %s89, %s103
    %p105 = scmp.eq.s32.totalorder %s21, 0
    %p106 = por %p104, %p105
    %s108 = sadd.s32 %s107, 1
    %p111 = scmp.eq.s32.totalorder %s15, 3
    %p112 = scmp.ne.s32.totalorder %s107, %s109
    %p113 = scmp.eq.s32.totalorder %s15, 0
    %p114 = por %p112, %p113
    %p115 = scmp.ne.s32.totalorder %s107, %s109
    %p116 = scmp.eq.s32.totalorder %s20, 3
    %p117 = por %p115, %p116
    %p118 = scmp.ne.s32.totalorder %s109, %s110
    %p119 = scmp.eq.s32.totalorder %s20, 0
    %p120 = por %p118, %p119
    %p121 = scmp.ne.s32.totalorder %s109, %s110
    %p122 = scmp.eq.s32.totalorder %s21, 3
    %p123 = por %p121, %p122
    %p125 = scmp.ne.s32.totalorder %s110, %s124
    %p126 = scmp.eq.s32.totalorder %s21, 0
    %p127 = por %p125, %p126
    %s129 = sadd.s32 %s128, 1
    %p132 = scmp.eq.s32.totalorder %s15, 3
    %p133 = scmp.ne.s32.totalorder %s128, %s130
    %p134 = scmp.eq.s32.totalorder %s15, 0
    %p135 = por %p133, %p134
    %p136 = scmp.ne.s32.totalorder %s128, %s130
    %p137 = scmp.eq.s32.totalorder %s20, 3
    %p138 = por %p136, %p137
    %p139 = scmp.ne.s32.totalorder %s130, %s131
    %p140 = scmp.eq.s32.totalorder %s20, 0
    %p141 = por %p139, %p140
    %p142 = scmp.ne.s32.totalorder %s130, %s131
    %p143 = scmp.eq.s32.totalorder %s21, 3
    %p144 = por %p142, %p143
    %p146 = scmp.ne.s32.totalorder %s131, %s145
    %p147 = scmp.eq.s32.totalorder %s21, 0
    %p148 = por %p146, %p147
    %s150 = sadd.s32 %s149, 1
    %p153 = scmp.eq.s32.totalorder %s15, 3
    %p154 = scmp.ne.s32.totalorder %s149, %s151
    %p155 = scmp.eq.s32.totalorder %s15, 0
    %p156 = por %p154, %p155
    %p157 = scmp.ne.s32.totalorder %s149, %s151
    %p158 = scmp.eq.s32.totalorder %s20, 3
    %p159 = por %p157, %p158
    %p160 = scmp.ne.s32.totalorder %s151, %s152
    %p161 = scmp.eq.s32.totalorder %s20, 0
    %p162 = por %p160, %p161
    %p163 = scmp.ne.s32.totalorder %s151, %s152
    %p164 = scmp.eq.s32.totalorder %s21, 3
    %p165 = por %p163, %p164
    %p167 = scmp.ne.s32.totalorder %s152, %s166
    %p168 = scmp.eq.s32.totalorder %s21, 0
    %p169 = por %p167, %p168
    %s171 = sadd.s32 %s170, 1
    %p174 = scmp.eq.s32.totalorder %s15, 3
    %p175 = scmp.ne.s32.totalorder %s170, %s172
    %p176 = scmp.eq.s32.totalorder %s15, 0
    %p177 = por %p175, %p176
    %p178 = scmp.ne.s32.totalorder %s170, %s172
    %p179 = scmp.eq.s32.totalorder %s20, 3
    %p180 = por %p178, %p179
    %p181 = scmp.ne.s32.totalorder %s172, %s173
    %p182 = scmp.eq.s32.totalorder %s20, 0
    %p183 = por %p181, %p182
    %p184 = scmp.ne.s32.totalorder %s172, %s173
    %p185 = scmp.eq.s32.totalorder %s21, 3
    %p186 = por %p184, %p185
    %p188 = scmp.ne.s32.totalorder %s173, %s187
    %p189 = scmp.eq.s32.totalorder %s21, 0
    %p190 = por %p188, %p189
    %s192 = sadd.s32 %s191, 1
    %p195 = scmp.eq.s32.totalorder %s15, 3
    %p196 = scmp.ne.s32.totalorder %s191, %s193
    %p197 = scmp.eq.s32.totalorder %s15, 0
    %p198 = por %p196, %p197
    %p199 = scmp.ne.s32.totalorder %s191, %s193
    %p200 = scmp.eq.s32.totalorder %s20, 3
    %p201 = por %p199, %p200
    %p202 = scmp.ne.s32.totalorder %s193, %s194
    %p203 = scmp.eq.s32.totalorder %s20, 0
    %p204 = por %p202, %p203
    %p205 = scmp.ne.s32.totalorder %s193, %s194
    %p206 = scmp.eq.s32.totalorder %s21, 3
    %p207 = por %p205, %p206
    %p209 = scmp.ne.s32.totalorder %s194, %s208
    %p210 = scmp.eq.s32.totalorder %s21, 0
    %p211 = por %p209, %p210
    %s213 = sadd.s32 %s212, 1
    %p216 = scmp.eq.s32.totalorder %s15, 3
    %p217 = scmp.ne.s32.totalorder %s212, %s214
    %p218 = scmp.eq.s32.totalorder %s15, 0
    %p219 = por %p217, %p218
    %p220 = scmp.ne.s32.totalorder %s212, %s214
    %p221 = scmp.eq.s32.totalorder %s20, 3
    %p222 = por %p220, %p221
    %p223 = scmp.ne.s32.totalorder %s214, %s215
    %p224 = scmp.eq.s32.totalorder %s20, 0
    %p225 = por %p223, %p224
    %p226 = scmp.ne.s32.totalorder %s214, %s215
    %p227 = scmp.eq.s32.totalorder %s21, 3
    %p228 = por %p226, %p227
    %p230 = scmp.ne.s32.totalorder %s215, %s229
    %p231 = scmp.eq.s32.totalorder %s21, 0
    %p232 = por %p230, %p231
    %s233 = smul.u32 %s22, 2
    %s234 = sadd.s32 %s233, %s23
    %s235 = smul.u32 %s34, 2
    %s236 = sadd.s32 %s235, %s30
    %s237 = ssub.s32 %s234, %s236
    %p238 = scmp.eq.s32.totalorder %s237, 0
    %s240 = sadd.s32 %s239, 1
    %s241 = scalar_select %p238, %s239, %s240
    %p244 = pneg %p238
    %p245 = scmp.eq.s32.totalorder %s15, 3
    %p246 = por %p244, %p245
    %p247 = scmp.ne.s32.totalorder %s239, %s242
    %p248 = scmp.eq.s32.totalorder %s15, 0
    %p249 = por %p247, %p248
    %p250 = scmp.ne.s32.totalorder %s239, %s242
    %p251 = scmp.eq.s32.totalorder %s20, 3
    %p252 = por %p250, %p251
    %p253 = scmp.ne.s32.totalorder %s242, %s243
    %p254 = scmp.eq.s32.totalorder %s20, 0
    %p255 = por %p253, %p254
    %p256 = scmp.ne.s32.totalorder %s242, %s243
    %p257 = scmp.eq.s32.totalorder %s21, 3
    %p258 = por %p256, %p257
    %p260 = scmp.ne.s32.totalorder %s243, %s259
    %p261 = scmp.eq.s32.totalorder %s21, 0
    %p262 = por %p260, %p261
    %p263 = scmp.le.s32.totalorder 1, %s15
    %p264 = scmp.lt.s32.totalorder %s15, 5
    %p265 = pnand %p263, %p264
    %p266 = pneg %p265
    // Predicated region
    $region9: #{tpu_custom_call.1} parent=5 // pred_check
      _
    $region10: #{tpu_custom_call.1} parent=5 // pred_check_branch
      %268 = sbr.rel (%p265) target = $region12
    $region11: #{tpu_custom_call.1} parent=5 // pred_region
      %s269 = ssub.s32 %s15, 1
      // Predicated region
      $region13: #{tpu_custom_call.1} parent=11 // pred_check
        %p270 = pneg %p78
      $region14: #{tpu_custom_call.1} parent=11 // pred_check_branch
        %272 = sbr.rel (%p270) target = $region16
      $region15: #{tpu_custom_call.1} parent=11 // pred_region
        _
      $region16: #{tpu_custom_call.1} parent=11 // pred_fallthru
        _
      // Predicated region
      $region17: #{tpu_custom_call.1} parent=11 // pred_check
        %p273 = pneg %p99
      $region18: #{tpu_custom_call.1} parent=11 // pred_check_branch
        %275 = sbr.rel (%p273) target = $region20
      $region19: #{tpu_custom_call.1} parent=11 // pred_region
        _
      $region20: #{tpu_custom_call.1} parent=11 // pred_fallthru
        _
      // Predicated region
      $region21: #{tpu_custom_call.1} parent=11 // pred_check
        %p276 = pneg %p120
      $region22: #{tpu_custom_call.1} parent=11 // pred_check_branch
        %278 = sbr.rel (%p276) target = $region24
      $region23: #{tpu_custom_call.1} parent=11 // pred_region
        _
      $region24: #{tpu_custom_call.1} parent=11 // pred_fallthru
        _
      // Predicated region
      $region25: #{tpu_custom_call.1} parent=11 // pred_check
        %p279 = pneg %p141
      $region26: #{tpu_custom_call.1} parent=11 // pred_check_branch
        %281 = sbr.rel (%p279) target = $region28
      $region27: #{tpu_custom_call.1} parent=11 // pred_region
        _
      $region28: #{tpu_custom_call.1} parent=11 // pred_fallthru
        _
      // Predicated region
      $region29: #{tpu_custom_call.1} parent=11 // pred_check
        %p282 = pneg %p162
      $region30: #{tpu_custom_call.1} parent=11 // pred_check_branch
        %284 = sbr.rel (%p282) target = $region32
      $region31: #{tpu_custom_call.1} parent=11 // pred_region
        _
      $region32: #{tpu_custom_call.1} parent=11 // pred_fallthru
        _
      // Predicated region
      $region33: #{tpu_custom_call.1} parent=11 // pred_check
        %p285 = pneg %p183
      $region34: #{tpu_custom_call.1} parent=11 // pred_check_branch
        %287 = sbr.rel (%p285) target = $region36
      $region35: #{tpu_custom_call.1} parent=11 // pred_region
        _
      $region36: #{tpu_custom_call.1} parent=11 // pred_fallthru
        _
      // Predicated region
      $region37: #{tpu_custom_call.1} parent=11 // pred_check
        %p288 = pneg %p204
      $region38: #{tpu_custom_call.1} parent=11 // pred_check_branch
        %290 = sbr.rel (%p288) target = $region40
      $region39: #{tpu_custom_call.1} parent=11 // pred_region
        _
      $region40: #{tpu_custom_call.1} parent=11 // pred_fallthru
        _
      // Predicated region
      $region41: #{tpu_custom_call.1} parent=11 // pred_check
        %p291 = pneg %p225
      $region42: #{tpu_custom_call.1} parent=11 // pred_check_branch
        %293 = sbr.rel (%p291) target = $region44
      $region43: #{tpu_custom_call.1} parent=11 // pred_region
        _
      $region44: #{tpu_custom_call.1} parent=11 // pred_fallthru
        _
    $region12: #{tpu_custom_call.1} parent=5 // pred_fallthru
      _
    %p294 = scmp.lt.s32.totalorder %s15, 4
    // Predicated region
    $region45: #{tpu_custom_call.1} parent=5 // pred_check
      %p295 = pneg %p294
    $region46: #{tpu_custom_call.1} parent=5 // pred_check_branch
      %297 = sbr.rel (%p295) target = $region48
    $region47: #{tpu_custom_call.1} parent=5 // pred_region
      // Predicated region
      $region49: #{tpu_custom_call.1} parent=47 // pred_check
        %p298 = pneg %p51
      $region50: #{tpu_custom_call.1} parent=47 // pred_check_branch
        %300 = sbr.rel (%p298) target = $region52
      $region51: #{tpu_custom_call.1} parent=47 // pred_region
        %s301 = smul.u32 %s22, 2
        %s302 = sadd.s32 %s301, %s23
        %p303 = scmp.lt.s32.totalorder %s302, 3
        %s304 = scalar_select %p303, %s302, 3
        %s305 = smul.addr %s304, 48
        %s306 = smul.addr %s305, 8
        %s307 = scalar_lea.vmem %s0, %s306
        %s308 = smul.u32 %s22, 2
        %s309 = sadd.s32 %s308, %s23
      $region52: #{tpu_custom_call.1} parent=47 // pred_fallthru
        _
    $region48: #{tpu_custom_call.1} parent=5 // pred_fallthru
      _
    %p310 = scmp.le.s32.totalorder 1, %s15
    %p311 = scmp.lt.s32.totalorder %s15, 5
    %p312 = pnand %p310, %p311
    %p313 = pneg %p312
    // Predicated region
    $region53: #{tpu_custom_call.1} parent=5 // pred_check
      _
    $region54: #{tpu_custom_call.1} parent=5 // pred_check_branch
      %315 = sbr.rel (%p312) target = $region56
    $region55: #{tpu_custom_call.1} parent=5 // pred_region
      %s316 = ssub.s32 %s15, 1
      %s317 = smul.u32 %s24, 2
      %s318 = sadd.s32 %s317, %s25
      %p319 = scmp.lt.s32.totalorder %s318, 3
      %s320 = scalar_select %p319, %s318, 3
      %s321 = smul.addr %s320, 48
      %s322 = smul.addr %s321, 8
      %s323 = scalar_lea.vmem %s0, %s322
      %p324 = pneg %p57
      %p325 = pneg %p54
      %p326 = pneg %p78
      %p327 = pneg %p75
      %p328 = pneg %p99
      %p329 = pneg %p96
      %p330 = pneg %p120
      %p331 = pneg %p117
      %p332 = pneg %p141
      %p333 = pneg %p138
      %p334 = pneg %p162
      %p335 = pneg %p159
      %p336 = pneg %p183
      %p337 = pneg %p180
      %p338 = pneg %p204
      %p339 = pneg %p201
      %p340 = pneg %p225
      %p341 = pneg %p222
      %p342 = pneg %p255
      %p343 = pneg %p252
      %s344 = smul.u32 %s24, 2
      %s345 = sadd.s32 %s344, %s25
      %p346 = scmp.lt.s32.totalorder %s345, 3
      %s347 = scalar_select %p346, %s345, 3
      %s348 = smul.addr %s347, 4
      %s349 = smul.addr %s348, 8
      %s350 = scalar_lea.vmem %s9, %s349
      %s351 = smul.u32 %s24, 2
      %s352 = sadd.s32 %s351, %s25
      %p353 = scmp.lt.s32.totalorder %s352, 3
      %s354 = scalar_select %p353, %s352, 3
      %s355 = smul.addr %s354, 48
      %s356 = smul.addr %s355, 8
      %s357 = scalar_lea.vmem %s0, %s356
      %s358 = smul.u32 %s24, 2
      %s359 = sadd.s32 %s358, %s25
      %s360 = smul.u32 %s24, 2
      %s361 = sadd.s32 %s360, %s25
      %p362 = scmp.lt.s32.totalorder %s361, 3
      %s363 = scalar_select %p362, %s361, 3
      %s364 = smul.addr %s363, 4
      %s365 = smul.addr %s364, 8
      %s366 = scalar_lea.vmem %s9, %s365
      %s367 = smul.u32 %s24, 2
      %s368 = sadd.s32 %s367, %s25
      %v370 = vld [vmem:[%s7] sm:$0x1]
      %v371 = vlaneseq
      %v372 = vshrl.u32 %v371, 7
      %v373 = vsub.s32 0, %v372
      %v374 = vrot.slane %v370, %v373
      %v375 = vadd.f32 %v374, 0.0
      %v376 = vld [vmem:[%s7 + $0x1] sm:$0x1]
      %v377 = vlaneseq
      %v378 = vshrl.u32 %v377, 7
      %v379 = vsub.s32 0, %v378
      %v380 = vrot.slane %v376, %v379
      %v381 = vadd.f32 %v380, 0.0
      %v382 = vld [vmem:[%s7 + $0x2] sm:$0x1]
      %v383 = vlaneseq
      %v384 = vshrl.u32 %v383, 7
      %v385 = vsub.s32 0, %v384
      %v386 = vrot.slane %v382, %v385
      %v387 = vadd.f32 %v386, 0.0
      %v388 = vld [vmem:[%s7 + $0x3] sm:$0x1]
      %v389 = vlaneseq
      %v390 = vshrl.u32 %v389, 7
      %v391 = vsub.s32 0, %v390
      %v392 = vrot.slane %v388, %v391
      %v393 = vadd.f32 %v392, 0.0
      %s394 = scalar_lea.vmem [#allocation2], 80
      %vm395 = vcmask 24576
      %396 = vst.msk [vmem:[%s394] sm:$0x1] %vm395, 0.0
      %397 = vst.msk [vmem:[%s394 + $0x10] sm:$0x1] %vm395, 0.0
      %398 = vst.msk [vmem:[%s394 + $0x20] sm:$0x1] %vm395, 0.0
      %399 = vst.msk [vmem:[%s394 + $0x30] sm:$0x1] %vm395, 0.0
      %400 = vst.msk [vmem:[%s394 + $0x40] sm:$0x1] %vm395, 0.0
      %s401 = scalar_lea.vmem [#allocation2], 240
      %402 = vst.msk [vmem:[%s401] sm:$0x1] %vm395, 0.0
      %403 = vst.msk [vmem:[%s401 + $0x10] sm:$0x1] %vm395, 0.0
      %404 = vst.msk [vmem:[%s401 + $0x20] sm:$0x1] %vm395, 0.0
      %405 = vst.msk [vmem:[%s401 + $0x30] sm:$0x1] %vm395, 0.0
      %406 = vst.msk [vmem:[%s401 + $0x40] sm:$0x1] %vm395, 0.0
      %s407 = scalar_lea.vmem [#allocation2], 400
      %408 = vst.msk [vmem:[%s407] sm:$0x1] %vm395, 0.0
      %409 = vst.msk [vmem:[%s407 + $0x10] sm:$0x1] %vm395, 0.0
      %410 = vst.msk [vmem:[%s407 + $0x20] sm:$0x1] %vm395, 0.0
      %411 = vst.msk [vmem:[%s407 + $0x30] sm:$0x1] %vm395, 0.0
      %412 = vst.msk [vmem:[%s407 + $0x40] sm:$0x1] %vm395, 0.0
      %s413 = scalar_lea.vmem [#allocation2], 560
      %414 = vst.msk [vmem:[%s413] sm:$0x1] %vm395, 0.0
      %415 = vst.msk [vmem:[%s413 + $0x10] sm:$0x1] %vm395, 0.0
      %416 = vst.msk [vmem:[%s413 + $0x20] sm:$0x1] %vm395, 0.0
      %417 = vst.msk [vmem:[%s413 + $0x30] sm:$0x1] %vm395, 0.0
      %418 = vst.msk [vmem:[%s413 + $0x40] sm:$0x1] %vm395, 0.0
      %s419 = scalar_lea.vmem %s357, 16
      %v420 = vld [vmem:[%s419] sm:$0xff]
      %v421 = vld [vmem:[%s419 + $0x10] sm:$0xff]
      %v422 = vld [vmem:[%s419 + $0x20] sm:$0xff]
      %v423 = vld [vmem:[%s419 + $0x30] sm:$0xff]
      %v424 = vld [vmem:[%s1] sm:$0x1]
      %v425 = vlaneseq
      %v426 = vshrl.u32 %v425, 7
      %v427 = vsub.s32 0, %v426
      %v428 = vrot.slane %v424, %v427
      %v429 = vmul.f32 %v420, %v428
      %v430 = vmul.f32 %v421, %v428
      %v431 = vmul.f32 %v422, %v428
      %v432 = vmul.f32 %v423, %v428
      %v433 = vadd.f32 %v375, %v429
      %v434 = vadd.f32 %v375, %v430
      %v435 = vadd.f32 %v375, %v431
      %v436 = vadd.f32 %v375, %v432
      %v437 = vld [vmem:[%s1 + $0x9] sm:$0x1]
      %v438 = vlaneseq
      %v439 = vshrl.u32 %v438, 7
      %v440 = vsub.s32 0, %v439
      %v441 = vrot.slane %v437, %v440
      %v442 = vmul.f32 %v420, %v441
      %v443 = vmul.f32 %v421, %v441
      %v444 = vmul.f32 %v422, %v441
      %v445 = vmul.f32 %v423, %v441
      %v446 = vadd.f32 %v381, %v442
      %v447 = vadd.f32 %v381, %v443
      %v448 = vadd.f32 %v381, %v444
      %v449 = vadd.f32 %v381, %v445
      %s450 = scalar_lea.vmem %s357, 112
      %v451 = vld [vmem:[%s450] sm:$0xff]
      %v452 = vld [vmem:[%s450 + $0x10] sm:$0xff]
      %v453 = vld [vmem:[%s450 + $0x20] sm:$0xff]
      %v454 = vld [vmem:[%s450 + $0x30] sm:$0xff]
      %v455 = vld [vmem:[%s1 + $0x1] sm:$0x1]
      %v456 = vlaneseq
      %v457 = vshrl.u32 %v456, 7
      %v458 = vsub.s32 0, %v457
      %v459 = vrot.slane %v455, %v458
      %v460 = vmul.f32 %v451, %v459
      %v461 = vmul.f32 %v452, %v459
      %v462 = vmul.f32 %v453, %v459
      %v463 = vmul.f32 %v454, %v459
      %v464 = vadd.f32 %v433, %v460
      %v465 = vadd.f32 %v434, %v461
      %v466 = vadd.f32 %v435, %v462
      %v467 = vadd.f32 %v436, %v463
      %v468 = vld [vmem:[%s1 + $0xa] sm:$0x1]
      %v469 = vlaneseq
      %v470 = vshrl.u32 %v469, 7
      %v471 = vsub.s32 0, %v470
      %v472 = vrot.slane %v468, %v471
      %v473 = vmul.f32 %v451, %v472
      %v474 = vmul.f32 %v452, %v472
      %v475 = vmul.f32 %v453, %v472
      %v476 = vmul.f32 %v454, %v472
      %v477 = vadd.f32 %v446, %v473
      %v478 = vadd.f32 %v447, %v474
      %v479 = vadd.f32 %v448, %v475
      %v480 = vadd.f32 %v449, %v476
      %v481 = vld [vmem:[%s419 + $0x1] sm:$0xff]
      %v482 = vld [vmem:[%s419 + $0x11] sm:$0xff]
      %v483 = vld [vmem:[%s419 + $0x21] sm:$0xff]
      %v484 = vld [vmem:[%s419 + $0x31] sm:$0xff]
      %v485 = vld [vmem:[%s1 + $0x2] sm:$0x1]
      %v486 = vlaneseq
      %v487 = vshrl.u32 %v486, 7
      %v488 = vsub.s32 0, %v487
      %v489 = vrot.slane %v485, %v488
      %v490 = vmul.f32 %v481, %v489
      %v491 = vmul.f32 %v482, %v489
      %v492 = vmul.f32 %v483, %v489
      %v493 = vmul.f32 %v484, %v489
      %v494 = vadd.f32 %v464, %v490
      %v495 = vadd.f32 %v465, %v491
      %v496 = vadd.f32 %v466, %v492
      %v497 = vadd.f32 %v467, %v493
      %v498 = vld [vmem:[%s1 + $0xb] sm:$0x1]
      %v499 = vlaneseq
      %v500 = vshrl.u32 %v499, 7
      %v501 = vsub.s32 0, %v500
      %v502 = vrot.slane %v498, %v501
      %v503 = vmul.f32 %v481, %v502
      %v504 = vmul.f32 %v482, %v502
      %v505 = vmul.f32 %v483, %v502
      %v506 = vmul.f32 %v484, %v502
      %v507 = vadd.f32 %v477, %v503
      %v508 = vadd.f32 %v478, %v504
      %v509 = vadd.f32 %v479, %v505
      %v510 = vadd.f32 %v480, %v506
      %s511 = scalar_lea.vmem %s357, 208
      %v512 = vld [vmem:[%s511] sm:$0xff]
      %v513 = vld [vmem:[%s511 + $0x10] sm:$0xff]
      %v514 = vld [vmem:[%s511 + $0x20] sm:$0xff]
      %v515 = vld [vmem:[%s511 + $0x30] sm:$0xff]
      %v516 = vld [vmem:[%s1 + $0x3] sm:$0x1]
      %v517 = vlaneseq
      %v518 = vshrl.u32 %v517, 7
      %v519 = vsub.s32 0, %v518
      %v520 = vrot.slane %v516, %v519
      %v521 = vmul.f32 %v512, %v520
      %v522 = vmul.f32 %v513, %v520
      %v523 = vmul.f32 %v514, %v520
      %v524 = vmul.f32 %v515, %v520
      %v525 = vadd.f32 %v494, %v521
      %v526 = vadd.f32 %v495, %v522
      %v527 = vadd.f32 %v496, %v523
      %v528 = vadd.f32 %v497, %v524
      %v529 = vld [vmem:[%s1 + $0xc] sm:$0x1]
      %v530 = vlaneseq
      %v531 = vshrl.u32 %v530, 7
      %v532 = vsub.s32 0, %v531
      %v533 = vrot.slane %v529, %v532
      %v534 = vmul.f32 %v512, %v533
      %v535 = vmul.f32 %v513, %v533
      %v536 = vmul.f32 %v514, %v533
      %v537 = vmul.f32 %v515, %v533
      %v538 = vadd.f32 %v507, %v534
      %v539 = vadd.f32 %v508, %v535
      %v540 = vadd.f32 %v509, %v536
      %v541 = vadd.f32 %v510, %v537
      %s542 = scalar_lea.vmem %s357, 304
      %v543 = vld [vmem:[%s542] sm:$0xff]
      %v544 = vld [vmem:[%s542 + $0x10] sm:$0xff]
      %v545 = vld [vmem:[%s542 + $0x20] sm:$0xff]
      %v546 = vld [vmem:[%s542 + $0x30] sm:$0xff]
      %v547 = vld [vmem:[%s1 + $0x4] sm:$0x1]
      %v548 = vlaneseq
      %v549 = vshrl.u32 %v548, 7
      %v550 = vsub.s32 0, %v549
      %v551 = vrot.slane %v547, %v550
      %v552 = vmul.f32 %v543, %v551
      %v553 = vmul.f32 %v544, %v551
      %v554 = vmul.f32 %v545, %v551
      %v555 = vmul.f32 %v546, %v551
      %v556 = vadd.f32 %v525, %v552
      %v557 = vadd.f32 %v526, %v553
      %v558 = vadd.f32 %v527, %v554
      %v559 = vadd.f32 %v528, %v555
      %v560 = vld [vmem:[%s1 + $0xd] sm:$0x1]
      %v561 = vlaneseq
      %v562 = vshrl.u32 %v561, 7
      %v563 = vsub.s32 0, %v562
      %v564 = vrot.slane %v560, %v563
      %v565 = vmul.f32 %v543, %v564
      %v566 = vmul.f32 %v544, %v564
      %v567 = vmul.f32 %v545, %v564
      %v568 = vmul.f32 %v546, %v564
      %v569 = vadd.f32 %v538, %v565
      %v570 = vadd.f32 %v539, %v566
      %v571 = vadd.f32 %v540, %v567
      %v572 = vadd.f32 %v541, %v568
      %v573 = vld [vmem:[%s511 + $0x1] sm:$0xff]
      %v574 = vld [vmem:[%s511 + $0x11] sm:$0xff]
      %v575 = vld [vmem:[%s511 + $0x21] sm:$0xff]
      %v576 = vld [vmem:[%s511 + $0x31] sm:$0xff]
      %v577 = vld [vmem:[%s1 + $0x5] sm:$0x1]
      %v578 = vlaneseq
      %v579 = vshrl.u32 %v578, 7
      %v580 = vsub.s32 0, %v579
      %v581 = vrot.slane %v577, %v580
      %v582 = vmul.f32 %v573, %v581
      %v583 = vmul.f32 %v574, %v581
      %v584 = vmul.f32 %v575, %v581
      %v585 = vmul.f32 %v576, %v581
      %v586 = vadd.f32 %v556, %v582
      %v587 = vadd.f32 %v557, %v583
      %v588 = vadd.f32 %v558, %v584
      %v589 = vadd.f32 %v559, %v585
      %v590 = vld [vmem:[%s1 + $0xe] sm:$0x1]
      %v591 = vlaneseq
      %v592 = vshrl.u32 %v591, 7
      %v593 = vsub.s32 0, %v592
      %v594 = vrot.slane %v590, %v593
      %v595 = vmul.f32 %v573, %v594
      %v596 = vmul.f32 %v574, %v594
      %v597 = vmul.f32 %v575, %v594
      %v598 = vmul.f32 %v576, %v594
      %v599 = vadd.f32 %v569, %v595
      %v600 = vadd.f32 %v570, %v596
      %v601 = vadd.f32 %v571, %v597
      %v602 = vadd.f32 %v572, %v598
      %s603 = scalar_lea.vmem %s357, 32
      %v604 = vld [vmem:[%s603] sm:$0xff]
      %v605 = vld [vmem:[%s603 + $0x10] sm:$0xff]
      %v606 = vld [vmem:[%s603 + $0x20] sm:$0xff]
      %v607 = vld [vmem:[%s603 + $0x30] sm:$0xff]
      %v608 = vld [vmem:[%s1 + $0x6] sm:$0x1]
      %v609 = vlaneseq
      %v610 = vshrl.u32 %v609, 7
      %v611 = vsub.s32 0, %v610
      %v612 = vrot.slane %v608, %v611
      %v613 = vmul.f32 %v604, %v612
      %v614 = vmul.f32 %v605, %v612
      %v615 = vmul.f32 %v606, %v612
      %v616 = vmul.f32 %v607, %v612
      %v617 = vadd.f32 %v586, %v613
      %v618 = vadd.f32 %v587, %v614
      %v619 = vadd.f32 %v588, %v615
      %v620 = vadd.f32 %v589, %v616
      %v621 = vld [vmem:[%s1 + $0xf] sm:$0x1]
      %v622 = vlaneseq
      %v623 = vshrl.u32 %v622, 7
      %v624 = vsub.s32 0, %v623
      %v625 = vrot.slane %v621, %v624
      %v626 = vmul.f32 %v604, %v625
      %v627 = vmul.f32 %v605, %v625
      %v628 = vmul.f32 %v606, %v625
      %v629 = vmul.f32 %v607, %v625
      %v630 = vadd.f32 %v599, %v626
      %v631 = vadd.f32 %v600, %v627
      %v632 = vadd.f32 %v601, %v628
      %v633 = vadd.f32 %v602, %v629
      %s634 = scalar_lea.vmem %s357, 128
      %v635 = vld [vmem:[%s634] sm:$0xff]
      %v636 = vld [vmem:[%s634 + $0x10] sm:$0xff]
      %v637 = vld [vmem:[%s634 + $0x20] sm:$0xff]
      %v638 = vld [vmem:[%s634 + $0x30] sm:$0xff]
      %v639 = vld [vmem:[%s1 + $0x7] sm:$0x1]
      %v640 = vlaneseq
      %v641 = vshrl.u32 %v640, 7
      %v642 = vsub.s32 0, %v641
      %v643 = vrot.slane %v639, %v642
      %v644 = vmul.f32 %v635, %v643
      %v645 = vmul.f32 %v636, %v643
      %v646 = vmul.f32 %v637, %v643
      %v647 = vmul.f32 %v638, %v643
      %v648 = vadd.f32 %v617, %v644
      %v649 = vadd.f32 %v618, %v645
      %v650 = vadd.f32 %v619, %v646
      %v651 = vadd.f32 %v620, %v647
      %v652 = vld [vmem:[%s1 + $0x10] sm:$0x1]
      %v653 = vlaneseq
      %v654 = vshrl.u32 %v653, 7
      %v655 = vsub.s32 0, %v654
      %v656 = vrot.slane %v652, %v655
      %v657 = vmul.f32 %v635, %v656
      %v658 = vmul.f32 %v636, %v656
      %v659 = vmul.f32 %v637, %v656
      %v660 = vmul.f32 %v638, %v656
      %v661 = vadd.f32 %v630, %v657
      %v662 = vadd.f32 %v631, %v658
      %v663 = vadd.f32 %v632, %v659
      %v664 = vadd.f32 %v633, %v660
      %v665 = vld [vmem:[%s603 + $0x1] sm:$0xff]
      %v666 = vld [vmem:[%s603 + $0x11] sm:$0xff]
      %v667 = vld [vmem:[%s603 + $0x21] sm:$0xff]
      %v668 = vld [vmem:[%s603 + $0x31] sm:$0xff]
      %v669 = vld [vmem:[%s1 + $0x8] sm:$0x1]
      %v670 = vlaneseq
      %v671 = vshrl.u32 %v670, 7
      %v672 = vsub.s32 0, %v671
      %v673 = vrot.slane %v669, %v672
      %v674 = vmul.f32 %v665, %v673
      %v675 = vmul.f32 %v666, %v673
      %v676 = vmul.f32 %v667, %v673
      %v677 = vmul.f32 %v668, %v673
      %v678 = vadd.f32 %v648, %v674
      %v679 = vadd.f32 %v649, %v675
      %v680 = vadd.f32 %v650, %v676
      %v681 = vadd.f32 %v651, %v677
      %v682 = vld [vmem:[%s1 + $0x11] sm:$0x1]
      %v683 = vlaneseq
      %v684 = vshrl.u32 %v683, 7
      %v685 = vsub.s32 0, %v684
      %v686 = vrot.slane %v682, %v685
      %v687 = vmul.f32 %v665, %v686
      %v688 = vmul.f32 %v666, %v686
      %v689 = vmul.f32 %v667, %v686
      %v690 = vmul.f32 %v668, %v686
      %v691 = vadd.f32 %v661, %v687
      %v692 = vadd.f32 %v662, %v688
      %v693 = vadd.f32 %v663, %v689
      %v694 = vadd.f32 %v664, %v690
      %s695 = scalar_lea.vmem [#allocation2], 16
      %vm696 = vcmask 31744
      %697 = vst.msk [vmem:[%s695 + $0x1] sm:$0xff] %vm696, %v678
      %698 = vst.msk [vmem:[%s695 + $0x11] sm:$0xff] %vm696, %v679
      %699 = vst.msk [vmem:[%s695 + $0x21] sm:$0xff] %vm696, %v680
      %700 = vst.msk [vmem:[%s695 + $0x31] sm:$0xff] %vm696, %v681
      %s701 = scalar_lea.vmem [#allocation2], 336
      %702 = vst.msk [vmem:[%s701 + $0x1] sm:$0xff] %vm696, %v691
      %703 = vst.msk [vmem:[%s701 + $0x11] sm:$0xff] %vm696, %v692
      %704 = vst.msk [vmem:[%s701 + $0x21] sm:$0xff] %vm696, %v693
      %705 = vst.msk [vmem:[%s701 + $0x31] sm:$0xff] %vm696, %v694
      %v706 = vld [vmem:[%s450] sm:$0xff]
      %v707 = vld [vmem:[%s450 + $0x10] sm:$0xff]
      %v708 = vld [vmem:[%s450 + $0x20] sm:$0xff]
      %v709 = vld [vmem:[%s450 + $0x30] sm:$0xff]
      %v710 = vld [vmem:[%s1] sm:$0x1]
      %v711 = vlaneseq
      %v712 = vshrl.u32 %v711, 7
      %v713 = vsub.s32 0, %v712
      %v714 = vrot.slane %v710, %v713
      %v715 = vmul.f32 %v706, %v714
      %v716 = vmul.f32 %v707, %v714
      %v717 = vmul.f32 %v708, %v714
      %v718 = vmul.f32 %v709, %v714
      %v719 = vadd.f32 %v375, %v715
      %v720 = vadd.f32 %v375, %v716
      %v721 = vadd.f32 %v375, %v717
      %v722 = vadd.f32 %v375, %v718
      %v723 = vld [vmem:[%s1 + $0x9] sm:$0x1]
      %v724 = vlaneseq
      %v725 = vshrl.u32 %v724, 7
      %v726 = vsub.s32 0, %v725
      %v727 = vrot.slane %v723, %v726
      %v728 = vmul.f32 %v706, %v727
      %v729 = vmul.f32 %v707, %v727
      %v730 = vmul.f32 %v708, %v727
      %v731 = vmul.f32 %v709, %v727
      %v732 = vadd.f32 %v381, %v728
      %v733 = vadd.f32 %v381, %v729
      %v734 = vadd.f32 %v381, %v730
      %v735 = vadd.f32 %v381, %v731
      %v736 = vld [vmem:[%s419 + $0x1] sm:$0xff]
      %v737 = vld [vmem:[%s419 + $0x11] sm:$0xff]
      %v738 = vld [vmem:[%s419 + $0x21] sm:$0xff]
      %v739 = vld [vmem:[%s419 + $0x31] sm:$0xff]
      %v740 = vld [vmem:[%s1 + $0x1] sm:$0x1]
      %v741 = vlaneseq
      %v742 = vshrl.u32 %v741, 7
      %v743 = vsub.s32 0, %v742
      %v744 = vrot.slane %v740, %v743
      %v745 = vmul.f32 %v736, %v744
      %v746 = vmul.f32 %v737, %v744
      %v747 = vmul.f32 %v738, %v744
      %v748 = vmul.f32 %v739, %v744
      %v749 = vadd.f32 %v719, %v745
      %v750 = vadd.f32 %v720, %v746
      %v751 = vadd.f32 %v721, %v747
      %v752 = vadd.f32 %v722, %v748
      %v753 = vld [vmem:[%s1 + $0xa] sm:$0x1]
      %v754 = vlaneseq
      %v755 = vshrl.u32 %v754, 7
      %v756 = vsub.s32 0, %v755
      %v757 = vrot.slane %v753, %v756
      %v758 = vmul.f32 %v736, %v757
      %v759 = vmul.f32 %v737, %v757
      %v760 = vmul.f32 %v738, %v757
      %v761 = vmul.f32 %v739, %v757
      %v762 = vadd.f32 %v732, %v758
      %v763 = vadd.f32 %v733, %v759
      %v764 = vadd.f32 %v734, %v760
      %v765 = vadd.f32 %v735, %v761
      %v766 = vld [vmem:[%s450 + $0x1] sm:$0xff]
      %v767 = vld [vmem:[%s450 + $0x11] sm:$0xff]
      %v768 = vld [vmem:[%s450 + $0x21] sm:$0xff]
      %v769 = vld [vmem:[%s450 + $0x31] sm:$0xff]
      %v770 = vld [vmem:[%s1 + $0x2] sm:$0x1]
      %v771 = vlaneseq
      %v772 = vshrl.u32 %v771, 7
      %v773 = vsub.s32 0, %v772
      %v774 = vrot.slane %v770, %v773
      %v775 = vmul.f32 %v766, %v774
      %v776 = vmul.f32 %v767, %v774
      %v777 = vmul.f32 %v768, %v774
      %v778 = vmul.f32 %v769, %v774
      %v779 = vadd.f32 %v749, %v775
      %v780 = vadd.f32 %v750, %v776
      %v781 = vadd.f32 %v751, %v777
      %v782 = vadd.f32 %v752, %v778
      %v783 = vld [vmem:[%s1 + $0xb] sm:$0x1]
      %v784 = vlaneseq
      %v785 = vshrl.u32 %v784, 7
      %v786 = vsub.s32 0, %v785
      %v787 = vrot.slane %v783, %v786
      %v788 = vmul.f32 %v766, %v787
      %v789 = vmul.f32 %v767, %v787
      %v790 = vmul.f32 %v768, %v787
      %v791 = vmul.f32 %v769, %v787
      %v792 = vadd.f32 %v762, %v788
      %v793 = vadd.f32 %v763, %v789
      %v794 = vadd.f32 %v764, %v790
      %v795 = vadd.f32 %v765, %v791
      %v796 = vld [vmem:[%s542] sm:$0xff]
      %v797 = vld [vmem:[%s542 + $0x10] sm:$0xff]
      %v798 = vld [vmem:[%s542 + $0x20] sm:$0xff]
      %v799 = vld [vmem:[%s542 + $0x30] sm:$0xff]
      %v800 = vld [vmem:[%s1 + $0x3] sm:$0x1]
      %v801 = vlaneseq
      %v802 = vshrl.u32 %v801, 7
      %v803 = vsub.s32 0, %v802
      %v804 = vrot.slane %v800, %v803
      %v805 = vmul.f32 %v796, %v804
      %v806 = vmul.f32 %v797, %v804
      %v807 = vmul.f32 %v798, %v804
      %v808 = vmul.f32 %v799, %v804
      %v809 = vadd.f32 %v779, %v805
      %v810 = vadd.f32 %v780, %v806
      %v811 = vadd.f32 %v781, %v807
      %v812 = vadd.f32 %v782, %v808
      %v813 = vld [vmem:[%s1 + $0xc] sm:$0x1]
      %v814 = vlaneseq
      %v815 = vshrl.u32 %v814, 7
      %v816 = vsub.s32 0, %v815
      %v817 = vrot.slane %v813, %v816
      %v818 = vmul.f32 %v796, %v817
      %v819 = vmul.f32 %v797, %v817
      %v820 = vmul.f32 %v798, %v817
      %v821 = vmul.f32 %v799, %v817
      %v822 = vadd.f32 %v792, %v818
      %v823 = vadd.f32 %v793, %v819
      %v824 = vadd.f32 %v794, %v820
      %v825 = vadd.f32 %v795, %v821
      %v826 = vld [vmem:[%s511 + $0x1] sm:$0xff]
      %v827 = vld [vmem:[%s511 + $0x11] sm:$0xff]
      %v828 = vld [vmem:[%s511 + $0x21] sm:$0xff]
      %v829 = vld [vmem:[%s511 + $0x31] sm:$0xff]
      %v830 = vld [vmem:[%s1 + $0x4] sm:$0x1]
      %v831 = vlaneseq
      %v832 = vshrl.u32 %v831, 7
      %v833 = vsub.s32 0, %v832
      %v834 = vrot.slane %v830, %v833
      %v835 = vmul.f32 %v826, %v834
      %v836 = vmul.f32 %v827, %v834
      %v837 = vmul.f32 %v828, %v834
      %v838 = vmul.f32 %v829, %v834
      %v839 = vadd.f32 %v809, %v835
      %v840 = vadd.f32 %v810, %v836
      %v841 = vadd.f32 %v811, %v837
      %v842 = vadd.f32 %v812, %v838
      %v843 = vld [vmem:[%s1 + $0xd] sm:$0x1]
      %v844 = vlaneseq
      %v845 = vshrl.u32 %v844, 7
      %v846 = vsub.s32 0, %v845
      %v847 = vrot.slane %v843, %v846
      %v848 = vmul.f32 %v826, %v847
      %v849 = vmul.f32 %v827, %v847
      %v850 = vmul.f32 %v828, %v847
      %v851 = vmul.f32 %v829, %v847
      %v852 = vadd.f32 %v822, %v848
      %v853 = vadd.f32 %v823, %v849
      %v854 = vadd.f32 %v824, %v850
      %v855 = vadd.f32 %v825, %v851
      %v856 = vld [vmem:[%s542 + $0x1] sm:$0xff]
      %v857 = vld [vmem:[%s542 + $0x11] sm:$0xff]
      %v858 = vld [vmem:[%s542 + $0x21] sm:$0xff]
      %v859 = vld [vmem:[%s542 + $0x31] sm:$0xff]
      %v860 = vld [vmem:[%s1 + $0x5] sm:$0x1]
      %v861 = vlaneseq
      %v862 = vshrl.u32 %v861, 7
      %v863 = vsub.s32 0, %v862
      %v864 = vrot.slane %v860, %v863
      %v865 = vmul.f32 %v856, %v864
      %v866 = vmul.f32 %v857, %v864
      %v867 = vmul.f32 %v858, %v864
      %v868 = vmul.f32 %v859, %v864
      %v869 = vadd.f32 %v839, %v865
      %v870 = vadd.f32 %v840, %v866
      %v871 = vadd.f32 %v841, %v867
      %v872 = vadd.f32 %v842, %v868
      %v873 = vld [vmem:[%s1 + $0xe] sm:$0x1]
      %v874 = vlaneseq
      %v875 = vshrl.u32 %v874, 7
      %v876 = vsub.s32 0, %v875
      %v877 = vrot.slane %v873, %v876
      %v878 = vmul.f32 %v856, %v877
      %v879 = vmul.f32 %v857, %v877
      %v880 = vmul.f32 %v858, %v877
      %v881 = vmul.f32 %v859, %v877
      %v882 = vadd.f32 %v852, %v878
      %v883 = vadd.f32 %v853, %v879
      %v884 = vadd.f32 %v854, %v880
      %v885 = vadd.f32 %v855, %v881
      %v886 = vld [vmem:[%s634] sm:$0xff]
      %v887 = vld [vmem:[%s634 + $0x10] sm:$0xff]
      %v888 = vld [vmem:[%s634 + $0x20] sm:$0xff]
      %v889 = vld [vmem:[%s634 + $0x30] sm:$0xff]
      %v890 = vld [vmem:[%s1 + $0x6] sm:$0x1]
      %v891 = vlaneseq
      %v892 = vshrl.u32 %v891, 7
      %v893 = vsub.s32 0, %v892
      %v894 = vrot.slane %v890, %v893
      %v895 = vmul.f32 %v886, %v894
      %v896 = vmul.f32 %v887, %v894
      %v897 = vmul.f32 %v888, %v894
      %v898 = vmul.f32 %v889, %v894
      %v899 = vadd.f32 %v869, %v895
      %v900 = vadd.f32 %v870, %v896
      %v901 = vadd.f32 %v871, %v897
      %v902 = vadd.f32 %v872, %v898
      %v903 = vld [vmem:[%s1 + $0xf] sm:$0x1]
      %v904 = vlaneseq
      %v905 = vshrl.u32 %v904, 7
      %v906 = vsub.s32 0, %v905
      %v907 = vrot.slane %v903, %v906
      %v908 = vmul.f32 %v886, %v907
      %v909 = vmul.f32 %v887, %v907
      %v910 = vmul.f32 %v888, %v907
      %v911 = vmul.f32 %v889, %v907
      %v912 = vadd.f32 %v882, %v908
      %v913 = vadd.f32 %v883, %v909
      %v914 = vadd.f32 %v884, %v910
      %v915 = vadd.f32 %v885, %v911
      %v916 = vld [vmem:[%s603 + $0x1] sm:$0xff]
      %v917 = vld [vmem:[%s603 + $0x11] sm:$0xff]
      %v918 = vld [vmem:[%s603 + $0x21] sm:$0xff]
      %v919 = vld [vmem:[%s603 + $0x31] sm:$0xff]
      %v920 = vld [vmem:[%s1 + $0x7] sm:$0x1]
      %v921 = vlaneseq
      %v922 = vshrl.u32 %v921, 7
      %v923 = vsub.s32 0, %v922
      %v924 = vrot.slane %v920, %v923
      %v925 = vmul.f32 %v916, %v924
      %v926 = vmul.f32 %v917, %v924
      %v927 = vmul.f32 %v918, %v924
      %v928 = vmul.f32 %v919, %v924
      %v929 = vadd.f32 %v899, %v925
      %v930 = vadd.f32 %v900, %v926
      %v931 = vadd.f32 %v901, %v927
      %v932 = vadd.f32 %v902, %v928
      %v933 = vld [vmem:[%s1 + $0x10] sm:$0x1]
      %v934 = vlaneseq
      %v935 = vshrl.u32 %v934, 7
      %v936 = vsub.s32 0, %v935
      %v937 = vrot.slane %v933, %v936
      %v938 = vmul.f32 %v916, %v937
      %v939 = vmul.f32 %v917, %v937
      %v940 = vmul.f32 %v918, %v937
      %v941 = vmul.f32 %v919, %v937
      %v942 = vadd.f32 %v912, %v938
      %v943 = vadd.f32 %v913, %v939
      %v944 = vadd.f32 %v914, %v940
      %v945 = vadd.f32 %v915, %v941
      %v946 = vld [vmem:[%s634 + $0x1] sm:$0xff]
      %v947 = vld [vmem:[%s634 + $0x11] sm:$0xff]
      %v948 = vld [vmem:[%s634 + $0x21] sm:$0xff]
      %v949 = vld [vmem:[%s634 + $0x31] sm:$0xff]
      %v950 = vld [vmem:[%s1 + $0x8] sm:$0x1]
      %v951 = vlaneseq
      %v952 = vshrl.u32 %v951, 7
      %v953 = vsub.s32 0, %v952
      %v954 = vrot.slane %v950, %v953
      %v955 = vmul.f32 %v946, %v954
      %v956 = vmul.f32 %v947, %v954
      %v957 = vmul.f32 %v948, %v954
      %v958 = vmul.f32 %v949, %v954
      %v959 = vadd.f32 %v929, %v955
      %v960 = vadd.f32 %v930, %v956
      %v961 = vadd.f32 %v931, %v957
      %v962 = vadd.f32 %v932, %v958
      %v963 = vld [vmem:[%s1 + $0x11] sm:$0x1]
      %v964 = vlaneseq
      %v965 = vshrl.u32 %v964, 7
      %v966 = vsub.s32 0, %v965
      %v967 = vrot.slane %v963, %v966
      %v968 = vmul.f32 %v946, %v967
      %v969 = vmul.f32 %v947, %v967
      %v970 = vmul.f32 %v948, %v967
      %v971 = vmul.f32 %v949, %v967
      %v972 = vadd.f32 %v942, %v968
      %v973 = vadd.f32 %v943, %v969
      %v974 = vadd.f32 %v944, %v970
      %v975 = vadd.f32 %v945, %v971
      %s976 = scalar_lea.vmem [#allocation2], 96
      %977 = vst.msk [vmem:[%s976 + $0x1] sm:$0xff] %vm696, %v959
      %978 = vst.msk [vmem:[%s976 + $0x11] sm:$0xff] %vm696, %v960
      %979 = vst.msk [vmem:[%s976 + $0x21] sm:$0xff] %vm696, %v961
      %980 = vst.msk [vmem:[%s976 + $0x31] sm:$0xff] %vm696, %v962
      %v981 = vmax.f32 %v678, %v959
      %v982 = vmax.f32 %v679, %v960
      %v983 = vmax.f32 %v680, %v961
      %v984 = vmax.f32 %v681, %v962
      %s985 = scalar_lea.vmem [#allocation2], 416
      %986 = vst.msk [vmem:[%s985 + $0x1] sm:$0xff] %vm696, %v972
      %987 = vst.msk [vmem:[%s985 + $0x11] sm:$0xff] %vm696, %v973
      %988 = vst.msk [vmem:[%s985 + $0x21] sm:$0xff] %vm696, %v974
      %989 = vst.msk [vmem:[%s985 + $0x31] sm:$0xff] %vm696, %v975
      %v990 = vmax.f32 %v691, %v972
      %v991 = vmax.f32 %v692, %v973
      %v992 = vmax.f32 %v693, %v974
      %v993 = vmax.f32 %v694, %v975
      %v994 = vld [vmem:[%s511] sm:$0xff]
      %v995 = vld [vmem:[%s511 + $0x10] sm:$0xff]
      %v996 = vld [vmem:[%s511 + $0x20] sm:$0xff]
      %v997 = vld [vmem:[%s511 + $0x30] sm:$0xff]
      %v998 = vld [vmem:[%s1] sm:$0x1]
      %v999 = vlaneseq
      %v1000 = vshrl.u32 %v999, 7
      %v1001 = vsub.s32 0, %v1000
      %v1002 = vrot.slane %v998, %v1001
      %v1003 = vmul.f32 %v994, %v1002
      %v1004 = vmul.f32 %v995, %v1002
      %v1005 = vmul.f32 %v996, %v1002
      %v1006 = vmul.f32 %v997, %v1002
      %v1007 = vadd.f32 %v375, %v1003
      %v1008 = vadd.f32 %v375, %v1004
      %v1009 = vadd.f32 %v375, %v1005
      %v1010 = vadd.f32 %v375, %v1006
      %v1011 = vld [vmem:[%s1 + $0x9] sm:$0x1]
      %v1012 = vlaneseq
      %v1013 = vshrl.u32 %v1012, 7
      %v1014 = vsub.s32 0, %v1013
      %v1015 = vrot.slane %v1011, %v1014
      %v1016 = vmul.f32 %v994, %v1015
      %v1017 = vmul.f32 %v995, %v1015
      %v1018 = vmul.f32 %v996, %v1015
      %v1019 = vmul.f32 %v997, %v1015
      %v1020 = vadd.f32 %v381, %v1016
      %v1021 = vadd.f32 %v381, %v1017
      %v1022 = vadd.f32 %v381, %v1018
      %v1023 = vadd.f32 %v381, %v1019
      %v1024 = vld [vmem:[%s542] sm:$0xff]
      %v1025 = vld [vmem:[%s542 + $0x10] sm:$0xff]
      %v1026 = vld [vmem:[%s542 + $0x20] sm:$0xff]
      %v1027 = vld [vmem:[%s542 + $0x30] sm:$0xff]
      %v1028 = vld [vmem:[%s1 + $0x1] sm:$0x1]
      %v1029 = vlaneseq
      %v1030 = vshrl.u32 %v1029, 7
      %v1031 = vsub.s32 0, %v1030
      %v1032 = vrot.slane %v1028, %v1031
      %v1033 = vmul.f32 %v1024, %v1032
      %v1034 = vmul.f32 %v1025, %v1032
      %v1035 = vmul.f32 %v1026, %v1032
      %v1036 = vmul.f32 %v1027, %v1032
      %v1037 = vadd.f32 %v1007, %v1033
      %v1038 = vadd.f32 %v1008, %v1034
      %v1039 = vadd.f32 %v1009, %v1035
      %v1040 = vadd.f32 %v1010, %v1036
      %v1041 = vld [vmem:[%s1 + $0xa] sm:$0x1]
      %v1042 = vlaneseq
      %v1043 = vshrl.u32 %v1042, 7
      %v1044 = vsub.s32 0, %v1043
      %v1045 = vrot.slane %v1041, %v1044
      %v1046 = vmul.f32 %v1024, %v1045
      %v1047 = vmul.f32 %v1025, %v1045
      %v1048 = vmul.f32 %v1026, %v1045
      %v1049 = vmul.f32 %v1027, %v1045
      %v1050 = vadd.f32 %v1020, %v1046
      %v1051 = vadd.f32 %v1021, %v1047
      %v1052 = vadd.f32 %v1022, %v1048
      %v1053 = vadd.f32 %v1023, %v1049
      %v1054 = vld [vmem:[%s511 + $0x1] sm:$0xff]
      %v1055 = vld [vmem:[%s511 + $0x11] sm:$0xff]
      %v1056 = vld [vmem:[%s511 + $0x21] sm:$0xff]
      %v1057 = vld [vmem:[%s511 + $0x31] sm:$0xff]
      %v1058 = vld [vmem:[%s1 + $0x2] sm:$0x1]
      %v1059 = vlaneseq
      %v1060 = vshrl.u32 %v1059, 7
      %v1061 = vsub.s32 0, %v1060
      %v1062 = vrot.slane %v1058, %v1061
      %v1063 = vmul.f32 %v1054, %v1062
      %v1064 = vmul.f32 %v1055, %v1062
      %v1065 = vmul.f32 %v1056, %v1062
      %v1066 = vmul.f32 %v1057, %v1062
      %v1067 = vadd.f32 %v1037, %v1063
      %v1068 = vadd.f32 %v1038, %v1064
      %v1069 = vadd.f32 %v1039, %v1065
      %v1070 = vadd.f32 %v1040, %v1066
      %v1071 = vld [vmem:[%s1 + $0xb] sm:$0x1]
      %v1072 = vlaneseq
      %v1073 = vshrl.u32 %v1072, 7
      %v1074 = vsub.s32 0, %v1073
      %v1075 = vrot.slane %v1071, %v1074
      %v1076 = vmul.f32 %v1054, %v1075
      %v1077 = vmul.f32 %v1055, %v1075
      %v1078 = vmul.f32 %v1056, %v1075
      %v1079 = vmul.f32 %v1057, %v1075
      %v1080 = vadd.f32 %v1050, %v1076
      %v1081 = vadd.f32 %v1051, %v1077
      %v1082 = vadd.f32 %v1052, %v1078
      %v1083 = vadd.f32 %v1053, %v1079
      %v1084 = vld [vmem:[%s603] sm:$0xff]
      %v1085 = vld [vmem:[%s603 + $0x10] sm:$0xff]
      %v1086 = vld [vmem:[%s603 + $0x20] sm:$0xff]
      %v1087 = vld [vmem:[%s603 + $0x30] sm:$0xff]
      %v1088 = vld [vmem:[%s1 + $0x3] sm:$0x1]
      %v1089 = vlaneseq
      %v1090 = vshrl.u32 %v1089, 7
      %v1091 = vsub.s32 0, %v1090
      %v1092 = vrot.slane %v1088, %v1091
      %v1093 = vmul.f32 %v1084, %v1092
      %v1094 = vmul.f32 %v1085, %v1092
      %v1095 = vmul.f32 %v1086, %v1092
      %v1096 = vmul.f32 %v1087, %v1092
      %v1097 = vadd.f32 %v1067, %v1093
      %v1098 = vadd.f32 %v1068, %v1094
      %v1099 = vadd.f32 %v1069, %v1095
      %v1100 = vadd.f32 %v1070, %v1096
      %v1101 = vld [vmem:[%s1 + $0xc] sm:$0x1]
      %v1102 = vlaneseq
      %v1103 = vshrl.u32 %v1102, 7
      %v1104 = vsub.s32 0, %v1103
      %v1105 = vrot.slane %v1101, %v1104
      %v1106 = vmul.f32 %v1084, %v1105
      %v1107 = vmul.f32 %v1085, %v1105
      %v1108 = vmul.f32 %v1086, %v1105
      %v1109 = vmul.f32 %v1087, %v1105
      %v1110 = vadd.f32 %v1080, %v1106
      %v1111 = vadd.f32 %v1081, %v1107
      %v1112 = vadd.f32 %v1082, %v1108
      %v1113 = vadd.f32 %v1083, %v1109
      %v1114 = vld [vmem:[%s634] sm:$0xff]
      %v1115 = vld [vmem:[%s634 + $0x10] sm:$0xff]
      %v1116 = vld [vmem:[%s634 + $0x20] sm:$0xff]
      %v1117 = vld [vmem:[%s634 + $0x30] sm:$0xff]
      %v1118 = vld [vmem:[%s1 + $0x4] sm:$0x1]
      %v1119 = vlaneseq
      %v1120 = vshrl.u32 %v1119, 7
      %v1121 = vsub.s32 0, %v1120
      %v1122 = vrot.slane %v1118, %v1121
      %v1123 = vmul.f32 %v1114, %v1122
      %v1124 = vmul.f32 %v1115, %v1122
      %v1125 = vmul.f32 %v1116, %v1122
      %v1126 = vmul.f32 %v1117, %v1122
      %v1127 = vadd.f32 %v1097, %v1123
      %v1128 = vadd.f32 %v1098, %v1124
      %v1129 = vadd.f32 %v1099, %v1125
      %v1130 = vadd.f32 %v1100, %v1126
      %v1131 = vld [vmem:[%s1 + $0xd] sm:$0x1]
      %v1132 = vlaneseq
      %v1133 = vshrl.u32 %v1132, 7
      %v1134 = vsub.s32 0, %v1133
      %v1135 = vrot.slane %v1131, %v1134
      %v1136 = vmul.f32 %v1114, %v1135
      %v1137 = vmul.f32 %v1115, %v1135
      %v1138 = vmul.f32 %v1116, %v1135
      %v1139 = vmul.f32 %v1117, %v1135
      %v1140 = vadd.f32 %v1110, %v1136
      %v1141 = vadd.f32 %v1111, %v1137
      %v1142 = vadd.f32 %v1112, %v1138
      %v1143 = vadd.f32 %v1113, %v1139
      %v1144 = vld [vmem:[%s603 + $0x1] sm:$0xff]
      %v1145 = vld [vmem:[%s603 + $0x11] sm:$0xff]
      %v1146 = vld [vmem:[%s603 + $0x21] sm:$0xff]
      %v1147 = vld [vmem:[%s603 + $0x31] sm:$0xff]
      %v1148 = vld [vmem:[%s1 + $0x5] sm:$0x1]
      %v1149 = vlaneseq
      %v1150 = vshrl.u32 %v1149, 7
      %v1151 = vsub.s32 0, %v1150
      %v1152 = vrot.slane %v1148, %v1151
      %v1153 = vmul.f32 %v1144, %v1152
      %v1154 = vmul.f32 %v1145, %v1152
      %v1155 = vmul.f32 %v1146, %v1152
      %v1156 = vmul.f32 %v1147, %v1152
      %v1157 = vadd.f32 %v1127, %v1153
      %v1158 = vadd.f32 %v1128, %v1154
      %v1159 = vadd.f32 %v1129, %v1155
      %v1160 = vadd.f32 %v1130, %v1156
      %v1161 = vld [vmem:[%s1 + $0xe] sm:$0x1]
      %v1162 = vlaneseq
      %v1163 = vshrl.u32 %v1162, 7
      %v1164 = vsub.s32 0, %v1163
      %v1165 = vrot.slane %v1161, %v1164
      %v1166 = vmul.f32 %v1144, %v1165
      %v1167 = vmul.f32 %v1145, %v1165
      %v1168 = vmul.f32 %v1146, %v1165
      %v1169 = vmul.f32 %v1147, %v1165
      %v1170 = vadd.f32 %v1140, %v1166
      %v1171 = vadd.f32 %v1141, %v1167
      %v1172 = vadd.f32 %v1142, %v1168
      %v1173 = vadd.f32 %v1143, %v1169
      %s1174 = scalar_lea.vmem %s357, 224
      %v1175 = vld [vmem:[%s1174] sm:$0xff]
      %v1176 = vld [vmem:[%s1174 + $0x10] sm:$0xff]
      %v1177 = vld [vmem:[%s1174 + $0x20] sm:$0xff]
      %v1178 = vld [vmem:[%s1174 + $0x30] sm:$0xff]
      %v1179 = vld [vmem:[%s1 + $0x6] sm:$0x1]
      %v1180 = vlaneseq
      %v1181 = vshrl.u32 %v1180, 7
      %v1182 = vsub.s32 0, %v1181
      %v1183 = vrot.slane %v1179, %v1182
      %v1184 = vmul.f32 %v1175, %v1183
      %v1185 = vmul.f32 %v1176, %v1183
      %v1186 = vmul.f32 %v1177, %v1183
      %v1187 = vmul.f32 %v1178, %v1183
      %v1188 = vadd.f32 %v1157, %v1184
      %v1189 = vadd.f32 %v1158, %v1185
      %v1190 = vadd.f32 %v1159, %v1186
      %v1191 = vadd.f32 %v1160, %v1187
      %v1192 = vld [vmem:[%s1 + $0xf] sm:$0x1]
      %v1193 = vlaneseq
      %v1194 = vshrl.u32 %v1193, 7
      %v1195 = vsub.s32 0, %v1194
      %v1196 = vrot.slane %v1192, %v1195
      %v1197 = vmul.f32 %v1175, %v1196
      %v1198 = vmul.f32 %v1176, %v1196
      %v1199 = vmul.f32 %v1177, %v1196
      %v1200 = vmul.f32 %v1178, %v1196
      %v1201 = vadd.f32 %v1170, %v1197
      %v1202 = vadd.f32 %v1171, %v1198
      %v1203 = vadd.f32 %v1172, %v1199
      %v1204 = vadd.f32 %v1173, %v1200
      %s1205 = scalar_lea.vmem %s357, 320
      %v1206 = vld [vmem:[%s1205] sm:$0xff]
      %v1207 = vld [vmem:[%s1205 + $0x10] sm:$0xff]
      %v1208 = vld [vmem:[%s1205 + $0x20] sm:$0xff]
      %v1209 = vld [vmem:[%s1205 + $0x30] sm:$0xff]
      %v1210 = vld [vmem:[%s1 + $0x7] sm:$0x1]
      %v1211 = vlaneseq
      %v1212 = vshrl.u32 %v1211, 7
      %v1213 = vsub.s32 0, %v1212
      %v1214 = vrot.slane %v1210, %v1213
      %v1215 = vmul.f32 %v1206, %v1214
      %v1216 = vmul.f32 %v1207, %v1214
      %v1217 = vmul.f32 %v1208, %v1214
      %v1218 = vmul.f32 %v1209, %v1214
      %v1219 = vadd.f32 %v1188, %v1215
      %v1220 = vadd.f32 %v1189, %v1216
      %v1221 = vadd.f32 %v1190, %v1217
      %v1222 = vadd.f32 %v1191, %v1218
      %v1223 = vld [vmem:[%s1 + $0x10] sm:$0x1]
      %v1224 = vlaneseq
      %v1225 = vshrl.u32 %v1224, 7
      %v1226 = vsub.s32 0, %v1225
      %v1227 = vrot.slane %v1223, %v1226
      %v1228 = vmul.f32 %v1206, %v1227
      %v1229 = vmul.f32 %v1207, %v1227
      %v1230 = vmul.f32 %v1208, %v1227
      %v1231 = vmul.f32 %v1209, %v1227
      %v1232 = vadd.f32 %v1201, %v1228
      %v1233 = vadd.f32 %v1202, %v1229
      %v1234 = vadd.f32 %v1203, %v1230
      %v1235 = vadd.f32 %v1204, %v1231
      %v1236 = vld [vmem:[%s1174 + $0x1] sm:$0xff]
      %v1237 = vld [vmem:[%s1174 + $0x11] sm:$0xff]
      %v1238 = vld [vmem:[%s1174 + $0x21] sm:$0xff]
      %v1239 = vld [vmem:[%s1174 + $0x31] sm:$0xff]
      %v1240 = vld [vmem:[%s1 + $0x8] sm:$0x1]
      %v1241 = vlaneseq
      %v1242 = vshrl.u32 %v1241, 7
      %v1243 = vsub.s32 0, %v1242
      %v1244 = vrot.slane %v1240, %v1243
      %v1245 = vmul.f32 %v1236, %v1244
      %v1246 = vmul.f32 %v1237, %v1244
      %v1247 = vmul.f32 %v1238, %v1244
      %v1248 = vmul.f32 %v1239, %v1244
      %v1249 = vadd.f32 %v1219, %v1245
      %v1250 = vadd.f32 %v1220, %v1246
      %v1251 = vadd.f32 %v1221, %v1247
      %v1252 = vadd.f32 %v1222, %v1248
      %v1253 = vld [vmem:[%s1 + $0x11] sm:$0x1]
      %v1254 = vlaneseq
      %v1255 = vshrl.u32 %v1254, 7
      %v1256 = vsub.s32 0, %v1255
      %v1257 = vrot.slane %v1253, %v1256
      %v1258 = vmul.f32 %v1236, %v1257
      %v1259 = vmul.f32 %v1237, %v1257
      %v1260 = vmul.f32 %v1238, %v1257
      %v1261 = vmul.f32 %v1239, %v1257
      %v1262 = vadd.f32 %v1232, %v1258
      %v1263 = vadd.f32 %v1233, %v1259
      %v1264 = vadd.f32 %v1234, %v1260
      %v1265 = vadd.f32 %v1235, %v1261
      %s1266 = scalar_lea.vmem [#allocation2], 176
      %1267 = vst.msk [vmem:[%s1266 + $0x1] sm:$0xff] %vm696, %v1249
      %1268 = vst.msk [vmem:[%s1266 + $0x11] sm:$0xff] %vm696, %v1250
      %1269 = vst.msk [vmem:[%s1266 + $0x21] sm:$0xff] %vm696, %v1251
      %1270 = vst.msk [vmem:[%s1266 + $0x31] sm:$0xff] %vm696, %v1252
      %v1271 = vmax.f32 %v981, %v1249
      %v1272 = vmax.f32 %v982, %v1250
      %v1273 = vmax.f32 %v983, %v1251
      %v1274 = vmax.f32 %v984, %v1252
      %s1275 = scalar_lea.vmem [#allocation2], 496
      %1276 = vst.msk [vmem:[%s1275 + $0x1] sm:$0xff] %vm696, %v1262
      %1277 = vst.msk [vmem:[%s1275 + $0x11] sm:$0xff] %vm696, %v1263
      %1278 = vst.msk [vmem:[%s1275 + $0x21] sm:$0xff] %vm696, %v1264
      %1279 = vst.msk [vmem:[%s1275 + $0x31] sm:$0xff] %vm696, %v1265
      %v1280 = vmax.f32 %v990, %v1262
      %v1281 = vmax.f32 %v991, %v1263
      %v1282 = vmax.f32 %v992, %v1264
      %v1283 = vmax.f32 %v993, %v1265
      %v1284 = vld [vmem:[%s542] sm:$0xff]
      %v1285 = vld [vmem:[%s542 + $0x10] sm:$0xff]
      %v1286 = vld [vmem:[%s542 + $0x20] sm:$0xff]
      %v1287 = vld [vmem:[%s542 + $0x30] sm:$0xff]
      %v1288 = vld [vmem:[%s1] sm:$0x1]
      %v1289 = vlaneseq
      %v1290 = vshrl.u32 %v1289, 7
      %v1291 = vsub.s32 0, %v1290
      %v1292 = vrot.slane %v1288, %v1291
      %v1293 = vmul.f32 %v1284, %v1292
      %v1294 = vmul.f32 %v1285, %v1292
      %v1295 = vmul.f32 %v1286, %v1292
      %v1296 = vmul.f32 %v1287, %v1292
      %v1297 = vadd.f32 %v375, %v1293
      %v1298 = vadd.f32 %v375, %v1294
      %v1299 = vadd.f32 %v375, %v1295
      %v1300 = vadd.f32 %v375, %v1296
      %v1301 = vld [vmem:[%s1 + $0x9] sm:$0x1]
      %v1302 = vlaneseq
      %v1303 = vshrl.u32 %v1302, 7
      %v1304 = vsub.s32 0, %v1303
      %v1305 = vrot.slane %v1301, %v1304
      %v1306 = vmul.f32 %v1284, %v1305
      %v1307 = vmul.f32 %v1285, %v1305
      %v1308 = vmul.f32 %v1286, %v1305
      %v1309 = vmul.f32 %v1287, %v1305
      %v1310 = vadd.f32 %v381, %v1306
      %v1311 = vadd.f32 %v381, %v1307
      %v1312 = vadd.f32 %v381, %v1308
      %v1313 = vadd.f32 %v381, %v1309
      %v1314 = vld [vmem:[%s511 + $0x1] sm:$0xff]
      %v1315 = vld [vmem:[%s511 + $0x11] sm:$0xff]
      %v1316 = vld [vmem:[%s511 + $0x21] sm:$0xff]
      %v1317 = vld [vmem:[%s511 + $0x31] sm:$0xff]
      %v1318 = vld [vmem:[%s1 + $0x1] sm:$0x1]
      %v1319 = vlaneseq
      %v1320 = vshrl.u32 %v1319, 7
      %v1321 = vsub.s32 0, %v1320
      %v1322 = vrot.slane %v1318, %v1321
      %v1323 = vmul.f32 %v1314, %v1322
      %v1324 = vmul.f32 %v1315, %v1322
      %v1325 = vmul.f32 %v1316, %v1322
      %v1326 = vmul.f32 %v1317, %v1322
      %v1327 = vadd.f32 %v1297, %v1323
      %v1328 = vadd.f32 %v1298, %v1324
      %v1329 = vadd.f32 %v1299, %v1325
      %v1330 = vadd.f32 %v1300, %v1326
      %v1331 = vld [vmem:[%s1 + $0xa] sm:$0x1]
      %v1332 = vlaneseq
      %v1333 = vshrl.u32 %v1332, 7
      %v1334 = vsub.s32 0, %v1333
      %v1335 = vrot.slane %v1331, %v1334
      %v1336 = vmul.f32 %v1314, %v1335
      %v1337 = vmul.f32 %v1315, %v1335
      %v1338 = vmul.f32 %v1316, %v1335
      %v1339 = vmul.f32 %v1317, %v1335
      %v1340 = vadd.f32 %v1310, %v1336
      %v1341 = vadd.f32 %v1311, %v1337
      %v1342 = vadd.f32 %v1312, %v1338
      %v1343 = vadd.f32 %v1313, %v1339
      %v1344 = vld [vmem:[%s542 + $0x1] sm:$0xff]
      %v1345 = vld [vmem:[%s542 + $0x11] sm:$0xff]
      %v1346 = vld [vmem:[%s542 + $0x21] sm:$0xff]
      %v1347 = vld [vmem:[%s542 + $0x31] sm:$0xff]
      %v1348 = vld [vmem:[%s1 + $0x2] sm:$0x1]
      %v1349 = vlaneseq
      %v1350 = vshrl.u32 %v1349, 7
      %v1351 = vsub.s32 0, %v1350
      %v1352 = vrot.slane %v1348, %v1351
      %v1353 = vmul.f32 %v1344, %v1352
      %v1354 = vmul.f32 %v1345, %v1352
      %v1355 = vmul.f32 %v1346, %v1352
      %v1356 = vmul.f32 %v1347, %v1352
      %v1357 = vadd.f32 %v1327, %v1353
      %v1358 = vadd.f32 %v1328, %v1354
      %v1359 = vadd.f32 %v1329, %v1355
      %v1360 = vadd.f32 %v1330, %v1356
      %v1361 = vld [vmem:[%s1 + $0xb] sm:$0x1]
      %v1362 = vlaneseq
      %v1363 = vshrl.u32 %v1362, 7
      %v1364 = vsub.s32 0, %v1363
      %v1365 = vrot.slane %v1361, %v1364
      %v1366 = vmul.f32 %v1344, %v1365
      %v1367 = vmul.f32 %v1345, %v1365
      %v1368 = vmul.f32 %v1346, %v1365
      %v1369 = vmul.f32 %v1347, %v1365
      %v1370 = vadd.f32 %v1340, %v1366
      %v1371 = vadd.f32 %v1341, %v1367
      %v1372 = vadd.f32 %v1342, %v1368
      %v1373 = vadd.f32 %v1343, %v1369
      %v1374 = vld [vmem:[%s634] sm:$0xff]
      %v1375 = vld [vmem:[%s634 + $0x10] sm:$0xff]
      %v1376 = vld [vmem:[%s634 + $0x20] sm:$0xff]
      %v1377 = vld [vmem:[%s634 + $0x30] sm:$0xff]
      %v1378 = vld [vmem:[%s1 + $0x3] sm:$0x1]
      %v1379 = vlaneseq
      %v1380 = vshrl.u32 %v1379, 7
      %v1381 = vsub.s32 0, %v1380
      %v1382 = vrot.slane %v1378, %v1381
      %v1383 = vmul.f32 %v1374, %v1382
      %v1384 = vmul.f32 %v1375, %v1382
      %v1385 = vmul.f32 %v1376, %v1382
      %v1386 = vmul.f32 %v1377, %v1382
      %v1387 = vadd.f32 %v1357, %v1383
      %v1388 = vadd.f32 %v1358, %v1384
      %v1389 = vadd.f32 %v1359, %v1385
      %v1390 = vadd.f32 %v1360, %v1386
      %v1391 = vld [vmem:[%s1 + $0xc] sm:$0x1]
      %v1392 = vlaneseq
      %v1393 = vshrl.u32 %v1392, 7
      %v1394 = vsub.s32 0, %v1393
      %v1395 = vrot.slane %v1391, %v1394
      %v1396 = vmul.f32 %v1374, %v1395
      %v1397 = vmul.f32 %v1375, %v1395
      %v1398 = vmul.f32 %v1376, %v1395
      %v1399 = vmul.f32 %v1377, %v1395
      %v1400 = vadd.f32 %v1370, %v1396
      %v1401 = vadd.f32 %v1371, %v1397
      %v1402 = vadd.f32 %v1372, %v1398
      %v1403 = vadd.f32 %v1373, %v1399
      %v1404 = vld [vmem:[%s603 + $0x1] sm:$0xff]
      %v1405 = vld [vmem:[%s603 + $0x11] sm:$0xff]
      %v1406 = vld [vmem:[%s603 + $0x21] sm:$0xff]
      %v1407 = vld [vmem:[%s603 + $0x31] sm:$0xff]
      %v1408 = vld [vmem:[%s1 + $0x4] sm:$0x1]
      %v1409 = vlaneseq
      %v1410 = vshrl.u32 %v1409, 7
      %v1411 = vsub.s32 0, %v1410
      %v1412 = vrot.slane %v1408, %v1411
      %v1413 = vmul.f32 %v1404, %v1412
      %v1414 = vmul.f32 %v1405, %v1412
      %v1415 = vmul.f32 %v1406, %v1412
      %v1416 = vmul.f32 %v1407, %v1412
      %v1417 = vadd.f32 %v1387, %v1413
      %v1418 = vadd.f32 %v1388, %v1414
      %v1419 = vadd.f32 %v1389, %v1415
      %v1420 = vadd.f32 %v1390, %v1416
      %v1421 = vld [vmem:[%s1 + $0xd] sm:$0x1]
      %v1422 = vlaneseq
      %v1423 = vshrl.u32 %v1422, 7
      %v1424 = vsub.s32 0, %v1423
      %v1425 = vrot.slane %v1421, %v1424
      %v1426 = vmul.f32 %v1404, %v1425
      %v1427 = vmul.f32 %v1405, %v1425
      %v1428 = vmul.f32 %v1406, %v1425
      %v1429 = vmul.f32 %v1407, %v1425
      %v1430 = vadd.f32 %v1400, %v1426
      %v1431 = vadd.f32 %v1401, %v1427
      %v1432 = vadd.f32 %v1402, %v1428
      %v1433 = vadd.f32 %v1403, %v1429
      %v1434 = vld [vmem:[%s634 + $0x1] sm:$0xff]
      %v1435 = vld [vmem:[%s634 + $0x11] sm:$0xff]
      %v1436 = vld [vmem:[%s634 + $0x21] sm:$0xff]
      %v1437 = vld [vmem:[%s634 + $0x31] sm:$0xff]
      %v1438 = vld [vmem:[%s1 + $0x5] sm:$0x1]
      %v1439 = vlaneseq
      %v1440 = vshrl.u32 %v1439, 7
      %v1441 = vsub.s32 0, %v1440
      %v1442 = vrot.slane %v1438, %v1441
      %v1443 = vmul.f32 %v1434, %v1442
      %v1444 = vmul.f32 %v1435, %v1442
      %v1445 = vmul.f32 %v1436, %v1442
      %v1446 = vmul.f32 %v1437, %v1442
      %v1447 = vadd.f32 %v1417, %v1443
      %v1448 = vadd.f32 %v1418, %v1444
      %v1449 = vadd.f32 %v1419, %v1445
      %v1450 = vadd.f32 %v1420, %v1446
      %v1451 = vld [vmem:[%s1 + $0xe] sm:$0x1]
      %v1452 = vlaneseq
      %v1453 = vshrl.u32 %v1452, 7
      %v1454 = vsub.s32 0, %v1453
      %v1455 = vrot.slane %v1451, %v1454
      %v1456 = vmul.f32 %v1434, %v1455
      %v1457 = vmul.f32 %v1435, %v1455
      %v1458 = vmul.f32 %v1436, %v1455
      %v1459 = vmul.f32 %v1437, %v1455
      %v1460 = vadd.f32 %v1430, %v1456
      %v1461 = vadd.f32 %v1431, %v1457
      %v1462 = vadd.f32 %v1432, %v1458
      %v1463 = vadd.f32 %v1433, %v1459
      %v1464 = vld [vmem:[%s1205] sm:$0xff]
      %v1465 = vld [vmem:[%s1205 + $0x10] sm:$0xff]
      %v1466 = vld [vmem:[%s1205 + $0x20] sm:$0xff]
      %v1467 = vld [vmem:[%s1205 + $0x30] sm:$0xff]
      %v1468 = vld [vmem:[%s1 + $0x6] sm:$0x1]
      %v1469 = vlaneseq
      %v1470 = vshrl.u32 %v1469, 7
      %v1471 = vsub.s32 0, %v1470
      %v1472 = vrot.slane %v1468, %v1471
      %v1473 = vmul.f32 %v1464, %v1472
      %v1474 = vmul.f32 %v1465, %v1472
      %v1475 = vmul.f32 %v1466, %v1472
      %v1476 = vmul.f32 %v1467, %v1472
      %v1477 = vadd.f32 %v1447, %v1473
      %v1478 = vadd.f32 %v1448, %v1474
      %v1479 = vadd.f32 %v1449, %v1475
      %v1480 = vadd.f32 %v1450, %v1476
      %v1481 = vld [vmem:[%s1 + $0xf] sm:$0x1]
      %v1482 = vlaneseq
      %v1483 = vshrl.u32 %v1482, 7
      %v1484 = vsub.s32 0, %v1483
      %v1485 = vrot.slane %v1481, %v1484
      %v1486 = vmul.f32 %v1464, %v1485
      %v1487 = vmul.f32 %v1465, %v1485
      %v1488 = vmul.f32 %v1466, %v1485
      %v1489 = vmul.f32 %v1467, %v1485
      %v1490 = vadd.f32 %v1460, %v1486
      %v1491 = vadd.f32 %v1461, %v1487
      %v1492 = vadd.f32 %v1462, %v1488
      %v1493 = vadd.f32 %v1463, %v1489
      %v1494 = vld [vmem:[%s1174 + $0x1] sm:$0xff]
      %v1495 = vld [vmem:[%s1174 + $0x11] sm:$0xff]
      %v1496 = vld [vmem:[%s1174 + $0x21] sm:$0xff]
      %v1497 = vld [vmem:[%s1174 + $0x31] sm:$0xff]
      %v1498 = vld [vmem:[%s1 + $0x7] sm:$0x1]
      %v1499 = vlaneseq
      %v1500 = vshrl.u32 %v1499, 7
      %v1501 = vsub.s32 0, %v1500
      %v1502 = vrot.slane %v1498, %v1501
      %v1503 = vmul.f32 %v1494, %v1502
      %v1504 = vmul.f32 %v1495, %v1502
      %v1505 = vmul.f32 %v1496, %v1502
      %v1506 = vmul.f32 %v1497, %v1502
      %v1507 = vadd.f32 %v1477, %v1503
      %v1508 = vadd.f32 %v1478, %v1504
      %v1509 = vadd.f32 %v1479, %v1505
      %v1510 = vadd.f32 %v1480, %v1506
      %v1511 = vld [vmem:[%s1 + $0x10] sm:$0x1]
      %v1512 = vlaneseq
      %v1513 = vshrl.u32 %v1512, 7
      %v1514 = vsub.s32 0, %v1513
      %v1515 = vrot.slane %v1511, %v1514
      %v1516 = vmul.f32 %v1494, %v1515
      %v1517 = vmul.f32 %v1495, %v1515
      %v1518 = vmul.f32 %v1496, %v1515
      %v1519 = vmul.f32 %v1497, %v1515
      %v1520 = vadd.f32 %v1490, %v1516
      %v1521 = vadd.f32 %v1491, %v1517
      %v1522 = vadd.f32 %v1492, %v1518
      %v1523 = vadd.f32 %v1493, %v1519
      %v1524 = vld [vmem:[%s1205 + $0x1] sm:$0xff]
      %v1525 = vld [vmem:[%s1205 + $0x11] sm:$0xff]
      %v1526 = vld [vmem:[%s1205 + $0x21] sm:$0xff]
      %v1527 = vld [vmem:[%s1205 + $0x31] sm:$0xff]
      %v1528 = vld [vmem:[%s1 + $0x8] sm:$0x1]
      %v1529 = vlaneseq
      %v1530 = vshrl.u32 %v1529, 7
      %v1531 = vsub.s32 0, %v1530
      %v1532 = vrot.slane %v1528, %v1531
      %v1533 = vmul.f32 %v1524, %v1532
      %v1534 = vmul.f32 %v1525, %v1532
      %v1535 = vmul.f32 %v1526, %v1532
      %v1536 = vmul.f32 %v1527, %v1532
      %v1537 = vadd.f32 %v1507, %v1533
      %v1538 = vadd.f32 %v1508, %v1534
      %v1539 = vadd.f32 %v1509, %v1535
      %v1540 = vadd.f32 %v1510, %v1536
      %v1541 = vld [vmem:[%s1 + $0x11] sm:$0x1]
      %v1542 = vlaneseq
      %v1543 = vshrl.u32 %v1542, 7
      %v1544 = vsub.s32 0, %v1543
      %v1545 = vrot.slane %v1541, %v1544
      %v1546 = vmul.f32 %v1524, %v1545
      %v1547 = vmul.f32 %v1525, %v1545
      %v1548 = vmul.f32 %v1526, %v1545
      %v1549 = vmul.f32 %v1527, %v1545
      %v1550 = vadd.f32 %v1520, %v1546
      %v1551 = vadd.f32 %v1521, %v1547
      %v1552 = vadd.f32 %v1522, %v1548
      %v1553 = vadd.f32 %v1523, %v1549
      %s1554 = scalar_lea.vmem [#allocation2], 256
      %1555 = vst.msk [vmem:[%s1554 + $0x1] sm:$0xff] %vm696, %v1537
      %1556 = vst.msk [vmem:[%s1554 + $0x11] sm:$0xff] %vm696, %v1538
      %1557 = vst.msk [vmem:[%s1554 + $0x21] sm:$0xff] %vm696, %v1539
      %1558 = vst.msk [vmem:[%s1554 + $0x31] sm:$0xff] %vm696, %v1540
      %v1559 = vmax.f32 %v1271, %v1537
      %v1560 = vmax.f32 %v1272, %v1538
      %v1561 = vmax.f32 %v1273, %v1539
      %v1562 = vmax.f32 %v1274, %v1540
      %s1563 = scalar_lea.vmem [#allocation2], 576
      %1564 = vst.msk [vmem:[%s1563 + $0x1] sm:$0xff] %vm696, %v1550
      %1565 = vst.msk [vmem:[%s1563 + $0x11] sm:$0xff] %vm696, %v1551
      %1566 = vst.msk [vmem:[%s1563 + $0x21] sm:$0xff] %vm696, %v1552
      %1567 = vst.msk [vmem:[%s1563 + $0x31] sm:$0xff] %vm696, %v1553
      %v1568 = vmax.f32 %v1280, %v1550
      %v1569 = vmax.f32 %v1281, %v1551
      %v1570 = vmax.f32 %v1282, %v1552
      %v1571 = vmax.f32 %v1283, %v1553
      %p1572 = scmp.eq.s32.totalorder %s25, 0
      // Predicated region
      $region57: #{tpu_custom_call.1} parent=55 // pred_check
        %p1573 = pneg %p1572
      $region58: #{tpu_custom_call.1} parent=55 // pred_check_branch
        %1575 = sbr.rel (%p1573) target = $region60
      $region59: #{tpu_custom_call.1} parent=55 // pred_region
        %s1576 = scalar_lea.vmem [#allocation2], 160
        %1577 = vst.msk [vmem:[%s1576 + $0x1] sm:$0xff] %vm696, 0.0
        %1578 = vst.msk [vmem:[%s401 + $0x1] sm:$0xff] %vm696, 0.0
        %s1579 = scalar_lea.vmem [#allocation2], 480
        %1580 = vst.msk [vmem:[%s1579 + $0x1] sm:$0xff] %vm696, 0.0
        %1581 = vst.msk [vmem:[%s413 + $0x1] sm:$0xff] %vm696, 0.0
      $region60: #{tpu_custom_call.1} parent=55 // pred_fallthru
        _
      %p1582 = scmp.gt.s32.totalorder %s25, 0
      // Predicated region
      $region61: #{tpu_custom_call.1} parent=55 // pred_check
        %p1583 = pneg %p1582
      $region62: #{tpu_custom_call.1} parent=55 // pred_check_branch
        %1585 = sbr.rel (%p1583) target = $region64
      $region63: #{tpu_custom_call.1} parent=55 // pred_region
        %s1586 = scalar_lea.vmem %s357, 192
        %v1587 = vld [vmem:[%s1586] sm:$0xff]
        %v1588 = vld [vmem:[%s1] sm:$0x1]
        %v1589 = vlaneseq
        %v1590 = vshrl.u32 %v1589, 7
        %v1591 = vsub.s32 0, %v1590
        %v1592 = vrot.slane %v1588, %v1591
        %v1593 = vmul.f32 %v1587, %v1592
        %v1594 = vadd.f32 %v375, %v1593
        %v1595 = vld [vmem:[%s1 + $0x9] sm:$0x1]
        %v1596 = vlaneseq
        %v1597 = vshrl.u32 %v1596, 7
        %v1598 = vsub.s32 0, %v1597
        %v1599 = vrot.slane %v1595, %v1598
        %v1600 = vmul.f32 %v1587, %v1599
        %v1601 = vadd.f32 %v381, %v1600
        %s1602 = scalar_lea.vmem %s357, 288
        %v1603 = vld [vmem:[%s1602] sm:$0xff]
        %v1604 = vld [vmem:[%s1 + $0x1] sm:$0x1]
        %v1605 = vlaneseq
        %v1606 = vshrl.u32 %v1605, 7
        %v1607 = vsub.s32 0, %v1606
        %v1608 = vrot.slane %v1604, %v1607
        %v1609 = vmul.f32 %v1603, %v1608
        %v1610 = vadd.f32 %v1594, %v1609
        %v1611 = vld [vmem:[%s1 + $0xa] sm:$0x1]
        %v1612 = vlaneseq
        %v1613 = vshrl.u32 %v1612, 7
        %v1614 = vsub.s32 0, %v1613
        %v1615 = vrot.slane %v1611, %v1614
        %v1616 = vmul.f32 %v1603, %v1615
        %v1617 = vadd.f32 %v1601, %v1616
        %v1618 = vld [vmem:[%s1586 + $0x1] sm:$0xff]
        %v1619 = vld [vmem:[%s1 + $0x2] sm:$0x1]
        %v1620 = vlaneseq
        %v1621 = vshrl.u32 %v1620, 7
        %v1622 = vsub.s32 0, %v1621
        %v1623 = vrot.slane %v1619, %v1622
        %v1624 = vmul.f32 %v1618, %v1623
        %v1625 = vadd.f32 %v1610, %v1624
        %v1626 = vld [vmem:[%s1 + $0xb] sm:$0x1]
        %v1627 = vlaneseq
        %v1628 = vshrl.u32 %v1627, 7
        %v1629 = vsub.s32 0, %v1628
        %v1630 = vrot.slane %v1626, %v1629
        %v1631 = vmul.f32 %v1618, %v1630
        %v1632 = vadd.f32 %v1617, %v1631
        %v1633 = vld [vmem:[%s419] sm:$0xff]
        %v1634 = vld [vmem:[%s1 + $0x3] sm:$0x1]
        %v1635 = vlaneseq
        %v1636 = vshrl.u32 %v1635, 7
        %v1637 = vsub.s32 0, %v1636
        %v1638 = vrot.slane %v1634, %v1637
        %v1639 = vmul.f32 %v1633, %v1638
        %v1640 = vadd.f32 %v1625, %v1639
        %v1641 = vld [vmem:[%s1 + $0xc] sm:$0x1]
        %v1642 = vlaneseq
        %v1643 = vshrl.u32 %v1642, 7
        %v1644 = vsub.s32 0, %v1643
        %v1645 = vrot.slane %v1641, %v1644
        %v1646 = vmul.f32 %v1633, %v1645
        %v1647 = vadd.f32 %v1632, %v1646
        %v1648 = vld [vmem:[%s450] sm:$0xff]
        %v1649 = vld [vmem:[%s1 + $0x4] sm:$0x1]
        %v1650 = vlaneseq
        %v1651 = vshrl.u32 %v1650, 7
        %v1652 = vsub.s32 0, %v1651
        %v1653 = vrot.slane %v1649, %v1652
        %v1654 = vmul.f32 %v1648, %v1653
        %v1655 = vadd.f32 %v1640, %v1654
        %v1656 = vld [vmem:[%s1 + $0xd] sm:$0x1]
        %v1657 = vlaneseq
        %v1658 = vshrl.u32 %v1657, 7
        %v1659 = vsub.s32 0, %v1658
        %v1660 = vrot.slane %v1656, %v1659
        %v1661 = vmul.f32 %v1648, %v1660
        %v1662 = vadd.f32 %v1647, %v1661
        %v1663 = vld [vmem:[%s419 + $0x1] sm:$0xff]
        %v1664 = vld [vmem:[%s1 + $0x5] sm:$0x1]
        %v1665 = vlaneseq
        %v1666 = vshrl.u32 %v1665, 7
        %v1667 = vsub.s32 0, %v1666
        %v1668 = vrot.slane %v1664, %v1667
        %v1669 = vmul.f32 %v1663, %v1668
        %v1670 = vadd.f32 %v1655, %v1669
        %v1671 = vld [vmem:[%s1 + $0xe] sm:$0x1]
        %v1672 = vlaneseq
        %v1673 = vshrl.u32 %v1672, 7
        %v1674 = vsub.s32 0, %v1673
        %v1675 = vrot.slane %v1671, %v1674
        %v1676 = vmul.f32 %v1663, %v1675
        %v1677 = vadd.f32 %v1662, %v1676
        %v1678 = vld [vmem:[%s511] sm:$0xff]
        %v1679 = vld [vmem:[%s1 + $0x6] sm:$0x1]
        %v1680 = vlaneseq
        %v1681 = vshrl.u32 %v1680, 7
        %v1682 = vsub.s32 0, %v1681
        %v1683 = vrot.slane %v1679, %v1682
        %v1684 = vmul.f32 %v1678, %v1683
        %v1685 = vadd.f32 %v1670, %v1684
        %v1686 = vld [vmem:[%s1 + $0xf] sm:$0x1]
        %v1687 = vlaneseq
        %v1688 = vshrl.u32 %v1687, 7
        %v1689 = vsub.s32 0, %v1688
        %v1690 = vrot.slane %v1686, %v1689
        %v1691 = vmul.f32 %v1678, %v1690
        %v1692 = vadd.f32 %v1677, %v1691
        %v1693 = vld [vmem:[%s542] sm:$0xff]
        %v1694 = vld [vmem:[%s1 + $0x7] sm:$0x1]
        %v1695 = vlaneseq
        %v1696 = vshrl.u32 %v1695, 7
        %v1697 = vsub.s32 0, %v1696
        %v1698 = vrot.slane %v1694, %v1697
        %v1699 = vmul.f32 %v1693, %v1698
        %v1700 = vadd.f32 %v1685, %v1699
        %v1701 = vld [vmem:[%s1 + $0x10] sm:$0x1]
        %v1702 = vlaneseq
        %v1703 = vshrl.u32 %v1702, 7
        %v1704 = vsub.s32 0, %v1703
        %v1705 = vrot.slane %v1701, %v1704
        %v1706 = vmul.f32 %v1693, %v1705
        %v1707 = vadd.f32 %v1692, %v1706
        %v1708 = vld [vmem:[%s511 + $0x1] sm:$0xff]
        %v1709 = vld [vmem:[%s1 + $0x8] sm:$0x1]
        %v1710 = vlaneseq
        %v1711 = vshrl.u32 %v1710, 7
        %v1712 = vsub.s32 0, %v1711
        %v1713 = vrot.slane %v1709, %v1712
        %v1714 = vmul.f32 %v1708, %v1713
        %v1715 = vadd.f32 %v1700, %v1714
        %v1716 = vld [vmem:[%s1 + $0x11] sm:$0x1]
        %v1717 = vlaneseq
        %v1718 = vshrl.u32 %v1717, 7
        %v1719 = vsub.s32 0, %v1718
        %v1720 = vrot.slane %v1716, %v1719
        %v1721 = vmul.f32 %v1708, %v1720
        %v1722 = vadd.f32 %v1707, %v1721
        %s1723 = scalar_lea.vmem [#allocation2], 160
        %1724 = vst.msk [vmem:[%s1723 + $0x1] sm:$0xff] %vm696, %v1715
        %s1725 = scalar_lea.vmem [#allocation2], 480
        %1726 = vst.msk [vmem:[%s1725 + $0x1] sm:$0xff] %vm696, %v1722
        %v1727 = vld [vmem:[%s1602] sm:$0xff]
        %v1728 = vld [vmem:[%s1] sm:$0x1]
        %v1729 = vlaneseq
        %v1730 = vshrl.u32 %v1729, 7
        %v1731 = vsub.s32 0, %v1730
        %v1732 = vrot.slane %v1728, %v1731
        %v1733 = vmul.f32 %v1727, %v1732
        %v1734 = vadd.f32 %v375, %v1733
        %v1735 = vld [vmem:[%s1 + $0x9] sm:$0x1]
        %v1736 = vlaneseq
        %v1737 = vshrl.u32 %v1736, 7
        %v1738 = vsub.s32 0, %v1737
        %v1739 = vrot.slane %v1735, %v1738
        %v1740 = vmul.f32 %v1727, %v1739
        %v1741 = vadd.f32 %v381, %v1740
        %v1742 = vld [vmem:[%s1586 + $0x1] sm:$0xff]
        %v1743 = vld [vmem:[%s1 + $0x1] sm:$0x1]
        %v1744 = vlaneseq
        %v1745 = vshrl.u32 %v1744, 7
        %v1746 = vsub.s32 0, %v1745
        %v1747 = vrot.slane %v1743, %v1746
        %v1748 = vmul.f32 %v1742, %v1747
        %v1749 = vadd.f32 %v1734, %v1748
        %v1750 = vld [vmem:[%s1 + $0xa] sm:$0x1]
        %v1751 = vlaneseq
        %v1752 = vshrl.u32 %v1751, 7
        %v1753 = vsub.s32 0, %v1752
        %v1754 = vrot.slane %v1750, %v1753
        %v1755 = vmul.f32 %v1742, %v1754
        %v1756 = vadd.f32 %v1741, %v1755
        %v1757 = vld [vmem:[%s1602 + $0x1] sm:$0xff]
        %v1758 = vld [vmem:[%s1 + $0x2] sm:$0x1]
        %v1759 = vlaneseq
        %v1760 = vshrl.u32 %v1759, 7
        %v1761 = vsub.s32 0, %v1760
        %v1762 = vrot.slane %v1758, %v1761
        %v1763 = vmul.f32 %v1757, %v1762
        %v1764 = vadd.f32 %v1749, %v1763
        %v1765 = vld [vmem:[%s1 + $0xb] sm:$0x1]
        %v1766 = vlaneseq
        %v1767 = vshrl.u32 %v1766, 7
        %v1768 = vsub.s32 0, %v1767
        %v1769 = vrot.slane %v1765, %v1768
        %v1770 = vmul.f32 %v1757, %v1769
        %v1771 = vadd.f32 %v1756, %v1770
        %v1772 = vld [vmem:[%s450] sm:$0xff]
        %v1773 = vld [vmem:[%s1 + $0x3] sm:$0x1]
        %v1774 = vlaneseq
        %v1775 = vshrl.u32 %v1774, 7
        %v1776 = vsub.s32 0, %v1775
        %v1777 = vrot.slane %v1773, %v1776
        %v1778 = vmul.f32 %v1772, %v1777
        %v1779 = vadd.f32 %v1764, %v1778
        %v1780 = vld [vmem:[%s1 + $0xc] sm:$0x1]
        %v1781 = vlaneseq
        %v1782 = vshrl.u32 %v1781, 7
        %v1783 = vsub.s32 0, %v1782
        %v1784 = vrot.slane %v1780, %v1783
        %v1785 = vmul.f32 %v1772, %v1784
        %v1786 = vadd.f32 %v1771, %v1785
        %v1787 = vld [vmem:[%s419 + $0x1] sm:$0xff]
        %v1788 = vld [vmem:[%s1 + $0x4] sm:$0x1]
        %v1789 = vlaneseq
        %v1790 = vshrl.u32 %v1789, 7
        %v1791 = vsub.s32 0, %v1790
        %v1792 = vrot.slane %v1788, %v1791
        %v1793 = vmul.f32 %v1787, %v1792
        %v1794 = vadd.f32 %v1779, %v1793
        %v1795 = vld [vmem:[%s1 + $0xd] sm:$0x1]
        %v1796 = vlaneseq
        %v1797 = vshrl.u32 %v1796, 7
        %v1798 = vsub.s32 0, %v1797
        %v1799 = vrot.slane %v1795, %v1798
        %v1800 = vmul.f32 %v1787, %v1799
        %v1801 = vadd.f32 %v1786, %v1800
        %v1802 = vld [vmem:[%s450 + $0x1] sm:$0xff]
        %v1803 = vld [vmem:[%s1 + $0x5] sm:$0x1]
        %v1804 = vlaneseq
        %v1805 = vshrl.u32 %v1804, 7
        %v1806 = vsub.s32 0, %v1805
        %v1807 = vrot.slane %v1803, %v1806
        %v1808 = vmul.f32 %v1802, %v1807
        %v1809 = vadd.f32 %v1794, %v1808
        %v1810 = vld [vmem:[%s1 + $0xe] sm:$0x1]
        %v1811 = vlaneseq
        %v1812 = vshrl.u32 %v1811, 7
        %v1813 = vsub.s32 0, %v1812
        %v1814 = vrot.slane %v1810, %v1813
        %v1815 = vmul.f32 %v1802, %v1814
        %v1816 = vadd.f32 %v1801, %v1815
        %v1817 = vld [vmem:[%s542] sm:$0xff]
        %v1818 = vld [vmem:[%s1 + $0x6] sm:$0x1]
        %v1819 = vlaneseq
        %v1820 = vshrl.u32 %v1819, 7
        %v1821 = vsub.s32 0, %v1820
        %v1822 = vrot.slane %v1818, %v1821
        %v1823 = vmul.f32 %v1817, %v1822
        %v1824 = vadd.f32 %v1809, %v1823
        %v1825 = vld [vmem:[%s1 + $0xf] sm:$0x1]
        %v1826 = vlaneseq
        %v1827 = vshrl.u32 %v1826, 7
        %v1828 = vsub.s32 0, %v1827
        %v1829 = vrot.slane %v1825, %v1828
        %v1830 = vmul.f32 %v1817, %v1829
        %v1831 = vadd.f32 %v1816, %v1830
        %v1832 = vld [vmem:[%s511 + $0x1] sm:$0xff]
        %v1833 = vld [vmem:[%s1 + $0x7] sm:$0x1]
        %v1834 = vlaneseq
        %v1835 = vshrl.u32 %v1834, 7
        %v1836 = vsub.s32 0, %v1835
        %v1837 = vrot.slane %v1833, %v1836
        %v1838 = vmul.f32 %v1832, %v1837
        %v1839 = vadd.f32 %v1824, %v1838
        %v1840 = vld [vmem:[%s1 + $0x10] sm:$0x1]
        %v1841 = vlaneseq
        %v1842 = vshrl.u32 %v1841, 7
        %v1843 = vsub.s32 0, %v1842
        %v1844 = vrot.slane %v1840, %v1843
        %v1845 = vmul.f32 %v1832, %v1844
        %v1846 = vadd.f32 %v1831, %v1845
        %v1847 = vld [vmem:[%s542 + $0x1] sm:$0xff]
        %v1848 = vld [vmem:[%s1 + $0x8] sm:$0x1]
        %v1849 = vlaneseq
        %v1850 = vshrl.u32 %v1849, 7
        %v1851 = vsub.s32 0, %v1850
        %v1852 = vrot.slane %v1848, %v1851
        %v1853 = vmul.f32 %v1847, %v1852
        %v1854 = vadd.f32 %v1839, %v1853
        %v1855 = vld [vmem:[%s1 + $0x11] sm:$0x1]
        %v1856 = vlaneseq
        %v1857 = vshrl.u32 %v1856, 7
        %v1858 = vsub.s32 0, %v1857
        %v1859 = vrot.slane %v1855, %v1858
        %v1860 = vmul.f32 %v1847, %v1859
        %v1861 = vadd.f32 %v1846, %v1860
        %1862 = vst.msk [vmem:[%s401 + $0x1] sm:$0xff] %vm696, %v1854
        %1863 = vst.msk [vmem:[%s413 + $0x1] sm:$0xff] %vm696, %v1861
      $region64: #{tpu_custom_call.1} parent=55 // pred_fallthru
        _
      %v1864 = vld [vmem:[%s7 + $0x8] sm:$0x1]
      %v1865 = vlaneseq
      %v1866 = vshrl.u32 %v1865, 7
      %v1867 = vsub.s32 0, %v1866
      %v1868 = vrot.slane %v1864, %v1867
      %v1869 = vmul.f32 %v1559, %v1868
      %v1870 = vmul.f32 %v1560, %v1868
      %v1871 = vmul.f32 %v1561, %v1868
      %v1872 = vmul.f32 %v1562, %v1868
      %v1873 = vld [vmem:[%s7 + $0xa] sm:$0x1]
      %v1874 = vlaneseq
      %v1875 = vshrl.u32 %v1874, 7
      %v1876 = vsub.s32 0, %v1875
      %v1877 = vrot.slane %v1873, %v1876
      %v1878 = vadd.f32 %v1869, %v1877
      %v1879 = vadd.f32 %v1870, %v1877
      %v1880 = vadd.f32 %v1871, %v1877
      %v1881 = vadd.f32 %v1872, %v1877
      %v1882 = vpack.c.bf16 %v1879, %v1878
      %v1883 = vpack.c.bf16 %v1881, %v1880
      %v1884 = vld [vmem:[%s7 + $0x9] sm:$0x1]
      %v1885 = vlaneseq
      %v1886 = vshrl.u32 %v1885, 7
      %v1887 = vsub.s32 0, %v1886
      %v1888 = vrot.slane %v1884, %v1887
      %v1889 = vmul.f32 %v1568, %v1888
      %v1890 = vmul.f32 %v1569, %v1888
      %v1891 = vmul.f32 %v1570, %v1888
      %v1892 = vmul.f32 %v1571, %v1888
      %v1893 = vld [vmem:[%s7 + $0xb] sm:$0x1]
      %v1894 = vlaneseq
      %v1895 = vshrl.u32 %v1894, 7
      %v1896 = vsub.s32 0, %v1895
      %v1897 = vrot.slane %v1893, %v1896
      %v1898 = vadd.f32 %v1889, %v1897
      %v1899 = vadd.f32 %v1890, %v1897
      %v1900 = vadd.f32 %v1891, %v1897
      %v1901 = vadd.f32 %v1892, %v1897
      %v1902 = vpack.c.bf16 %v1899, %v1898
      %v1903 = vpack.c.bf16 %v1901, %v1900
      %v1904 = vld [vmem:[%s401] sm:$0xff]
      %v1905 = vld [vmem:[%s401 + $0x10] sm:$0xff]
      %v1906 = vld [vmem:[%s401 + $0x20] sm:$0xff]
      %v1907 = vld [vmem:[%s401 + $0x30] sm:$0xff]
      %v1908 = vld [vmem:[%s2] sm:$0x1]
      %v1909 = vlaneseq
      %v1910 = vshrl.u32 %v1909, 7
      %v1911 = vsub.s32 0, %v1910
      %v1912 = vrot.slane %v1908, %v1911
      %v1913 = vmul.f32 %v1904, %v1912
      %v1914 = vmul.f32 %v1905, %v1912
      %v1915 = vmul.f32 %v1906, %v1912
      %v1916 = vmul.f32 %v1907, %v1912
      %v1917 = vadd.f32 %v387, %v1913
      %v1918 = vadd.f32 %v387, %v1914
      %v1919 = vadd.f32 %v387, %v1915
      %v1920 = vadd.f32 %v387, %v1916
      %s1921 = scalar_lea.vmem [#allocation2], 160
      %v1922 = vld [vmem:[%s1921 + $0x1] sm:$0xff]
      %v1923 = vld [vmem:[%s1921 + $0x11] sm:$0xff]
      %v1924 = vld [vmem:[%s1921 + $0x21] sm:$0xff]
      %v1925 = vld [vmem:[%s1921 + $0x31] sm:$0xff]
      %v1926 = vld [vmem:[%s2 + $0x1] sm:$0x1]
      %v1927 = vlaneseq
      %v1928 = vshrl.u32 %v1927, 7
      %v1929 = vsub.s32 0, %v1928
      %v1930 = vrot.slane %v1926, %v1929
      %v1931 = vmul.f32 %v1922, %v1930
      %v1932 = vmul.f32 %v1923, %v1930
      %v1933 = vmul.f32 %v1924, %v1930
      %v1934 = vmul.f32 %v1925, %v1930
      %v1935 = vadd.f32 %v1917, %v1931
      %v1936 = vadd.f32 %v1918, %v1932
      %v1937 = vadd.f32 %v1919, %v1933
      %v1938 = vadd.f32 %v1920, %v1934
      %v1939 = vld [vmem:[%s401 + $0x1] sm:$0xff]
      %v1940 = vld [vmem:[%s401 + $0x11] sm:$0xff]
      %v1941 = vld [vmem:[%s401 + $0x21] sm:$0xff]
      %v1942 = vld [vmem:[%s401 + $0x31] sm:$0xff]
      %v1943 = vld [vmem:[%s2 + $0x2] sm:$0x1]
      %v1944 = vlaneseq
      %v1945 = vshrl.u32 %v1944, 7
      %v1946 = vsub.s32 0, %v1945
      %v1947 = vrot.slane %v1943, %v1946
      %v1948 = vmul.f32 %v1939, %v1947
      %v1949 = vmul.f32 %v1940, %v1947
      %v1950 = vmul.f32 %v1941, %v1947
      %v1951 = vmul.f32 %v1942, %v1947
      %v1952 = vadd.f32 %v1935, %v1948
      %v1953 = vadd.f32 %v1936, %v1949
      %v1954 = vadd.f32 %v1937, %v1950
      %v1955 = vadd.f32 %v1938, %v1951
      %v1956 = vld [vmem:[%s976] sm:$0xff]
      %v1957 = vld [vmem:[%s976 + $0x10] sm:$0xff]
      %v1958 = vld [vmem:[%s976 + $0x20] sm:$0xff]
      %v1959 = vld [vmem:[%s976 + $0x30] sm:$0xff]
      %v1960 = vld [vmem:[%s2 + $0x3] sm:$0x1]
      %v1961 = vlaneseq
      %v1962 = vshrl.u32 %v1961, 7
      %v1963 = vsub.s32 0, %v1962
      %v1964 = vrot.slane %v1960, %v1963
      %v1965 = vmul.f32 %v1956, %v1964
      %v1966 = vmul.f32 %v1957, %v1964
      %v1967 = vmul.f32 %v1958, %v1964
      %v1968 = vmul.f32 %v1959, %v1964
      %v1969 = vadd.f32 %v1952, %v1965
      %v1970 = vadd.f32 %v1953, %v1966
      %v1971 = vadd.f32 %v1954, %v1967
      %v1972 = vadd.f32 %v1955, %v1968
      %v1973 = vld [vmem:[%s695 + $0x1] sm:$0xff]
      %v1974 = vld [vmem:[%s695 + $0x11] sm:$0xff]
      %v1975 = vld [vmem:[%s695 + $0x21] sm:$0xff]
      %v1976 = vld [vmem:[%s695 + $0x31] sm:$0xff]
      %v1977 = vld [vmem:[%s2 + $0x4] sm:$0x1]
      %v1978 = vlaneseq
      %v1979 = vshrl.u32 %v1978, 7
      %v1980 = vsub.s32 0, %v1979
      %v1981 = vrot.slane %v1977, %v1980
      %v1982 = vmul.f32 %v1973, %v1981
      %v1983 = vmul.f32 %v1974, %v1981
      %v1984 = vmul.f32 %v1975, %v1981
      %v1985 = vmul.f32 %v1976, %v1981
      %v1986 = vadd.f32 %v1969, %v1982
      %v1987 = vadd.f32 %v1970, %v1983
      %v1988 = vadd.f32 %v1971, %v1984
      %v1989 = vadd.f32 %v1972, %v1985
      %v1990 = vld [vmem:[%s976 + $0x1] sm:$0xff]
      %v1991 = vld [vmem:[%s976 + $0x11] sm:$0xff]
      %v1992 = vld [vmem:[%s976 + $0x21] sm:$0xff]
      %v1993 = vld [vmem:[%s976 + $0x31] sm:$0xff]
      %v1994 = vld [vmem:[%s2 + $0x5] sm:$0x1]
      %v1995 = vlaneseq
      %v1996 = vshrl.u32 %v1995, 7
      %v1997 = vsub.s32 0, %v1996
      %v1998 = vrot.slane %v1994, %v1997
      %v1999 = vmul.f32 %v1990, %v1998
      %v2000 = vmul.f32 %v1991, %v1998
      %v2001 = vmul.f32 %v1992, %v1998
      %v2002 = vmul.f32 %v1993, %v1998
      %v2003 = vadd.f32 %v1986, %v1999
      %v2004 = vadd.f32 %v1987, %v2000
      %v2005 = vadd.f32 %v1988, %v2001
      %v2006 = vadd.f32 %v1989, %v2002
      %v2007 = vld [vmem:[%s1554] sm:$0xff]
      %v2008 = vld [vmem:[%s1554 + $0x10] sm:$0xff]
      %v2009 = vld [vmem:[%s1554 + $0x20] sm:$0xff]
      %v2010 = vld [vmem:[%s1554 + $0x30] sm:$0xff]
      %v2011 = vld [vmem:[%s2 + $0x6] sm:$0x1]
      %v2012 = vlaneseq
      %v2013 = vshrl.u32 %v2012, 7
      %v2014 = vsub.s32 0, %v2013
      %v2015 = vrot.slane %v2011, %v2014
      %v2016 = vmul.f32 %v2007, %v2015
      %v2017 = vmul.f32 %v2008, %v2015
      %v2018 = vmul.f32 %v2009, %v2015
      %v2019 = vmul.f32 %v2010, %v2015
      %v2020 = vadd.f32 %v2003, %v2016
      %v2021 = vadd.f32 %v2004, %v2017
      %v2022 = vadd.f32 %v2005, %v2018
      %v2023 = vadd.f32 %v2006, %v2019
      %v2024 = vld [vmem:[%s1266 + $0x1] sm:$0xff]
      %v2025 = vld [vmem:[%s1266 + $0x11] sm:$0xff]
      %v2026 = vld [vmem:[%s1266 + $0x21] sm:$0xff]
      %v2027 = vld [vmem:[%s1266 + $0x31] sm:$0xff]
      %v2028 = vld [vmem:[%s2 + $0x7] sm:$0x1]
      %v2029 = vlaneseq
      %v2030 = vshrl.u32 %v2029, 7
      %v2031 = vsub.s32 0, %v2030
      %v2032 = vrot.slane %v2028, %v2031
      %v2033 = vmul.f32 %v2024, %v2032
      %v2034 = vmul.f32 %v2025, %v2032
      %v2035 = vmul.f32 %v2026, %v2032
      %v2036 = vmul.f32 %v2027, %v2032
      %v2037 = vadd.f32 %v2020, %v2033
      %v2038 = vadd.f32 %v2021, %v2034
      %v2039 = vadd.f32 %v2022, %v2035
      %v2040 = vadd.f32 %v2023, %v2036
      %v2041 = vld [vmem:[%s1554 + $0x1] sm:$0xff]
      %v2042 = vld [vmem:[%s1554 + $0x11] sm:$0xff]
      %v2043 = vld [vmem:[%s1554 + $0x21] sm:$0xff]
      %v2044 = vld [vmem:[%s1554 + $0x31] sm:$0xff]
      %v2045 = vld [vmem:[%s2 + $0x8] sm:$0x1]
      %v2046 = vlaneseq
      %v2047 = vshrl.u32 %v2046, 7
      %v2048 = vsub.s32 0, %v2047
      %v2049 = vrot.slane %v2045, %v2048
      %v2050 = vmul.f32 %v2041, %v2049
      %v2051 = vmul.f32 %v2042, %v2049
      %v2052 = vmul.f32 %v2043, %v2049
      %v2053 = vmul.f32 %v2044, %v2049
      %v2054 = vadd.f32 %v2037, %v2050
      %v2055 = vadd.f32 %v2038, %v2051
      %v2056 = vadd.f32 %v2039, %v2052
      %v2057 = vadd.f32 %v2040, %v2053
      %v2058 = vmul.f32 %v2054, 0.5
      %v2059 = vmul.f32 %v2055, 0.5
      %v2060 = vmul.f32 %v2056, 0.5
      %v2061 = vmul.f32 %v2057, 0.5
      %v2062 = vrcp.pop 1.4142135
      %v2063 = vmul.f32 %v2054, %v2062
      %v2064 = vmul.f32 %v2055, %v2062
      %v2065 = vmul.f32 %v2056, %v2062
      %v2066 = vmul.f32 %v2057, %v2062
      %v2067 = vand.u32 2147483647, %v2063
      %v2068 = vand.u32 2147483647, %v2064
      %v2069 = vand.u32 2147483647, %v2065
      %v2070 = vand.u32 2147483647, %v2066
      %v2071 = vmul.f32 %v2067, 0.3275911
      %v2072 = vmul.f32 %v2068, 0.3275911
      %v2073 = vmul.f32 %v2069, 0.3275911
      %v2074 = vmul.f32 %v2070, 0.3275911
      %v2075 = vadd.f32 %v2071, 1.0
      %v2076 = vadd.f32 %v2072, 1.0
      %v2077 = vadd.f32 %v2073, 1.0
      %v2078 = vadd.f32 %v2074, 1.0
      %v2079 = vrcp.pop %v2075
      %v2080 = vrcp.pop %v2076
      %v2081 = vrcp.pop %v2077
      %v2082 = vrcp.pop %v2078
      %v2083 = vmul.f32 %v2075, %v2079
      %v2084 = vmul.f32 %v2076, %v2080
      %v2085 = vmul.f32 %v2077, %v2081
      %v2086 = vmul.f32 %v2078, %v2082
      %v2087 = vsub.f32 2.0, %v2083
      %v2088 = vsub.f32 2.0, %v2084
      %v2089 = vsub.f32 2.0, %v2085
      %v2090 = vsub.f32 2.0, %v2086
      %v2091 = vmul.f32 %v2079, %v2087
      %v2092 = vmul.f32 %v2080, %v2088
      %v2093 = vmul.f32 %v2081, %v2089
      %v2094 = vmul.f32 %v2082, %v2090
      %v2095 = vmul.f32 %v2091, 1.0614054
      %v2096 = vmul.f32 %v2092, 1.0614054
      %v2097 = vmul.f32 %v2093, 1.0614054
      %v2098 = vmul.f32 %v2094, 1.0614054
      %v2099 = vadd.f32 %v2095, -1.4531521
      %v2100 = vadd.f32 %v2096, -1.4531521
      %v2101 = vadd.f32 %v2097, -1.4531521
      %v2102 = vadd.f32 %v2098, -1.4531521
      %v2103 = vmul.f32 %v2099, %v2091
      %v2104 = vmul.f32 %v2100, %v2092
      %v2105 = vmul.f32 %v2101, %v2093
      %v2106 = vmul.f32 %v2102, %v2094
      %v2107 = vadd.f32 %v2103, 1.4214138
      %v2108 = vadd.f32 %v2104, 1.4214138
      %v2109 = vadd.f32 %v2105, 1.4214138
      %v2110 = vadd.f32 %v2106, 1.4214138
      %v2111 = vmul.f32 %v2107, %v2091
      %v2112 = vmul.f32 %v2108, %v2092
      %v2113 = vmul.f32 %v2109, %v2093
      %v2114 = vmul.f32 %v2110, %v2094
      %v2115 = vadd.f32 %v2111, -0.28449672
      %v2116 = vadd.f32 %v2112, -0.28449672
      %v2117 = vadd.f32 %v2113, -0.28449672
      %v2118 = vadd.f32 %v2114, -0.28449672
      %v2119 = vmul.f32 %v2115, %v2091
      %v2120 = vmul.f32 %v2116, %v2092
      %v2121 = vmul.f32 %v2117, %v2093
      %v2122 = vmul.f32 %v2118, %v2094
      %v2123 = vadd.f32 %v2119, 0.2548296
      %v2124 = vadd.f32 %v2120, 0.2548296
      %v2125 = vadd.f32 %v2121, 0.2548296
      %v2126 = vadd.f32 %v2122, 0.2548296
      %v2127 = vmul.f32 %v2123, %v2091
      %v2128 = vmul.f32 %v2124, %v2092
      %v2129 = vmul.f32 %v2125, %v2093
      %v2130 = vmul.f32 %v2126, %v2094
      %v2131 = vsub.f32 0.0, %v2067
      %v2132 = vsub.f32 0.0, %v2068
      %v2133 = vsub.f32 0.0, %v2069
      %v2134 = vsub.f32 0.0, %v2070
      %v2135 = vmul.f32 %v2131, %v2067
      %v2136 = vmul.f32 %v2132, %v2068
      %v2137 = vmul.f32 %v2133, %v2069
      %v2138 = vmul.f32 %v2134, %v2070
      %v2139 = vmul.f32 %v2135, 1.442695
      %v2140 = vpow.pop %v2139
      %v2141 = vmul.f32 %v2136, 1.442695
      %v2142 = vpow.pop %v2141
      %v2143 = vmul.f32 %v2137, 1.442695
      %v2144 = vpow.pop %v2143
      %v2145 = vmul.f32 %v2138, 1.442695
      %v2146 = vpow.pop %v2145
      %v2147 = vmul.f32 %v2127, %v2140
      %v2148 = vmul.f32 %v2128, %v2142
      %v2149 = vmul.f32 %v2129, %v2144
      %v2150 = vmul.f32 %v2130, %v2146
      %v2151 = vsub.f32 1.0, %v2147
      %v2152 = vsub.f32 1.0, %v2148
      %v2153 = vsub.f32 1.0, %v2149
      %v2154 = vsub.f32 1.0, %v2150
      %vm2155 = vcmp.ge.f32.partialorder %v2063, 0.0
      %vm2156 = vcmp.ge.f32.partialorder %v2064, 0.0
      %vm2157 = vcmp.ge.f32.partialorder %v2065, 0.0
      %vm2158 = vcmp.ge.f32.partialorder %v2066, 0.0
      %v2159 = vsub.f32 0.0, %v2151
      %v2160 = vsub.f32 0.0, %v2152
      %v2161 = vsub.f32 0.0, %v2153
      %v2162 = vsub.f32 0.0, %v2154
      %v2163 = vsel %vm2155, %v2151, %v2159
      %v2164 = vsel %vm2156, %v2152, %v2160
      %v2165 = vsel %vm2157, %v2153, %v2161
      %v2166 = vsel %vm2158, %v2154, %v2162
      %v2167 = vadd.f32 %v2163, 1.0
      %v2168 = vadd.f32 %v2164, 1.0
      %v2169 = vadd.f32 %v2165, 1.0
      %v2170 = vadd.f32 %v2166, 1.0
      %v2171 = vmul.f32 %v2058, %v2167
      %v2172 = vmul.f32 %v2059, %v2168
      %v2173 = vmul.f32 %v2060, %v2169
      %v2174 = vmul.f32 %v2061, %v2170
      %v2175 = vld [vmem:[%s7 + $0x4] sm:$0x1]
      %v2176 = vlaneseq
      %v2177 = vshrl.u32 %v2176, 7
      %v2178 = vsub.s32 0, %v2177
      %v2179 = vrot.slane %v2175, %v2178
      %v2180 = vmul.f32 %v2171, %v2179
      %v2181 = vmul.f32 %v2172, %v2179
      %v2182 = vmul.f32 %v2173, %v2179
      %v2183 = vmul.f32 %v2174, %v2179
      %v2184 = vld [vmem:[%s7 + $0x6] sm:$0x1]
      %v2185 = vlaneseq
      %v2186 = vshrl.u32 %v2185, 7
      %v2187 = vsub.s32 0, %v2186
      %v2188 = vrot.slane %v2184, %v2187
      %v2189 = vadd.f32 %v2180, %v2188
      %v2190 = vadd.f32 %v2181, %v2188
      %v2191 = vadd.f32 %v2182, %v2188
      %v2192 = vadd.f32 %v2183, %v2188
      %v2193 = vpack.c.bf16 %v2190, %v2189
      %v2194 = vpack.c.bf16 %v2192, %v2191
      %v2195 = vld [vmem:[%s413] sm:$0xff]
      %v2196 = vld [vmem:[%s413 + $0x10] sm:$0xff]
      %v2197 = vld [vmem:[%s413 + $0x20] sm:$0xff]
      %v2198 = vld [vmem:[%s413 + $0x30] sm:$0xff]
      %v2199 = vld [vmem:[%s2 + $0x9] sm:$0x1]
      %v2200 = vlaneseq
      %v2201 = vshrl.u32 %v2200, 7
      %v2202 = vsub.s32 0, %v2201
      %v2203 = vrot.slane %v2199, %v2202
      %v2204 = vmul.f32 %v2195, %v2203
      %v2205 = vmul.f32 %v2196, %v2203
      %v2206 = vmul.f32 %v2197, %v2203
      %v2207 = vmul.f32 %v2198, %v2203
      %v2208 = vadd.f32 %v393, %v2204
      %v2209 = vadd.f32 %v393, %v2205
      %v2210 = vadd.f32 %v393, %v2206
      %v2211 = vadd.f32 %v393, %v2207
      %s2212 = scalar_lea.vmem [#allocation2], 480
      %v2213 = vld [vmem:[%s2212 + $0x1] sm:$0xff]
      %v2214 = vld [vmem:[%s2212 + $0x11] sm:$0xff]
      %v2215 = vld [vmem:[%s2212 + $0x21] sm:$0xff]
      %v2216 = vld [vmem:[%s2212 + $0x31] sm:$0xff]
      %v2217 = vld [vmem:[%s2 + $0xa] sm:$0x1]
      %v2218 = vlaneseq
      %v2219 = vshrl.u32 %v2218, 7
      %v2220 = vsub.s32 0, %v2219
      %v2221 = vrot.slane %v2217, %v2220
      %v2222 = vmul.f32 %v2213, %v2221
      %v2223 = vmul.f32 %v2214, %v2221
      %v2224 = vmul.f32 %v2215, %v2221
      %v2225 = vmul.f32 %v2216, %v2221
      %v2226 = vadd.f32 %v2208, %v2222
      %v2227 = vadd.f32 %v2209, %v2223
      %v2228 = vadd.f32 %v2210, %v2224
      %v2229 = vadd.f32 %v2211, %v2225
      %v2230 = vld [vmem:[%s413 + $0x1] sm:$0xff]
      %v2231 = vld [vmem:[%s413 + $0x11] sm:$0xff]
      %v2232 = vld [vmem:[%s413 + $0x21] sm:$0xff]
      %v2233 = vld [vmem:[%s413 + $0x31] sm:$0xff]
      %v2234 = vld [vmem:[%s2 + $0xb] sm:$0x1]
      %v2235 = vlaneseq
      %v2236 = vshrl.u32 %v2235, 7
      %v2237 = vsub.s32 0, %v2236
      %v2238 = vrot.slane %v2234, %v2237
      %v2239 = vmul.f32 %v2230, %v2238
      %v2240 = vmul.f32 %v2231, %v2238
      %v2241 = vmul.f32 %v2232, %v2238
      %v2242 = vmul.f32 %v2233, %v2238
      %v2243 = vadd.f32 %v2226, %v2239
      %v2244 = vadd.f32 %v2227, %v2240
      %v2245 = vadd.f32 %v2228, %v2241
      %v2246 = vadd.f32 %v2229, %v2242
      %v2247 = vld [vmem:[%s985] sm:$0xff]
      %v2248 = vld [vmem:[%s985 + $0x10] sm:$0xff]
      %v2249 = vld [vmem:[%s985 + $0x20] sm:$0xff]
      %v2250 = vld [vmem:[%s985 + $0x30] sm:$0xff]
      %v2251 = vld [vmem:[%s2 + $0xc] sm:$0x1]
      %v2252 = vlaneseq
      %v2253 = vshrl.u32 %v2252, 7
      %v2254 = vsub.s32 0, %v2253
      %v2255 = vrot.slane %v2251, %v2254
      %v2256 = vmul.f32 %v2247, %v2255
      %v2257 = vmul.f32 %v2248, %v2255
      %v2258 = vmul.f32 %v2249, %v2255
      %v2259 = vmul.f32 %v2250, %v2255
      %v2260 = vadd.f32 %v2243, %v2256
      %v2261 = vadd.f32 %v2244, %v2257
      %v2262 = vadd.f32 %v2245, %v2258
      %v2263 = vadd.f32 %v2246, %v2259
      %v2264 = vld [vmem:[%s701 + $0x1] sm:$0xff]
      %v2265 = vld [vmem:[%s701 + $0x11] sm:$0xff]
      %v2266 = vld [vmem:[%s701 + $0x21] sm:$0xff]
      %v2267 = vld [vmem:[%s701 + $0x31] sm:$0xff]
      %v2268 = vld [vmem:[%s2 + $0xd] sm:$0x1]
      %v2269 = vlaneseq
      %v2270 = vshrl.u32 %v2269, 7
      %v2271 = vsub.s32 0, %v2270
      %v2272 = vrot.slane %v2268, %v2271
      %v2273 = vmul.f32 %v2264, %v2272
      %v2274 = vmul.f32 %v2265, %v2272
      %v2275 = vmul.f32 %v2266, %v2272
      %v2276 = vmul.f32 %v2267, %v2272
      %v2277 = vadd.f32 %v2260, %v2273
      %v2278 = vadd.f32 %v2261, %v2274
      %v2279 = vadd.f32 %v2262, %v2275
      %v2280 = vadd.f32 %v2263, %v2276
      %v2281 = vld [vmem:[%s985 + $0x1] sm:$0xff]
      %v2282 = vld [vmem:[%s985 + $0x11] sm:$0xff]
      %v2283 = vld [vmem:[%s985 + $0x21] sm:$0xff]
      %v2284 = vld [vmem:[%s985 + $0x31] sm:$0xff]
      %v2285 = vld [vmem:[%s2 + $0xe] sm:$0x1]
      %v2286 = vlaneseq
      %v2287 = vshrl.u32 %v2286, 7
      %v2288 = vsub.s32 0, %v2287
      %v2289 = vrot.slane %v2285, %v2288
      %v2290 = vmul.f32 %v2281, %v2289
      %v2291 = vmul.f32 %v2282, %v2289
      %v2292 = vmul.f32 %v2283, %v2289
      %v2293 = vmul.f32 %v2284, %v2289
      %v2294 = vadd.f32 %v2277, %v2290
      %v2295 = vadd.f32 %v2278, %v2291
      %v2296 = vadd.f32 %v2279, %v2292
      %v2297 = vadd.f32 %v2280, %v2293
      %v2298 = vld [vmem:[%s1563] sm:$0xff]
      %v2299 = vld [vmem:[%s1563 + $0x10] sm:$0xff]
      %v2300 = vld [vmem:[%s1563 + $0x20] sm:$0xff]
      %v2301 = vld [vmem:[%s1563 + $0x30] sm:$0xff]
      %v2302 = vld [vmem:[%s2 + $0xf] sm:$0x1]
      %v2303 = vlaneseq
      %v2304 = vshrl.u32 %v2303, 7
      %v2305 = vsub.s32 0, %v2304
      %v2306 = vrot.slane %v2302, %v2305
      %v2307 = vmul.f32 %v2298, %v2306
      %v2308 = vmul.f32 %v2299, %v2306
      %v2309 = vmul.f32 %v2300, %v2306
      %v2310 = vmul.f32 %v2301, %v2306
      %v2311 = vadd.f32 %v2294, %v2307
      %v2312 = vadd.f32 %v2295, %v2308
      %v2313 = vadd.f32 %v2296, %v2309
      %v2314 = vadd.f32 %v2297, %v2310
      %v2315 = vld [vmem:[%s1275 + $0x1] sm:$0xff]
      %v2316 = vld [vmem:[%s1275 + $0x11] sm:$0xff]
      %v2317 = vld [vmem:[%s1275 + $0x21] sm:$0xff]
      %v2318 = vld [vmem:[%s1275 + $0x31] sm:$0xff]
      %v2319 = vld [vmem:[%s2 + $0x10] sm:$0x1]
      %v2320 = vlaneseq
      %v2321 = vshrl.u32 %v2320, 7
      %v2322 = vsub.s32 0, %v2321
      %v2323 = vrot.slane %v2319, %v2322
      %v2324 = vmul.f32 %v2315, %v2323
      %v2325 = vmul.f32 %v2316, %v2323
      %v2326 = vmul.f32 %v2317, %v2323
      %v2327 = vmul.f32 %v2318, %v2323
      %v2328 = vadd.f32 %v2311, %v2324
      %v2329 = vadd.f32 %v2312, %v2325
      %v2330 = vadd.f32 %v2313, %v2326
      %v2331 = vadd.f32 %v2314, %v2327
      %v2332 = vld [vmem:[%s1563 + $0x1] sm:$0xff]
      %v2333 = vld [vmem:[%s1563 + $0x11] sm:$0xff]
      %v2334 = vld [vmem:[%s1563 + $0x21] sm:$0xff]
      %v2335 = vld [vmem:[%s1563 + $0x31] sm:$0xff]
      %v2336 = vld [vmem:[%s2 + $0x11] sm:$0x1]
      %v2337 = vlaneseq
      %v2338 = vshrl.u32 %v2337, 7
      %v2339 = vsub.s32 0, %v2338
      %v2340 = vrot.slane %v2336, %v2339
      %v2341 = vmul.f32 %v2332, %v2340
      %v2342 = vmul.f32 %v2333, %v2340
      %v2343 = vmul.f32 %v2334, %v2340
      %v2344 = vmul.f32 %v2335, %v2340
      %v2345 = vadd.f32 %v2328, %v2341
      %v2346 = vadd.f32 %v2329, %v2342
      %v2347 = vadd.f32 %v2330, %v2343
      %v2348 = vadd.f32 %v2331, %v2344
      %v2349 = vmul.f32 %v2345, 0.5
      %v2350 = vmul.f32 %v2346, 0.5
      %v2351 = vmul.f32 %v2347, 0.5
      %v2352 = vmul.f32 %v2348, 0.5
      %v2353 = vmul.f32 %v2345, %v2062
      %v2354 = vmul.f32 %v2346, %v2062
      %v2355 = vmul.f32 %v2347, %v2062
      %v2356 = vmul.f32 %v2348, %v2062
      %v2357 = vand.u32 2147483647, %v2353
      %v2358 = vand.u32 2147483647, %v2354
      %v2359 = vand.u32 2147483647, %v2355
      %v2360 = vand.u32 2147483647, %v2356
      %v2361 = vmul.f32 %v2357, 0.3275911
      %v2362 = vmul.f32 %v2358, 0.3275911
      %v2363 = vmul.f32 %v2359, 0.3275911
      %v2364 = vmul.f32 %v2360, 0.3275911
      %v2365 = vadd.f32 %v2361, 1.0
      %v2366 = vadd.f32 %v2362, 1.0
      %v2367 = vadd.f32 %v2363, 1.0
      %v2368 = vadd.f32 %v2364, 1.0
      %v2369 = vrcp.pop %v2365
      %v2370 = vrcp.pop %v2366
      %v2371 = vrcp.pop %v2367
      %v2372 = vrcp.pop %v2368
      %v2373 = vmul.f32 %v2365, %v2369
      %v2374 = vmul.f32 %v2366, %v2370
      %v2375 = vmul.f32 %v2367, %v2371
      %v2376 = vmul.f32 %v2368, %v2372
      %v2377 = vsub.f32 2.0, %v2373
      %v2378 = vsub.f32 2.0, %v2374
      %v2379 = vsub.f32 2.0, %v2375
      %v2380 = vsub.f32 2.0, %v2376
      %v2381 = vmul.f32 %v2369, %v2377
      %v2382 = vmul.f32 %v2370, %v2378
      %v2383 = vmul.f32 %v2371, %v2379
      %v2384 = vmul.f32 %v2372, %v2380
      %v2385 = vmul.f32 %v2381, 1.0614054
      %v2386 = vmul.f32 %v2382, 1.0614054
      %v2387 = vmul.f32 %v2383, 1.0614054
      %v2388 = vmul.f32 %v2384, 1.0614054
      %v2389 = vadd.f32 %v2385, -1.4531521
      %v2390 = vadd.f32 %v2386, -1.4531521
      %v2391 = vadd.f32 %v2387, -1.4531521
      %v2392 = vadd.f32 %v2388, -1.4531521
      %v2393 = vmul.f32 %v2389, %v2381
      %v2394 = vmul.f32 %v2390, %v2382
      %v2395 = vmul.f32 %v2391, %v2383
      %v2396 = vmul.f32 %v2392, %v2384
      %v2397 = vadd.f32 %v2393, 1.4214138
      %v2398 = vadd.f32 %v2394, 1.4214138
      %v2399 = vadd.f32 %v2395, 1.4214138
      %v2400 = vadd.f32 %v2396, 1.4214138
      %v2401 = vmul.f32 %v2397, %v2381
      %v2402 = vmul.f32 %v2398, %v2382
      %v2403 = vmul.f32 %v2399, %v2383
      %v2404 = vmul.f32 %v2400, %v2384
      %v2405 = vadd.f32 %v2401, -0.28449672
      %v2406 = vadd.f32 %v2402, -0.28449672
      %v2407 = vadd.f32 %v2403, -0.28449672
      %v2408 = vadd.f32 %v2404, -0.28449672
      %v2409 = vmul.f32 %v2405, %v2381
      %v2410 = vmul.f32 %v2406, %v2382
      %v2411 = vmul.f32 %v2407, %v2383
      %v2412 = vmul.f32 %v2408, %v2384
      %v2413 = vadd.f32 %v2409, 0.2548296
      %v2414 = vadd.f32 %v2410, 0.2548296
      %v2415 = vadd.f32 %v2411, 0.2548296
      %v2416 = vadd.f32 %v2412, 0.2548296
      %v2417 = vmul.f32 %v2413, %v2381
      %v2418 = vmul.f32 %v2414, %v2382
      %v2419 = vmul.f32 %v2415, %v2383
      %v2420 = vmul.f32 %v2416, %v2384
      %v2421 = vsub.f32 0.0, %v2357
      %v2422 = vsub.f32 0.0, %v2358
      %v2423 = vsub.f32 0.0, %v2359
      %v2424 = vsub.f32 0.0, %v2360
      %v2425 = vmul.f32 %v2421, %v2357
      %v2426 = vmul.f32 %v2422, %v2358
      %v2427 = vmul.f32 %v2423, %v2359
      %v2428 = vmul.f32 %v2424, %v2360
      %v2429 = vmul.f32 %v2425, 1.442695
      %v2430 = vpow.pop %v2429
      %v2431 = vmul.f32 %v2426, 1.442695
      %v2432 = vpow.pop %v2431
      %v2433 = vmul.f32 %v2427, 1.442695
      %v2434 = vpow.pop %v2433
      %v2435 = vmul.f32 %v2428, 1.442695
      %v2436 = vpow.pop %v2435
      %v2437 = vmul.f32 %v2417, %v2430
      %v2438 = vmul.f32 %v2418, %v2432
      %v2439 = vmul.f32 %v2419, %v2434
      %v2440 = vmul.f32 %v2420, %v2436
      %v2441 = vsub.f32 1.0, %v2437
      %v2442 = vsub.f32 1.0, %v2438
      %v2443 = vsub.f32 1.0, %v2439
      %v2444 = vsub.f32 1.0, %v2440
      %vm2445 = vcmp.ge.f32.partialorder %v2353, 0.0
      %vm2446 = vcmp.ge.f32.partialorder %v2354, 0.0
      %vm2447 = vcmp.ge.f32.partialorder %v2355, 0.0
      %vm2448 = vcmp.ge.f32.partialorder %v2356, 0.0
      %v2449 = vsub.f32 0.0, %v2441
      %v2450 = vsub.f32 0.0, %v2442
      %v2451 = vsub.f32 0.0, %v2443
      %v2452 = vsub.f32 0.0, %v2444
      %v2453 = vsel %vm2445, %v2441, %v2449
      %v2454 = vsel %vm2446, %v2442, %v2450
      %v2455 = vsel %vm2447, %v2443, %v2451
      %v2456 = vsel %vm2448, %v2444, %v2452
      %v2457 = vadd.f32 %v2453, 1.0
      %v2458 = vadd.f32 %v2454, 1.0
      %v2459 = vadd.f32 %v2455, 1.0
      %v2460 = vadd.f32 %v2456, 1.0
      %v2461 = vmul.f32 %v2349, %v2457
      %v2462 = vmul.f32 %v2350, %v2458
      %v2463 = vmul.f32 %v2351, %v2459
      %v2464 = vmul.f32 %v2352, %v2460
      %v2465 = vld [vmem:[%s7 + $0x5] sm:$0x1]
      %v2466 = vlaneseq
      %v2467 = vshrl.u32 %v2466, 7
      %v2468 = vsub.s32 0, %v2467
      %v2469 = vrot.slane %v2465, %v2468
      %v2470 = vmul.f32 %v2461, %v2469
      %v2471 = vmul.f32 %v2462, %v2469
      %v2472 = vmul.f32 %v2463, %v2469
      %v2473 = vmul.f32 %v2464, %v2469
      %v2474 = vld [vmem:[%s7 + $0x7] sm:$0x1]
      %v2475 = vlaneseq
      %v2476 = vshrl.u32 %v2475, 7
      %v2477 = vsub.s32 0, %v2476
      %v2478 = vrot.slane %v2474, %v2477
      %v2479 = vadd.f32 %v2470, %v2478
      %v2480 = vadd.f32 %v2471, %v2478
      %v2481 = vadd.f32 %v2472, %v2478
      %v2482 = vadd.f32 %v2473, %v2478
      %v2483 = vpack.c.bf16 %v2480, %v2479
      %v2484 = vpack.c.bf16 %v2482, %v2481
      %v2485 = vld [vmem:[%s542] sm:$0xff]
      %v2486 = vld [vmem:[%s542 + $0x10] sm:$0xff]
      %v2487 = vld [vmem:[%s542 + $0x20] sm:$0xff]
      %v2488 = vld [vmem:[%s542 + $0x30] sm:$0xff]
      %v2489 = vld [vmem:[%s634] sm:$0xff]
      %v2490 = vld [vmem:[%s634 + $0x10] sm:$0xff]
      %v2491 = vld [vmem:[%s634 + $0x20] sm:$0xff]
      %v2492 = vld [vmem:[%s634 + $0x30] sm:$0xff]
      %v2493 = vld [vmem:[%s511 + $0x1] sm:$0xff]
      %v2494 = vld [vmem:[%s511 + $0x11] sm:$0xff]
      %v2495 = vld [vmem:[%s511 + $0x21] sm:$0xff]
      %v2496 = vld [vmem:[%s511 + $0x31] sm:$0xff]
      %v2497 = vld [vmem:[%s603 + $0x1] sm:$0xff]
      %v2498 = vld [vmem:[%s603 + $0x11] sm:$0xff]
      %v2499 = vld [vmem:[%s603 + $0x21] sm:$0xff]
      %v2500 = vld [vmem:[%s603 + $0x31] sm:$0xff]
      %v2501 = vpack.c.bf16 %v2486, %v2485
      %v2502 = vpack.c.bf16 %v2488, %v2487
      %v2503 = vld [vmem:[%s3] sm:$0x3]
      %v2504 = vpack.c.bf16 %v2490, %v2489
      %v2505 = vpack.c.bf16 %v2492, %v2491
      %s2506 = scalar_lea.vmem %s3, 2
      %v2507 = vld [vmem:[%s2506] sm:$0x3]
      %v2509 = vsel %vm696, %v2504, 0
      %v2512 = vsel %vm696, %v2505, 0
      %vm2514 = vcmask 1041408
      %v2516 = vsel %vm2514, %v2507, 0
      %2518 = vmatprep.subr.bf16.mxu0 0
      %2519 = vmatpush1.bf16.msra.mxu0 %v2516
      %2520 = vmatprep.subr.bf16.mxu0 0
      %2521 = vmatpush1.bf16.msra.mxu0 0
      %2522 = vmatprep.subr.bf16.mxu0 0
      %2523 = vmatpush1.bf16.msra.mxu0 0
      %2524 = vmatprep.subr.bf16.mxu0 0
      %2525 = vmatpush1.bf16.msra.mxu0 0
      %2526 = vmatprep.subr.bf16.mxu0 0
      %2527 = vmatpush1.bf16.msra.mxu0 0
      %2528 = vmatprep.subr.bf16.mxu0 0
      %2529 = vmatpush1.bf16.msra.mxu0 0
      %2530 = vmatprep.subr.bf16.mxu0 0
      %2531 = vmatpush1.bf16.msra.mxu0 0
      %2532 = vmatprep.subr.bf16.mxu0 0
      %2533 = vmatpush1.bf16.msra.mxu0 0
      %2534 = vmatprep.subr.bf16.mxu0 0
      %2535 = vmatpush1.bf16.msra.mxu0 0
      %2536 = vmatprep.subr.bf16.mxu0 0
      %2537 = vmatpush1.bf16.msra.mxu0 0
      %2538 = vmatprep.subr.bf16.mxu0 0
      %2539 = vmatpush1.bf16.msra.mxu0 0
      %2540 = vmatprep.subr.bf16.mxu0 0
      %2541 = vmatpush1.bf16.msra.mxu0 0
      %2542 = vmatprep.subr.bf16.mxu0 0
      %2543 = vmatpush1.bf16.msra.mxu0 0
      %2544 = vmatprep.subr.bf16.mxu0 0
      %2545 = vmatpush1.bf16.msra.mxu0 0
      %2546 = vmatprep.subr.bf16.mxu0 0
      %2547 = vmatpush1.bf16.msra.mxu0 0
      %2548 = vmatprep.subr.bf16.mxu0 0
      %2549 = vmatpush1.bf16.msra.mxu0 0
      %2550 = vmatprep.mubr.bf16.mxu0 0
      %2551 = vmatmul.mubr.bf16.gmra.mrb[0].mxu0 %v2509
      %v2552 = vpop.f32.mrb[0].mxu0
      %v2553 = vadd.f32 0.0, %v2552
      %v2554 = vpop.f32.mrb[0].mxu0
      %v2555 = vpop.f32.mrb[0].mxu0
      %v2556 = vadd.f32 0.0, %v2555
      %v2557 = vpop.f32.mrb[0].mxu0
      %2558 = vmatprep.mubr.bf16.mxu0 0
      %2559 = vmatmul.mubr.bf16.gmra.mrb[0].mxu0 %v2512
      %v2560 = vpop.f32.mrb[0].mxu0
      %v2561 = vadd.f32 0.0, %v2560
      %v2562 = vpop.f32.mrb[0].mxu0
      %v2563 = vpop.f32.mrb[0].mxu0
      %v2564 = vadd.f32 0.0, %v2563
      %v2565 = vpop.f32.mrb[0].mxu0
      %2566 = vdwg.mxu0
      %v2568 = vsel %vm696, %v2501, 0
      %v2571 = vsel %vm696, %v2502, 0
      %v2574 = vsel %vm2514, %v2503, 0
      %2576 = vmatprep.subr.bf16.mxu0 0
      %2577 = vmatpush1.bf16.msra.mxu0 %v2574
      %2578 = vmatprep.subr.bf16.mxu0 0
      %2579 = vmatpush1.bf16.msra.mxu0 0
      %2580 = vmatprep.subr.bf16.mxu0 0
      %2581 = vmatpush1.bf16.msra.mxu0 0
      %2582 = vmatprep.subr.bf16.mxu0 0
      %2583 = vmatpush1.bf16.msra.mxu0 0
      %2584 = vmatprep.subr.bf16.mxu0 0
      %2585 = vmatpush1.bf16.msra.mxu0 0
      %2586 = vmatprep.subr.bf16.mxu0 0
      %2587 = vmatpush1.bf16.msra.mxu0 0
      %2588 = vmatprep.subr.bf16.mxu0 0
      %2589 = vmatpush1.bf16.msra.mxu0 0
      %2590 = vmatprep.subr.bf16.mxu0 0
      %2591 = vmatpush1.bf16.msra.mxu0 0
      %2592 = vmatprep.subr.bf16.mxu0 0
      %2593 = vmatpush1.bf16.msra.mxu0 0
      %2594 = vmatprep.subr.bf16.mxu0 0
      %2595 = vmatpush1.bf16.msra.mxu0 0
      %2596 = vmatprep.subr.bf16.mxu0 0
      %2597 = vmatpush1.bf16.msra.mxu0 0
      %2598 = vmatprep.subr.bf16.mxu0 0
      %2599 = vmatpush1.bf16.msra.mxu0 0
      %2600 = vmatprep.subr.bf16.mxu0 0
      %2601 = vmatpush1.bf16.msra.mxu0 0
      %2602 = vmatprep.subr.bf16.mxu0 0
      %2603 = vmatpush1.bf16.msra.mxu0 0
      %2604 = vmatprep.subr.bf16.mxu0 0
      %2605 = vmatpush1.bf16.msra.mxu0 0
      %2606 = vmatprep.subr.bf16.mxu0 0
      %2607 = vmatpush1.bf16.msra.mxu0 0
      %2608 = vmatprep.mubr.bf16.mxu0 0
      %2609 = vmatmul.mubr.bf16.gmra.mrb[0].mxu0 %v2568
      %v2610 = vpop.f32.mrb[0].mxu0
      %v2611 = vadd.f32 %v2553, %v2610
      %v2612 = vpop.f32.mrb[0].mxu0
      %v2613 = vpop.f32.mrb[0].mxu0
      %v2614 = vadd.f32 %v2556, %v2613
      %v2615 = vpop.f32.mrb[0].mxu0
      %2616 = vmatprep.mubr.bf16.mxu0 0
      %2617 = vmatmul.mubr.bf16.gmra.mrb[0].mxu0 %v2571
      %v2618 = vpop.f32.mrb[0].mxu0
      %v2619 = vadd.f32 %v2561, %v2618
      %v2620 = vpop.f32.mrb[0].mxu0
      %v2621 = vpop.f32.mrb[0].mxu0
      %v2622 = vadd.f32 %v2564, %v2621
      %v2623 = vpop.f32.mrb[0].mxu0
      %2624 = vdwg.mxu0
      %v2625 = vpack.c.bf16 %v2494, %v2493
      %v2626 = vpack.c.bf16 %v2496, %v2495
      %s2627 = scalar_lea.vmem %s3, 4
      %v2628 = vld [vmem:[%s2627] sm:$0x3]
      %v2630 = vsel %vm696, %v2625, 0
      %v2633 = vsel %vm696, %v2626, 0
      %v2636 = vsel %vm2514, %v2628, 0
      %2638 = vmatprep.subr.bf16.mxu0 0
      %2639 = vmatpush1.bf16.msra.mxu0 %v2636
      %2640 = vmatprep.subr.bf16.mxu0 0
      %2641 = vmatpush1.bf16.msra.mxu0 0
      %2642 = vmatprep.subr.bf16.mxu0 0
      %2643 = vmatpush1.bf16.msra.mxu0 0
      %2644 = vmatprep.subr.bf16.mxu0 0
      %2645 = vmatpush1.bf16.msra.mxu0 0
      %2646 = vmatprep.subr.bf16.mxu0 0
      %2647 = vmatpush1.bf16.msra.mxu0 0
      %2648 = vmatprep.subr.bf16.mxu0 0
      %2649 = vmatpush1.bf16.msra.mxu0 0
      %2650 = vmatprep.subr.bf16.mxu0 0
      %2651 = vmatpush1.bf16.msra.mxu0 0
      %2652 = vmatprep.subr.bf16.mxu0 0
      %2653 = vmatpush1.bf16.msra.mxu0 0
      %2654 = vmatprep.subr.bf16.mxu0 0
      %2655 = vmatpush1.bf16.msra.mxu0 0
      %2656 = vmatprep.subr.bf16.mxu0 0
      %2657 = vmatpush1.bf16.msra.mxu0 0
      %2658 = vmatprep.subr.bf16.mxu0 0
      %2659 = vmatpush1.bf16.msra.mxu0 0
      %2660 = vmatprep.subr.bf16.mxu0 0
      %2661 = vmatpush1.bf16.msra.mxu0 0
      %2662 = vmatprep.subr.bf16.mxu0 0
      %2663 = vmatpush1.bf16.msra.mxu0 0
      %2664 = vmatprep.subr.bf16.mxu0 0
      %2665 = vmatpush1.bf16.msra.mxu0 0
      %2666 = vmatprep.subr.bf16.mxu0 0
      %2667 = vmatpush1.bf16.msra.mxu0 0
      %2668 = vmatprep.subr.bf16.mxu0 0
      %2669 = vmatpush1.bf16.msra.mxu0 0
      %2670 = vmatprep.mubr.bf16.mxu0 0
      %2671 = vmatmul.mubr.bf16.gmra.mrb[0].mxu0 %v2630
      %v2672 = vpop.f32.mrb[0].mxu0
      %v2673 = vadd.f32 0.0, %v2672
      %v2674 = vpop.f32.mrb[0].mxu0
      %v2675 = vpop.f32.mrb[0].mxu0
      %v2676 = vadd.f32 0.0, %v2675
      %v2677 = vpop.f32.mrb[0].mxu0
      %2678 = vmatprep.mubr.bf16.mxu0 0
      %2679 = vmatmul.mubr.bf16.gmra.mrb[0].mxu0 %v2633
      %v2680 = vpop.f32.mrb[0].mxu0
      %v2681 = vadd.f32 0.0, %v2680
      %v2682 = vpop.f32.mrb[0].mxu0
      %v2683 = vpop.f32.mrb[0].mxu0
      %v2684 = vadd.f32 0.0, %v2683
      %v2685 = vpop.f32.mrb[0].mxu0
      %2686 = vdwg.mxu0
      %v2687 = vadd.f32 %v2611, %v2673
      %v2688 = vadd.f32 %v2614, %v2676
      %v2689 = vadd.f32 %v2619, %v2681
      %v2690 = vadd.f32 %v2622, %v2684
      %v2691 = vpack.c.bf16 %v2498, %v2497
      %v2692 = vpack.c.bf16 %v2500, %v2499
      %s2693 = scalar_lea.vmem %s3, 6
      %v2694 = vld [vmem:[%s2693] sm:$0x3]
      %v2696 = vsel %vm696, %v2691, 0
      %v2699 = vsel %vm696, %v2692, 0
      %v2702 = vsel %vm2514, %v2694, 0
      %2704 = vmatprep.subr.bf16.mxu0 0
      %2705 = vmatpush1.bf16.msra.mxu0 %v2702
      %2706 = vmatprep.subr.bf16.mxu0 0
      %2707 = vmatpush1.bf16.msra.mxu0 0
      %2708 = vmatprep.subr.bf16.mxu0 0
      %2709 = vmatpush1.bf16.msra.mxu0 0
      %2710 = vmatprep.subr.bf16.mxu0 0
      %2711 = vmatpush1.bf16.msra.mxu0 0
      %2712 = vmatprep.subr.bf16.mxu0 0
      %2713 = vmatpush1.bf16.msra.mxu0 0
      %2714 = vmatprep.subr.bf16.mxu0 0
      %2715 = vmatpush1.bf16.msra.mxu0 0
      %2716 = vmatprep.subr.bf16.mxu0 0
      %2717 = vmatpush1.bf16.msra.mxu0 0
      %2718 = vmatprep.subr.bf16.mxu0 0
      %2719 = vmatpush1.bf16.msra.mxu0 0
      %2720 = vmatprep.subr.bf16.mxu0 0
      %2721 = vmatpush1.bf16.msra.mxu0 0
      %2722 = vmatprep.subr.bf16.mxu0 0
      %2723 = vmatpush1.bf16.msra.mxu0 0
      %2724 = vmatprep.subr.bf16.mxu0 0
      %2725 = vmatpush1.bf16.msra.mxu0 0
      %2726 = vmatprep.subr.bf16.mxu0 0
      %2727 = vmatpush1.bf16.msra.mxu0 0
      %2728 = vmatprep.subr.bf16.mxu0 0
      %2729 = vmatpush1.bf16.msra.mxu0 0
      %2730 = vmatprep.subr.bf16.mxu0 0
      %2731 = vmatpush1.bf16.msra.mxu0 0
      %2732 = vmatprep.subr.bf16.mxu0 0
      %2733 = vmatpush1.bf16.msra.mxu0 0
      %2734 = vmatprep.subr.bf16.mxu0 0
      %2735 = vmatpush1.bf16.msra.mxu0 0
      %2736 = vmatprep.mubr.bf16.mxu0 0
      %2737 = vmatmul.mubr.bf16.gmra.mrb[0].mxu0 %v2696
      %v2738 = vpop.f32.mrb[0].mxu0
      %v2739 = vadd.f32 0.0, %v2738
      %v2740 = vpop.f32.mrb[0].mxu0
      %v2741 = vpop.f32.mrb[0].mxu0
      %v2742 = vadd.f32 0.0, %v2741
      %v2743 = vpop.f32.mrb[0].mxu0
      %2744 = vmatprep.mubr.bf16.mxu0 0
      %2745 = vmatmul.mubr.bf16.gmra.mrb[0].mxu0 %v2699
      %v2746 = vpop.f32.mrb[0].mxu0
      %v2747 = vadd.f32 0.0, %v2746
      %v2748 = vpop.f32.mrb[0].mxu0
      %v2749 = vpop.f32.mrb[0].mxu0
      %v2750 = vadd.f32 0.0, %v2749
      %v2751 = vpop.f32.mrb[0].mxu0
      %2752 = vdwg.mxu0
      %v2753 = vadd.f32 %v2687, %v2739
      %v2754 = vadd.f32 %v2688, %v2742
      %v2755 = vadd.f32 %v2689, %v2747
      %v2756 = vadd.f32 %v2690, %v2750
      %v2757 = vld [vmem:[%s8] sm:$0x1]
      %v2758 = vlaneseq
      %v2759 = vshrl.u32 %v2758, 7
      %v2760 = vsub.s32 0, %v2759
      %v2761 = vrot.slane %v2757, %v2760
      %v2762 = vadd.f32 %v2753, %v2761
      %v2763 = vadd.f32 %v2754, %v2761
      %v2764 = vadd.f32 %v2755, %v2761
      %v2765 = vadd.f32 %v2756, %v2761
      %v2766 = vld [vmem:[%s8 + $0x1] sm:$0x1]
      %v2767 = vlaneseq
      %v2768 = vshrl.u32 %v2767, 7
      %v2769 = vsub.s32 0, %v2768
      %v2770 = vrot.slane %v2766, %v2769
      %v2771 = vmul.f32 %v2762, %v2770
      %v2772 = vmul.f32 %v2763, %v2770
      %v2773 = vmul.f32 %v2764, %v2770
      %v2774 = vmul.f32 %v2765, %v2770
      %v2775 = vld [vmem:[%s8 + $0x2] sm:$0x1]
      %v2776 = vlaneseq
      %v2777 = vshrl.u32 %v2776, 7
      %v2778 = vsub.s32 0, %v2777
      %v2779 = vrot.slane %v2775, %v2778
      %v2780 = vadd.f32 %v2771, %v2779
      %v2781 = vadd.f32 %v2772, %v2779
      %v2782 = vadd.f32 %v2773, %v2779
      %v2783 = vadd.f32 %v2774, %v2779
      %v2784 = vpack.c.bf16 %v2781, %v2780
      %v2785 = vpack.c.bf16 %v2783, %v2782
      %v2786 = vld [vmem:[%s6] sm:$0xf]
      %v2787 = vld [vmem:[%s4] sm:$0x3]
      %v2789 = vsel %vm696, %v2193, 0
      %v2792 = vsel %vm696, %v2194, 0
      %v2795 = vsel %vm2514, %v2787, 0
      %2797 = vmatprep.subr.bf16.mxu0 0
      %2798 = vmatpush1.bf16.msra.mxu0 %v2795
      %2799 = vmatprep.subr.bf16.mxu0 0
      %2800 = vmatpush1.bf16.msra.mxu0 0
      %2801 = vmatprep.subr.bf16.mxu0 0
      %2802 = vmatpush1.bf16.msra.mxu0 0
      %2803 = vmatprep.subr.bf16.mxu0 0
      %2804 = vmatpush1.bf16.msra.mxu0 0
      %2805 = vmatprep.subr.bf16.mxu0 0
      %2806 = vmatpush1.bf16.msra.mxu0 0
      %2807 = vmatprep.subr.bf16.mxu0 0
      %2808 = vmatpush1.bf16.msra.mxu0 0
      %2809 = vmatprep.subr.bf16.mxu0 0
      %2810 = vmatpush1.bf16.msra.mxu0 0
      %2811 = vmatprep.subr.bf16.mxu0 0
      %2812 = vmatpush1.bf16.msra.mxu0 0
      %2813 = vmatprep.subr.bf16.mxu0 0
      %2814 = vmatpush1.bf16.msra.mxu0 0
      %2815 = vmatprep.subr.bf16.mxu0 0
      %2816 = vmatpush1.bf16.msra.mxu0 0
      %2817 = vmatprep.subr.bf16.mxu0 0
      %2818 = vmatpush1.bf16.msra.mxu0 0
      %2819 = vmatprep.subr.bf16.mxu0 0
      %2820 = vmatpush1.bf16.msra.mxu0 0
      %2821 = vmatprep.subr.bf16.mxu0 0
      %2822 = vmatpush1.bf16.msra.mxu0 0
      %2823 = vmatprep.subr.bf16.mxu0 0
      %2824 = vmatpush1.bf16.msra.mxu0 0
      %2825 = vmatprep.subr.bf16.mxu0 0
      %2826 = vmatpush1.bf16.msra.mxu0 0
      %2827 = vmatprep.subr.bf16.mxu0 0
      %2828 = vmatpush1.bf16.msra.mxu0 0
      %2829 = vmatprep.mubr.bf16.mxu0 0
      %2830 = vmatmul.mubr.bf16.gmra.mrb[0].mxu0 %v2789
      %v2831 = vpop.f32.mrb[0].mxu0
      %v2832 = vadd.f32 0.0, %v2831
      %v2833 = vpop.f32.mrb[0].mxu0
      %v2834 = vpop.f32.mrb[0].mxu0
      %v2835 = vadd.f32 0.0, %v2834
      %v2836 = vpop.f32.mrb[0].mxu0
      %2837 = vmatprep.mubr.bf16.mxu0 0
      %2838 = vmatmul.mubr.bf16.gmra.mrb[0].mxu0 %v2792
      %v2839 = vpop.f32.mrb[0].mxu0
      %v2840 = vadd.f32 0.0, %v2839
      %v2841 = vpop.f32.mrb[0].mxu0
      %v2842 = vpop.f32.mrb[0].mxu0
      %v2843 = vadd.f32 0.0, %v2842
      %v2844 = vpop.f32.mrb[0].mxu0
      %2845 = vdwg.mxu0
      %vm2846 = vcmask 64512
      %v2848 = vsel %vm2846, %v2784, 0
      %v2851 = vsel %vm2846, %v2785, 0
      %vm2853 = vcmask 1043456
      %v2855 = vsel %vm2853, %v2786, 0
      %2857 = vmatprep.subr.bf16.mxu0 0
      %2858 = vmatpush1.bf16.msra.mxu0 %v2855
      %2859 = vmatprep.subr.bf16.mxu0 0
      %2860 = vmatpush1.bf16.msra.mxu0 0
      %2861 = vmatprep.subr.bf16.mxu0 0
      %2862 = vmatpush1.bf16.msra.mxu0 0
      %2863 = vmatprep.subr.bf16.mxu0 0
      %2864 = vmatpush1.bf16.msra.mxu0 0
      %2865 = vmatprep.subr.bf16.mxu0 0
      %2866 = vmatpush1.bf16.msra.mxu0 0
      %2867 = vmatprep.subr.bf16.mxu0 0
      %2868 = vmatpush1.bf16.msra.mxu0 0
      %2869 = vmatprep.subr.bf16.mxu0 0
      %2870 = vmatpush1.bf16.msra.mxu0 0
      %2871 = vmatprep.subr.bf16.mxu0 0
      %2872 = vmatpush1.bf16.msra.mxu0 0
      %2873 = vmatprep.subr.bf16.mxu0 0
      %2874 = vmatpush1.bf16.msra.mxu0 0
      %2875 = vmatprep.subr.bf16.mxu0 0
      %2876 = vmatpush1.bf16.msra.mxu0 0
      %2877 = vmatprep.subr.bf16.mxu0 0
      %2878 = vmatpush1.bf16.msra.mxu0 0
      %2879 = vmatprep.subr.bf16.mxu0 0
      %2880 = vmatpush1.bf16.msra.mxu0 0
      %2881 = vmatprep.subr.bf16.mxu0 0
      %2882 = vmatpush1.bf16.msra.mxu0 0
      %2883 = vmatprep.subr.bf16.mxu0 0
      %2884 = vmatpush1.bf16.msra.mxu0 0
      %2885 = vmatprep.subr.bf16.mxu0 0
      %2886 = vmatpush1.bf16.msra.mxu0 0
      %2887 = vmatprep.subr.bf16.mxu0 0
      %2888 = vmatpush1.bf16.msra.mxu0 0
      %2889 = vmatprep.mubr.bf16.mxu0 0
      %2890 = vmatmul.mubr.bf16.gmra.mrb[0].mxu0 %v2848
      %v2891 = vpop.f32.mrb[0].mxu0
      %v2892 = vadd.f32 %v2832, %v2891
      %v2893 = vpop.f32.mrb[0].mxu0
      %v2894 = vpop.f32.mrb[0].mxu0
      %v2895 = vadd.f32 %v2835, %v2894
      %v2896 = vpop.f32.mrb[0].mxu0
      %2897 = vmatprep.mubr.bf16.mxu0 0
      %2898 = vmatmul.mubr.bf16.gmra.mrb[0].mxu0 %v2851
      %v2899 = vpop.f32.mrb[0].mxu0
      %v2900 = vadd.f32 %v2840, %v2899
      %v2901 = vpop.f32.mrb[0].mxu0
      %v2902 = vpop.f32.mrb[0].mxu0
      %v2903 = vadd.f32 %v2843, %v2902
      %v2904 = vpop.f32.mrb[0].mxu0
      %2905 = vdwg.mxu0
      %v2906 = vld [vmem:[%s5] sm:$0x3]
      %v2908 = vsel %vm696, %v1882, 0
      %v2911 = vsel %vm696, %v1883, 0
      %v2914 = vsel %vm2514, %v2906, 0
      %2916 = vmatprep.subr.bf16.mxu0 0
      %2917 = vmatpush1.bf16.msra.mxu0 %v2914
      %2918 = vmatprep.subr.bf16.mxu0 0
      %2919 = vmatpush1.bf16.msra.mxu0 0
      %2920 = vmatprep.subr.bf16.mxu0 0
      %2921 = vmatpush1.bf16.msra.mxu0 0
      %2922 = vmatprep.subr.bf16.mxu0 0
      %2923 = vmatpush1.bf16.msra.mxu0 0
      %2924 = vmatprep.subr.bf16.mxu0 0
      %2925 = vmatpush1.bf16.msra.mxu0 0
      %2926 = vmatprep.subr.bf16.mxu0 0
      %2927 = vmatpush1.bf16.msra.mxu0 0
      %2928 = vmatprep.subr.bf16.mxu0 0
      %2929 = vmatpush1.bf16.msra.mxu0 0
      %2930 = vmatprep.subr.bf16.mxu0 0
      %2931 = vmatpush1.bf16.msra.mxu0 0
      %2932 = vmatprep.subr.bf16.mxu0 0
      %2933 = vmatpush1.bf16.msra.mxu0 0
      %2934 = vmatprep.subr.bf16.mxu0 0
      %2935 = vmatpush1.bf16.msra.mxu0 0
      %2936 = vmatprep.subr.bf16.mxu0 0
      %2937 = vmatpush1.bf16.msra.mxu0 0
      %2938 = vmatprep.subr.bf16.mxu0 0
      %2939 = vmatpush1.bf16.msra.mxu0 0
      %2940 = vmatprep.subr.bf16.mxu0 0
      %2941 = vmatpush1.bf16.msra.mxu0 0
      %2942 = vmatprep.subr.bf16.mxu0 0
      %2943 = vmatpush1.bf16.msra.mxu0 0
      %2944 = vmatprep.subr.bf16.mxu0 0
      %2945 = vmatpush1.bf16.msra.mxu0 0
      %2946 = vmatprep.subr.bf16.mxu0 0
      %2947 = vmatpush1.bf16.msra.mxu0 0
      %2948 = vmatprep.mubr.bf16.mxu0 0
      %2949 = vmatmul.mubr.bf16.gmra.mrb[0].mxu0 %v2908
      %v2950 = vpop.f32.mrb[0].mxu0
      %v2951 = vadd.f32 0.0, %v2950
      %v2952 = vpop.f32.mrb[0].mxu0
      %v2953 = vpop.f32.mrb[0].mxu0
      %v2954 = vadd.f32 0.0, %v2953
      %v2955 = vpop.f32.mrb[0].mxu0
      %2956 = vmatprep.mubr.bf16.mxu0 0
      %2957 = vmatmul.mubr.bf16.gmra.mrb[0].mxu0 %v2911
      %v2958 = vpop.f32.mrb[0].mxu0
      %v2959 = vadd.f32 0.0, %v2958
      %v2960 = vpop.f32.mrb[0].mxu0
      %v2961 = vpop.f32.mrb[0].mxu0
      %v2962 = vadd.f32 0.0, %v2961
      %v2963 = vpop.f32.mrb[0].mxu0
      %2964 = vdwg.mxu0
      %v2965 = vadd.f32 %v2892, %v2951
      %v2966 = vadd.f32 %v2895, %v2954
      %v2967 = vadd.f32 %v2900, %v2959
      %v2968 = vadd.f32 %v2903, %v2962
      %s2969 = scalar_lea.vmem %s4, 2
      %v2970 = vld [vmem:[%s2969] sm:$0x3]
      %v2972 = vsel %vm696, %v2483, 0
      %v2975 = vsel %vm696, %v2484, 0
      %v2978 = vsel %vm2514, %v2970, 0
      %2980 = vmatprep.subr.bf16.mxu0 0
      %2981 = vmatpush1.bf16.msra.mxu0 %v2978
      %2982 = vmatprep.subr.bf16.mxu0 0
      %2983 = vmatpush1.bf16.msra.mxu0 0
      %2984 = vmatprep.subr.bf16.mxu0 0
      %2985 = vmatpush1.bf16.msra.mxu0 0
      %2986 = vmatprep.subr.bf16.mxu0 0
      %2987 = vmatpush1.bf16.msra.mxu0 0
      %2988 = vmatprep.subr.bf16.mxu0 0
      %2989 = vmatpush1.bf16.msra.mxu0 0
      %2990 = vmatprep.subr.bf16.mxu0 0
      %2991 = vmatpush1.bf16.msra.mxu0 0
      %2992 = vmatprep.subr.bf16.mxu0 0
      %2993 = vmatpush1.bf16.msra.mxu0 0
      %2994 = vmatprep.subr.bf16.mxu0 0
      %2995 = vmatpush1.bf16.msra.mxu0 0
      %2996 = vmatprep.subr.bf16.mxu0 0
      %2997 = vmatpush1.bf16.msra.mxu0 0
      %2998 = vmatprep.subr.bf16.mxu0 0
      %2999 = vmatpush1.bf16.msra.mxu0 0
      %3000 = vmatprep.subr.bf16.mxu0 0
      %3001 = vmatpush1.bf16.msra.mxu0 0
      %3002 = vmatprep.subr.bf16.mxu0 0
      %3003 = vmatpush1.bf16.msra.mxu0 0
      %3004 = vmatprep.subr.bf16.mxu0 0
      %3005 = vmatpush1.bf16.msra.mxu0 0
      %3006 = vmatprep.subr.bf16.mxu0 0
      %3007 = vmatpush1.bf16.msra.mxu0 0
      %3008 = vmatprep.subr.bf16.mxu0 0
      %3009 = vmatpush1.bf16.msra.mxu0 0
      %3010 = vmatprep.subr.bf16.mxu0 0
      %3011 = vmatpush1.bf16.msra.mxu0 0
      %3012 = vmatprep.mubr.bf16.mxu0 0
      %3013 = vmatmul.mubr.bf16.gmra.mrb[0].mxu0 %v2972
      %v3014 = vpop.f32.mrb[0].mxu0
      %v3015 = vadd.f32 0.0, %v3014
      %v3016 = vpop.f32.mrb[0].mxu0
      %v3017 = vpop.f32.mrb[0].mxu0
      %v3018 = vadd.f32 0.0, %v3017
      %v3019 = vpop.f32.mrb[0].mxu0
      %3020 = vmatprep.mubr.bf16.mxu0 0
      %3021 = vmatmul.mubr.bf16.gmra.mrb[0].mxu0 %v2975
      %v3022 = vpop.f32.mrb[0].mxu0
      %v3023 = vadd.f32 0.0, %v3022
      %v3024 = vpop.f32.mrb[0].mxu0
      %v3025 = vpop.f32.mrb[0].mxu0
      %v3026 = vadd.f32 0.0, %v3025
      %v3027 = vpop.f32.mrb[0].mxu0
      %3028 = vdwg.mxu0
      %v3029 = vadd.f32 %v2965, %v3015
      %v3030 = vadd.f32 %v2966, %v3018
      %v3031 = vadd.f32 %v2967, %v3023
      %v3032 = vadd.f32 %v2968, %v3026
      %s3033 = scalar_lea.vmem %s5, 2
      %v3034 = vld [vmem:[%s3033] sm:$0x3]
      %v3036 = vsel %vm696, %v1902, 0
      %v3039 = vsel %vm696, %v1903, 0
      %v3042 = vsel %vm2514, %v3034, 0
      %3044 = vmatprep.subr.bf16.mxu0 0
      %3045 = vmatpush1.bf16.msra.mxu0 %v3042
      %3046 = vmatprep.subr.bf16.mxu0 0
      %3047 = vmatpush1.bf16.msra.mxu0 0
      %3048 = vmatprep.subr.bf16.mxu0 0
      %3049 = vmatpush1.bf16.msra.mxu0 0
      %3050 = vmatprep.subr.bf16.mxu0 0
      %3051 = vmatpush1.bf16.msra.mxu0 0
      %3052 = vmatprep.subr.bf16.mxu0 0
      %3053 = vmatpush1.bf16.msra.mxu0 0
      %3054 = vmatprep.subr.bf16.mxu0 0
      %3055 = vmatpush1.bf16.msra.mxu0 0
      %3056 = vmatprep.subr.bf16.mxu0 0
      %3057 = vmatpush1.bf16.msra.mxu0 0
      %3058 = vmatprep.subr.bf16.mxu0 0
      %3059 = vmatpush1.bf16.msra.mxu0 0
      %3060 = vmatprep.subr.bf16.mxu0 0
      %3061 = vmatpush1.bf16.msra.mxu0 0
      %3062 = vmatprep.subr.bf16.mxu0 0
      %3063 = vmatpush1.bf16.msra.mxu0 0
      %3064 = vmatprep.subr.bf16.mxu0 0
      %3065 = vmatpush1.bf16.msra.mxu0 0
      %3066 = vmatprep.subr.bf16.mxu0 0
      %3067 = vmatpush1.bf16.msra.mxu0 0
      %3068 = vmatprep.subr.bf16.mxu0 0
      %3069 = vmatpush1.bf16.msra.mxu0 0
      %3070 = vmatprep.subr.bf16.mxu0 0
      %3071 = vmatpush1.bf16.msra.mxu0 0
      %3072 = vmatprep.subr.bf16.mxu0 0
      %3073 = vmatpush1.bf16.msra.mxu0 0
      %3074 = vmatprep.subr.bf16.mxu0 0
      %3075 = vmatpush1.bf16.msra.mxu0 0
      %3076 = vmatprep.mubr.bf16.mxu0 0
      %3077 = vmatmul.mubr.bf16.gmra.mrb[0].mxu0 %v3036
      %v3078 = vpop.f32.mrb[0].mxu0
      %v3079 = vadd.f32 0.0, %v3078
      %v3080 = vpop.f32.mrb[0].mxu0
      %v3081 = vpop.f32.mrb[0].mxu0
      %v3082 = vadd.f32 0.0, %v3081
      %v3083 = vpop.f32.mrb[0].mxu0
      %3084 = vmatprep.mubr.bf16.mxu0 0
      %3085 = vmatmul.mubr.bf16.gmra.mrb[0].mxu0 %v3039
      %v3086 = vpop.f32.mrb[0].mxu0
      %v3087 = vadd.f32 0.0, %v3086
      %v3088 = vpop.f32.mrb[0].mxu0
      %v3089 = vpop.f32.mrb[0].mxu0
      %v3090 = vadd.f32 0.0, %v3089
      %v3091 = vpop.f32.mrb[0].mxu0
      %3092 = vdwg.mxu0
      %v3093 = vadd.f32 %v3029, %v3079
      %v3094 = vadd.f32 %v3030, %v3082
      %v3095 = vadd.f32 %v3031, %v3087
      %v3096 = vadd.f32 %v3032, %v3090
      %v3097 = vld [vmem:[%s8 + $0x3] sm:$0x1]
      %v3098 = vlaneseq
      %v3099 = vshrl.u32 %v3098, 7
      %v3100 = vsub.s32 0, %v3099
      %v3101 = vrot.slane %v3097, %v3100
      %v3102 = vadd.f32 %v3093, %v3101
      %v3103 = vadd.f32 %v3094, %v3101
      %v3104 = vadd.f32 %v3095, %v3101
      %v3105 = vadd.f32 %v3096, %v3101
      %3106 = vst.msk [vmem:[%s366] sm:$0xff] %vm2846, %v3102
      %3107 = vst.msk [vmem:[%s366 + $0x8] sm:$0xff] %vm2846, %v3103
      %3108 = vst.msk [vmem:[%s366 + $0x10] sm:$0xff] %vm2846, %v3104
      %3109 = vst.msk [vmem:[%s366 + $0x18] sm:$0xff] %vm2846, %v3105
      %s3110 = smul.u32 %s24, 2
      %s3111 = sadd.s32 %s3110, %s25
      %p3112 = scmp.lt.s32.totalorder %s3111, 3
      %s3113 = scalar_select %p3112, %s3111, 3
      %s3114 = smul.addr %s3113, 4
      %s3115 = smul.addr %s3114, 8
      %s3116 = scalar_lea.vmem %s9, %s3115
      // Predicated region
      $region65: #{tpu_custom_call.1} parent=55 // pred_check
        %p3117 = pneg %p252
      $region66: #{tpu_custom_call.1} parent=55 // pred_check_branch
        %3119 = sbr.rel (%p3117) target = $region68
      $region67: #{tpu_custom_call.1} parent=55 // pred_region
        %s3120 = smul.u32 %s24, 2
        %s3121 = sadd.s32 %s3120, %s25
      $region68: #{tpu_custom_call.1} parent=55 // pred_fallthru
        _
    $region56: #{tpu_custom_call.1} parent=5 // pred_fallthru
      _
    %p3122 = scmp.le.s32.totalorder 2, %s15
    // Predicated region
    $region69: #{tpu_custom_call.1} parent=5 // pred_check
      %p3123 = pneg %p3122
    $region70: #{tpu_custom_call.1} parent=5 // pred_check_branch
      %3125 = sbr.rel (%p3123) target = $region72
    $region71: #{tpu_custom_call.1} parent=5 // pred_region
      %s3126 = ssub.s32 %s15, 2
      // Predicated region
      $region73: #{tpu_custom_call.1} parent=71 // pred_check
        %p3127 = pneg %p258
      $region74: #{tpu_custom_call.1} parent=71 // pred_check_branch
        %3129 = sbr.rel (%p3127) target = $region76
      $region75: #{tpu_custom_call.1} parent=71 // pred_region
        %s3130 = smul.u32 %s26, 2
        %s3131 = sadd.s32 %s3130, %s27
        %p3132 = scmp.lt.s32.totalorder %s3131, 3
        %s3133 = scalar_select %p3132, %s3131, 3
        %s3134 = smul.addr %s3133, 4
        %s3135 = smul.addr %s3134, 8
        %s3136 = scalar_lea.vmem %s9, %s3135
      $region76: #{tpu_custom_call.1} parent=71 // pred_fallthru
        _
    $region72: #{tpu_custom_call.1} parent=5 // pred_fallthru
      _
  $region6: #{tpu_custom_call.1} parent=0 // loop_footer
    %s19 = sadd.s32 1, %s15
  $region7: #{tpu_custom_call.1} parent=0 // loop_footer_branch
    %14 = sbr.rel target = $region3
  $region8: #{tpu_custom_call.1} parent=0 // loop_exit
    _

</llo_original>
